<compile_context>
chip_gen: v6e
topology: v6e:2x2x1
jax: 0.10.0
libtpu: 0.0.40
codegen_flags: <defaults>
</compile_context>

<pallas_src>
import math

import jax
import jax.numpy as jnp
from jax.experimental import pallas as pl
from jax.experimental.pallas import tpu as pltpu

D_MODEL = 32
N_HEADS = 4
D_FF = 64
EPS = 1e-6          # tutorial LayerNormalization eps (added to std, not variance)
NEG_INF = -1e9

# bf16 operands + f32 accumulation: native MXU path on v5e/v6e/v7x.
MATMUL_DTYPE = jnp.bfloat16

_D, _F = D_MODEL, D_FF

# ---- weight-slab column offsets (slab shape (D, 8D + F)) -------------------- #
W_SA_QKV = 0 * _D           # self-attn Wq|Wk|Wv   (width 3D)
W_SA_O   = 3 * _D           # self-attn Wo         (width D)
W_CA_QV  = 4 * _D           # cross-attn Wq|Wv     (width 2D, both consume enc)
W_CA_K   = 6 * _D           # cross-attn Wk        (width D)
W_CA_O   = 7 * _D           # cross-attn Wo        (width D)
W_FF1    = 8 * _D           # FFN W1               (width F)
W_COLS   = 8 * _D + _F

# ---- bias / LayerNorm param-row offsets (row shape (1, 15D + F)) ------------ #
P_B_SA_QKV = 0 * _D
P_B_SA_O   = 3 * _D
P_B_CA_QV  = 4 * _D
P_B_CA_K   = 6 * _D
P_B_CA_O   = 7 * _D
P_B_FF1    = 8 * _D
P_B_FF2    = 8 * _D + _F
P_LN_A     = 9 * _D + _F    # alpha0 | alpha1 | alpha2
P_LN_B     = 12 * _D + _F   # bias0  | bias1  | bias2
P_COLS     = 15 * _D + _F


def _mm(a, b):
    return jnp.dot(a.astype(MATMUL_DTYPE), b.astype(MATMUL_DTYPE),
                   preferred_element_type=jnp.float32)


# ------------------------------ fused kernel -------------------------------- #

def decoder_block_kernel(x_ref, enc_ref, kv_ref, w_ref, w2_ref, p_ref, o_ref):
    S, D = x_ref.shape
    H = N_HEADS
    DK = D // H
    scale = 1.0 / math.sqrt(DK)

    x = x_ref[...]                     # (S, D) one batch element, resident in VMEM
    enc = enc_ref[...]                 # (S, D)
    kv_ok = kv_ref[...] > 0.5          # (1, S) key-valid (padding mask)

    def brow(off, width):              # (1, width) slice of the packed bias/LN row
        return p_ref[:, off:off + width]

    def layer_norm(t, i):
        # tutorial LayerNormalization: unbiased std (ddof=1), eps added to std.
        alpha = brow(P_LN_A + i * D, D)
        beta = brow(P_LN_B + i * D, D)
        mean = jnp.mean(t, axis=-1, keepdims=True)
        var = jnp.sum((t - mean) ** 2, axis=-1, keepdims=True) * (1.0 / (D - 1))
        inv = pl.reciprocal(jnp.sqrt(var) + EPS, approx=False)   # EUP, not VALU divide
        return (t - mean) * (alpha * inv) + beta

    def attention(q, k, v, wo_off, bo_off):
        # Heads via reshape + leading-batch transpose; no per-head Python matmuls.
        qh = jnp.transpose(q.reshape(S, H, DK), (1, 0, 2)).astype(MATMUL_DTYPE)  # (H,S,DK)
        kh = jnp.transpose(k.reshape(S, H, DK), (1, 0, 2)).astype(MATMUL_DTYPE)
        vh = jnp.transpose(v.reshape(S, H, DK), (1, 0, 2)).astype(MATMUL_DTYPE)

        scores = jnp.einsum('hqd,hkd->hqk', qh, kh,
                            preferred_element_type=jnp.float32) * scale          # (H,S,S)
        # Hard replace like the reference's masked_fill(mask == 0, -1e9).
        scores = jnp.where(kv_ok[None], scores, NEG_INF)
        m = jnp.max(scores, axis=-1, keepdims=True)
        e = jnp.exp(scores - m)
        probs = e * pl.reciprocal(jnp.sum(e, axis=-1, keepdims=True), approx=False)

        ctx = jnp.einsum('hqk,hkd->hqd', probs.astype(MATMUL_DTYPE), vh,
                         preferred_element_type=jnp.float32)                     # (H,S,DK)
        ctx = jnp.transpose(ctx, (1, 0, 2)).reshape(S, D)                        # (S, D)
        # Single K=D output projection (no per-head accumulation loop).
        return _mm(ctx, w_ref[:, wo_off:wo_off + D]) + brow(bo_off, D)

    # ---- residual 0: x + SelfAttn(norm0(x), norm0(x), norm0(x), src_mask) ----
    nx = layer_norm(x, 0)
    qkv = _mm(nx, w_ref[:, W_SA_QKV:W_SA_QKV + 3 * D]) + brow(P_B_SA_QKV, 3 * D)
    x = x + attention(qkv[:, 0:D], qkv[:, D:2 * D], qkv[:, 2 * D:3 * D],
                      W_SA_O, P_B_SA_O)

    # ---- residual 1: x + CrossAttn(q=enc, k=norm1(x), v=enc, src_mask) -------
    nx = layer_norm(x, 1)
    qv = _mm(enc, w_ref[:, W_CA_QV:W_CA_QV + 2 * D]) + brow(P_B_CA_QV, 2 * D)
    kc = _mm(nx, w_ref[:, W_CA_K:W_CA_K + D]) + brow(P_B_CA_K, D)
    x = x + attention(qv[:, 0:D], kc, qv[:, D:2 * D], W_CA_O, P_B_CA_O)

    # ---- residual 2: x + FFN(norm2(x)) ----------------------------------------
    nx = layer_norm(x, 2)
    h1 = jnp.maximum(_mm(nx, w_ref[:, W_FF1:W_FF1 + _F]) + brow(P_B_FF1, _F), 0.0)
    x = x + _mm(h1, w2_ref[...]) + brow(P_B_FF2, D)

    # TODO(synk): with D_MODEL < 128 the store is a masked vst; at production sizes
    # pad D to a multiple of 128 (or fold S into the lane axis) for lane-dense stores.
    o_ref[...] = x.astype(o_ref.dtype)


# ------------------------------ packing & glue ------------------------------ #

def pack_params(params):
    """Fold the 17 parameter tensors into 3 slabs. Call ONCE, outside the per-step jit."""
    sa, ca, ff = params["self_attn"], params["cross_attn"], params["ffn"]
    w_slab = jnp.concatenate(
        [sa["wq"], sa["wk"], sa["wv"], sa["wo"],
         ca["wq"], ca["wv"], ca["wk"], ca["wo"], ff["w1"]], axis=1)          # (D, 8D+F)
    pvec = jnp.concatenate(
        [sa["bq"], sa["bk"], sa["bv"], sa["bo"],
         ca["bq"], ca["bv"], ca["bk"], ca["bo"], ff["b1"], ff["b2"],
         params["ln0_alpha"], params["ln1_alpha"], params["ln2_alpha"],
         params["ln0_bias"], params["ln1_bias"], params["ln2_bias"]], axis=1)  # (1, 15D+F)
    assert w_slab.shape == (D_MODEL, W_COLS) and pvec.shape == (1, P_COLS)
    return dict(w_slab=w_slab, w2=ff["w2"], pvec=pvec)


def decoder_block_forward(packed, x, encoded_output, src_key_valid, tgt_mask=None):
    """src_key_valid: (B, S) float, 1.0 = attendable key, 0.0 = padded key.
    tgt_mask is accepted for signature parity with the reference forward (unused)."""
    del tgt_mask
    B, S, D = x.shape
    kvalid = src_key_valid.astype(jnp.float32).reshape(B, 1, S)

    vmem = pl.BlockSpec(memory_space=pltpu.MemorySpace.VMEM)   # whole-array, single DMA
    return pl.pallas_call(
        decoder_block_kernel,
        out_shape=jax.ShapeDtypeStruct((B, S, D), jnp.float32),
        grid=(B,),
        in_specs=[
            pl.BlockSpec((None, S, D), lambda b: (b, 0, 0)),   # x       (per batch)
            pl.BlockSpec((None, S, D), lambda b: (b, 0, 0)),   # enc     (per batch)
            pl.BlockSpec((None, 1, S), lambda b: (b, 0, 0)),   # kvalid  (per batch)
            vmem,                                              # weight slab
            vmem,                                              # W2
            vmem,                                              # bias + LN row
        ],
        out_specs=pl.BlockSpec((None, S, D), lambda b: (b, 0, 0)),
        compiler_params=pltpu.CompilerParams(
            dimension_semantics=("parallel",)),                # megacore split on v7x
    )(x, encoded_output, kvalid, packed["w_slab"], packed["w2"], packed["pvec"])


# ------------------------------ params & reference -------------------------- #

def init_params(key):
    D, F = D_MODEL, D_FF
    ks = iter(jax.random.split(key, 32))

    def lin(din, dout):
        w = jax.random.normal(next(ks), (din, dout), jnp.float32) * 0.05
        b = jax.random.normal(next(ks), (1, dout), jnp.float32) * 0.05
        return w, b

    def attn_params():
        wq, bq = lin(D, D)
        wk, bk = lin(D, D)
        wv, bv = lin(D, D)
        wo, bo = lin(D, D)
        return dict(wq=wq, bq=bq, wk=wk, bk=bk, wv=wv, bv=bv, wo=wo, bo=bo)

    w1, b1 = lin(D, F)
    w2, b2 = lin(F, D)

    params = dict(
        self_attn=attn_params(),
        cross_attn=attn_params(),
        ffn=dict(w1=w1, b1=b1, w2=w2, b2=b2),
    )
    for i in range(3):  # LayerNormalization params (tutorial inits: alpha=1, bias=0)
        params[f"ln{i}_alpha"] = jnp.ones((1, D), jnp.float32)
        params[f"ln{i}_bias"] = jnp.zeros((1, D), jnp.float32)
    return params


def _reference_forward(params, x, enc, key_valid):
    """Pure-JAX replica of the PyTorch DecoderBlock forward (eval mode)."""
    def ln(t, a, b):
        mean = t.mean(-1, keepdims=True)
        var = ((t - mean) ** 2).sum(-1, keepdims=True) / (t.shape[-1] - 1)
        return a * (t - mean) / (jnp.sqrt(var) + EPS) + b

    def mha(q_in, k_in, v_in, p):
        q = q_in @ p["wq"] + p["bq"]
        k = k_in @ p["wk"] + p["bk"]
        v = v_in @ p["wv"] + p["bv"]
        B, S, D = q.shape
        H, DK = N_HEADS, D // N_HEADS
        qh = q.reshape(B, S, H, DK).transpose(0, 2, 1, 3)
        kh = k.reshape(B, S, H, DK).transpose(0, 2, 1, 3)
        vh = v.reshape(B, S, H, DK).transpose(0, 2, 1, 3)
        s = jnp.einsum('bhqd,bhkd->bhqk', qh, kh) / math.sqrt(DK)
        s = jnp.where(key_valid[:, None, None, :] > 0.5, s, NEG_INF)
        a = jax.nn.softmax(s, axis=-1)
        ctx = jnp.einsum('bhqk,bhkd->bhqd', a, vh).transpose(0, 2, 1, 3).reshape(B, S, D)
        return ctx @ p["wo"] + p["bo"]

    h = x + mha(ln(x, params["ln0_alpha"], params["ln0_bias"]),
                ln(x, params["ln0_alpha"], params["ln0_bias"]),
                ln(x, params["ln0_alpha"], params["ln0_bias"]),
                params["self_attn"])
    n = ln(h, params["ln1_alpha"], params["ln1_bias"])
    h = h + mha(enc, n, enc, params["cross_attn"])
    n = ln(h, params["ln2_alpha"], params["ln2_bias"])
    ff = params["ffn"]
    h = h + jnp.maximum(n @ ff["w1"] + ff["b1"], 0.0) @ ff["w2"] + ff["b2"]
    return h


if __name__ == "__main__":
    B, S = 2, 8
    key = jax.random.PRNGKey(0)
    k_x, k_enc, k_p = jax.random.split(key, 3)

    x = jax.random.normal(k_x, (B, S, D_MODEL), jnp.float32)
    encoded_output = jax.random.normal(k_enc, (B, S, D_MODEL), jnp.float32)

    # src padding mask: batch 0 fully valid, batch 1 has last 2 key positions padded.
    src_key_valid = jnp.ones((B, S), jnp.float32).at[1, -2:].set(0.0)
    # causal tgt mask (unused by the reference forward, passed for signature parity)
    tgt_mask = jnp.broadcast_to(
        jnp.tril(jnp.ones((S, S), jnp.float32))[None], (B, S, S))

    params = init_params(k_p)
    packed = pack_params(params)          # packed once, outside the jitted step

    fwd = jax.jit(decoder_block_forward)
    out = jax.block_until_ready(fwd(packed, x, encoded_output, src_key_valid, tgt_mask))

    assert out.shape == (B, S, D_MODEL)
    assert bool(jnp.all(jnp.isfinite(out)))

    # bf16 MXU operands (f32 accumulation) => small deviation from the pure-f32 reference.
    ref = _reference_forward(params, x, encoded_output, src_key_valid)
    max_err = float(jnp.max(jnp.abs(out - ref)))
    assert max_err < 2e-2, max_err

    print("KERNEL_OK")
</pallas_src>

<mosaic_0001>
module attributes {stable_mosaic.version = 11 : i64} {
  func.func @decoder_block_kernel(%arg0: i32, %arg1: memref<1x8x32xf32, #tpu.memory_space<vmem>>, %arg2: memref<1x8x32xf32, #tpu.memory_space<vmem>>, %arg3: memref<1x1x8xf32, #tpu.memory_space<vmem>>, %arg4: memref<32x320xf32, #tpu.memory_space<vmem>>, %arg5: memref<64x32xf32, #tpu.memory_space<vmem>>, %arg6: memref<1x544xf32, #tpu.memory_space<vmem>>, %arg7: memref<1x8x32xf32, #tpu.memory_space<vmem>>) attributes {dimension_semantics = [#tpu.dimension_semantics<parallel>], iteration_bounds = array<i64: 2>, scalar_prefetch = 0 : i64, scratch_operands = 0 : i64, tpu.core_type = #tpu.core_type<tc>, window_params = [{transform_indices = @transform_0, window_bounds = array<i64: 1, 8, 32>}, {transform_indices = @transform_1, window_bounds = array<i64: 1, 8, 32>}, {transform_indices = @transform_2, window_bounds = array<i64: 1, 1, 8>}, {pipeline_mode = #tpu.pipeline_mode<synchronous>, transform_indices = @transform_3, window_bounds = array<i64: 32, 320>}, {pipeline_mode = #tpu.pipeline_mode<synchronous>, transform_indices = @transform_4, window_bounds = array<i64: 64, 32>}, {pipeline_mode = #tpu.pipeline_mode<synchronous>, transform_indices = @transform_5, window_bounds = array<i64: 1, 544>}, {transform_indices = @transform_6, window_bounds = array<i64: 1, 8, 32>}]} {
    %c0 = arith.constant 0 : index
    %c0_0 = arith.constant 0 : index
    %c0_1 = arith.constant 0 : index
    %0 = vector.load %arg1[%c0, %c0_0, %c0_1] : memref<1x8x32xf32, #tpu.memory_space<vmem>>, vector<1x8x32xf32>
    %1 = vector.shape_cast %0 : vector<1x8x32xf32> to vector<8x32xf32>
    %c0_2 = arith.constant 0 : index
    %c0_3 = arith.constant 0 : index
    %c0_4 = arith.constant 0 : index
    %2 = vector.load %arg2[%c0_2, %c0_3, %c0_4] : memref<1x8x32xf32, #tpu.memory_space<vmem>>, vector<1x8x32xf32>
    %3 = vector.shape_cast %2 : vector<1x8x32xf32> to vector<8x32xf32>
    %c0_5 = arith.constant 0 : index
    %c0_6 = arith.constant 0 : index
    %c0_7 = arith.constant 0 : index
    %4 = vector.load %arg3[%c0_5, %c0_6, %c0_7] : memref<1x1x8xf32, #tpu.memory_space<vmem>>, vector<1x1x8xf32>
    %5 = vector.shape_cast %4 : vector<1x1x8xf32> to vector<1x8xf32>
    %cst = arith.constant 5.000000e-01 : f32
    %6 = vector.broadcast %cst : f32 to vector<1x8xf32>
    %7 = arith.cmpf ogt, %5, %6 : vector<1x8xf32>
    %c0_8 = arith.constant 0 : index
    %c352 = arith.constant 352 : index
    %8 = vector.load %arg6[%c0_8, %c352] : memref<1x544xf32, #tpu.memory_space<vmem>>, vector<1x32xf32>
    %c0_9 = arith.constant 0 : index
    %c448 = arith.constant 448 : index
    %9 = vector.load %arg6[%c0_9, %c448] : memref<1x544xf32, #tpu.memory_space<vmem>>, vector<1x32xf32>
    %cst_10 = arith.constant dense<0.000000e+00> : vector<8xf32>
    %10 = vector.multi_reduction <add>, %1, %cst_10 [1] : vector<8x32xf32> to vector<8xf32>
    %11 = vector.shape_cast %10 : vector<8xf32> to vector<8x1xf32>
    %cst_11 = arith.constant 3.200000e+01 : f32
    %12 = vector.broadcast %cst_11 : f32 to vector<8x1xf32>
    %13 = arith.divf %11, %12 : vector<8x1xf32>
    %14 = vector.broadcast %13 : vector<8x1xf32> to vector<8x32xf32>
    %15 = arith.subf %1, %14 : vector<8x32xf32>
    %16 = arith.mulf %15, %15 : vector<8x32xf32>
    %cst_12 = arith.constant dense<0.000000e+00> : vector<8xf32>
    %17 = vector.multi_reduction <add>, %16, %cst_12 [1] : vector<8x32xf32> to vector<8xf32>
    %18 = vector.shape_cast %17 : vector<8xf32> to vector<8x1xf32>
    %cst_13 = arith.constant 0.0322580636 : f32
    %19 = vector.broadcast %cst_13 : f32 to vector<8x1xf32>
    %20 = arith.mulf %18, %19 : vector<8x1xf32>
    %21 = math.sqrt %20 : vector<8x1xf32>
    %cst_14 = arith.constant 9.99999997E-7 : f32
    %22 = vector.broadcast %cst_14 : f32 to vector<8x1xf32>
    %23 = arith.addf %21, %22 : vector<8x1xf32>
    %24 = tpu.reciprocal %23 : vector<8x1xf32> -> vector<8x1xf32>
    %25 = vector.broadcast %13 : vector<8x1xf32> to vector<8x32xf32>
    %26 = arith.subf %1, %25 : vector<8x32xf32>
    %27 = vector.broadcast %8 : vector<1x32xf32> to vector<8x32xf32>
    %28 = vector.broadcast %24 : vector<8x1xf32> to vector<8x32xf32>
    %29 = arith.mulf %27, %28 : vector<8x32xf32>
    %30 = arith.mulf %26, %29 : vector<8x32xf32>
    %31 = vector.broadcast %9 : vector<1x32xf32> to vector<8x32xf32>
    %32 = arith.addf %30, %31 : vector<8x32xf32>
    %c0_15 = arith.constant 0 : index
    %c0_16 = arith.constant 0 : index
    %33 = vector.load %arg4[%c0_15, %c0_16] : memref<32x320xf32, #tpu.memory_space<vmem>>, vector<32x96xf32>
    %34 = arith.truncf %32 : vector<8x32xf32> to vector<8x32xbf16>
    %35 = arith.truncf %33 : vector<32x96xf32> to vector<32x96xbf16>
    %cst_17 = arith.constant dense<0.000000e+00> : vector<8x96xf32>
    %36 = tpu.matmul %34, %35, %cst_17 {dimension_numbers = #tpu.dot_dimension_numbers<[1], [0], [0], [1], [0, 0, 1, 1], [], []>} : vector<8x32xbf16>, vector<32x96xbf16>, vector<8x96xf32> -> vector<8x96xf32>
    %c0_18 = arith.constant 0 : index
    %c0_19 = arith.constant 0 : index
    %37 = vector.load %arg6[%c0_18, %c0_19] : memref<1x544xf32, #tpu.memory_space<vmem>>, vector<1x96xf32>
    %38 = vector.broadcast %37 : vector<1x96xf32> to vector<8x96xf32>
    %39 = arith.addf %36, %38 : vector<8x96xf32>
    %40 = vector.extract_strided_slice %39 {offsets = [0, 0], sizes = [8, 32], strides = [1, 1]} : vector<8x96xf32> to vector<8x32xf32>
    %41 = vector.extract_strided_slice %39 {offsets = [0, 32], sizes = [8, 32], strides = [1, 1]} : vector<8x96xf32> to vector<8x32xf32>
    %42 = vector.extract_strided_slice %39 {offsets = [0, 64], sizes = [8, 32], strides = [1, 1]} : vector<8x96xf32> to vector<8x32xf32>
    %43 = vector.shape_cast %40 : vector<8x32xf32> to vector<8x4x8xf32>
    %44 = tpu.transpose %43, [1, 0, 2] : vector<8x4x8xf32> -> vector<4x8x8xf32>
    %45 = arith.truncf %44 : vector<4x8x8xf32> to vector<4x8x8xbf16>
    %46 = vector.shape_cast %41 : vector<8x32xf32> to vector<8x4x8xf32>
    %47 = tpu.transpose %46, [1, 0, 2] : vector<8x4x8xf32> -> vector<4x8x8xf32>
    %48 = arith.truncf %47 : vector<4x8x8xf32> to vector<4x8x8xbf16>
    %49 = vector.shape_cast %42 : vector<8x32xf32> to vector<8x4x8xf32>
    %50 = tpu.transpose %49, [1, 0, 2] : vector<8x4x8xf32> -> vector<4x8x8xf32>
    %51 = arith.truncf %50 : vector<4x8x8xf32> to vector<4x8x8xbf16>
    "tpu.trace_start"() <{level = 10 : i32, message = "hqd,hkd->hqk"}> : () -> ()
    %cst_20 = arith.constant dense<0.000000e+00> : vector<4x8x8xf32>
    %52 = tpu.matmul %45, %48, %cst_20 {dimension_numbers = #tpu.dot_dimension_numbers<[2], [2], [1], [1], [0, 0, 0, 1, 1, 1], [0], [0]>} : vector<4x8x8xbf16>, vector<4x8x8xbf16>, vector<4x8x8xf32> -> vector<4x8x8xf32>
    "tpu.trace_stop"() : () -> ()
    %cst_21 = arith.constant 0.353553385 : f32
    %53 = vector.broadcast %cst_21 : f32 to vector<4x8x8xf32>
    %54 = arith.mulf %52, %53 : vector<4x8x8xf32>
    %55 = vector.shape_cast %7 : vector<1x8xi1> to vector<1x1x8xi1>
    %cst_22 = arith.constant -1.000000e+09 : f32
    %56 = vector.shape_cast %55 : vector<1x1x8xi1> to vector<1x1x8xi1>
    %57 = vector.broadcast %56 : vector<1x1x8xi1> to vector<4x8x8xi1>
    %58 = vector.broadcast %cst_22 : f32 to vector<4x8x8xf32>
    %59 = arith.select %57, %54, %58 : vector<4x8x8xi1>, vector<4x8x8xf32>
    %cst_23 = arith.constant dense<0xFF800000> : vector<4x8xf32>
    %60 = vector.multi_reduction <maximumf>, %59, %cst_23 [2] : vector<4x8x8xf32> to vector<4x8xf32>
    %61 = vector.shape_cast %60 : vector<4x8xf32> to vector<4x8x1xf32>
    %62 = vector.broadcast %61 : vector<4x8x1xf32> to vector<4x8x8xf32>
    %63 = arith.subf %59, %62 : vector<4x8x8xf32>
    %64 = math.exp %63 : vector<4x8x8xf32>
    %cst_24 = arith.constant dense<0.000000e+00> : vector<4x8xf32>
    %65 = vector.multi_reduction <add>, %64, %cst_24 [2] : vector<4x8x8xf32> to vector<4x8xf32>
    %66 = vector.shape_cast %65 : vector<4x8xf32> to vector<4x8x1xf32>
    %67 = tpu.reciprocal %66 : vector<4x8x1xf32> -> vector<4x8x1xf32>
    %68 = vector.broadcast %67 : vector<4x8x1xf32> to vector<4x8x8xf32>
    %69 = arith.mulf %64, %68 : vector<4x8x8xf32>
    %70 = arith.truncf %69 : vector<4x8x8xf32> to vector<4x8x8xbf16>
    "tpu.trace_start"() <{level = 10 : i32, message = "hqk,hkd->hqd"}> : () -> ()
    %cst_25 = arith.constant dense<0.000000e+00> : vector<4x8x8xf32>
    %71 = tpu.matmul %70, %51, %cst_25 {dimension_numbers = #tpu.dot_dimension_numbers<[2], [1], [1], [2], [0, 0, 0, 1, 1, 2], [0], [0]>} : vector<4x8x8xbf16>, vector<4x8x8xbf16>, vector<4x8x8xf32> -> vector<4x8x8xf32>
    "tpu.trace_stop"() : () -> ()
    %72 = tpu.transpose %71, [1, 0, 2] : vector<4x8x8xf32> -> vector<8x4x8xf32>
    %73 = vector.shape_cast %72 : vector<8x4x8xf32> to vector<8x32xf32>
    %c0_26 = arith.constant 0 : index
    %c96 = arith.constant 96 : index
    %74 = vector.load %arg4[%c0_26, %c96] : memref<32x320xf32, #tpu.memory_space<vmem>>, vector<32x32xf32>
    %75 = arith.truncf %73 : vector<8x32xf32> to vector<8x32xbf16>
    %76 = arith.truncf %74 : vector<32x32xf32> to vector<32x32xbf16>
    %cst_27 = arith.constant dense<0.000000e+00> : vector<8x32xf32>
    %77 = tpu.matmul %75, %76, %cst_27 {dimension_numbers = #tpu.dot_dimension_numbers<[1], [0], [0], [1], [0, 0, 1, 1], [], []>} : vector<8x32xbf16>, vector<32x32xbf16>, vector<8x32xf32> -> vector<8x32xf32>
    %c0_28 = arith.constant 0 : index
    %c96_29 = arith.constant 96 : index
    %78 = vector.load %arg6[%c0_28, %c96_29] : memref<1x544xf32, #tpu.memory_space<vmem>>, vector<1x32xf32>
    %79 = vector.broadcast %78 : vector<1x32xf32> to vector<8x32xf32>
    %80 = arith.addf %77, %79 : vector<8x32xf32>
    %81 = arith.addf %1, %80 : vector<8x32xf32>
    %c0_30 = arith.constant 0 : index
    %c384 = arith.constant 384 : index
    %82 = vector.load %arg6[%c0_30, %c384] : memref<1x544xf32, #tpu.memory_space<vmem>>, vector<1x32xf32>
    %c0_31 = arith.constant 0 : index
    %c480 = arith.constant 480 : index
    %83 = vector.load %arg6[%c0_31, %c480] : memref<1x544xf32, #tpu.memory_space<vmem>>, vector<1x32xf32>
    %cst_32 = arith.constant dense<0.000000e+00> : vector<8xf32>
    %84 = vector.multi_reduction <add>, %81, %cst_32 [1] : vector<8x32xf32> to vector<8xf32>
    %85 = vector.shape_cast %84 : vector<8xf32> to vector<8x1xf32>
    %cst_33 = arith.constant 3.200000e+01 : f32
    %86 = vector.broadcast %cst_33 : f32 to vector<8x1xf32>
    %87 = arith.divf %85, %86 : vector<8x1xf32>
    %88 = vector.broadcast %87 : vector<8x1xf32> to vector<8x32xf32>
    %89 = arith.subf %81, %88 : vector<8x32xf32>
    %90 = arith.mulf %89, %89 : vector<8x32xf32>
    %cst_34 = arith.constant dense<0.000000e+00> : vector<8xf32>
    %91 = vector.multi_reduction <add>, %90, %cst_34 [1] : vector<8x32xf32> to vector<8xf32>
    %92 = vector.shape_cast %91 : vector<8xf32> to vector<8x1xf32>
    %cst_35 = arith.constant 0.0322580636 : f32
    %93 = vector.broadcast %cst_35 : f32 to vector<8x1xf32>
    %94 = arith.mulf %92, %93 : vector<8x1xf32>
    %95 = math.sqrt %94 : vector<8x1xf32>
    %cst_36 = arith.constant 9.99999997E-7 : f32
    %96 = vector.broadcast %cst_36 : f32 to vector<8x1xf32>
    %97 = arith.addf %95, %96 : vector<8x1xf32>
    %98 = tpu.reciprocal %97 : vector<8x1xf32> -> vector<8x1xf32>
    %99 = vector.broadcast %87 : vector<8x1xf32> to vector<8x32xf32>
    %100 = arith.subf %81, %99 : vector<8x32xf32>
    %101 = vector.broadcast %82 : vector<1x32xf32> to vector<8x32xf32>
    %102 = vector.broadcast %98 : vector<8x1xf32> to vector<8x32xf32>
    %103 = arith.mulf %101, %102 : vector<8x32xf32>
    %104 = arith.mulf %100, %103 : vector<8x32xf32>
    %105 = vector.broadcast %83 : vector<1x32xf32> to vector<8x32xf32>
    %106 = arith.addf %104, %105 : vector<8x32xf32>
    %c0_37 = arith.constant 0 : index
    %c128 = arith.constant 128 : index
    %107 = vector.load %arg4[%c0_37, %c128] : memref<32x320xf32, #tpu.memory_space<vmem>>, vector<32x64xf32>
    %108 = arith.truncf %3 : vector<8x32xf32> to vector<8x32xbf16>
    %109 = arith.truncf %107 : vector<32x64xf32> to vector<32x64xbf16>
    %cst_38 = arith.constant dense<0.000000e+00> : vector<8x64xf32>
    %110 = tpu.matmul %108, %109, %cst_38 {dimension_numbers = #tpu.dot_dimension_numbers<[1], [0], [0], [1], [0, 0, 1, 1], [], []>} : vector<8x32xbf16>, vector<32x64xbf16>, vector<8x64xf32> -> vector<8x64xf32>
    %c0_39 = arith.constant 0 : index
    %c128_40 = arith.constant 128 : index
    %111 = vector.load %arg6[%c0_39, %c128_40] : memref<1x544xf32, #tpu.memory_space<vmem>>, vector<1x64xf32>
    %112 = vector.broadcast %111 : vector<1x64xf32> to vector<8x64xf32>
    %113 = arith.addf %110, %112 : vector<8x64xf32>
    %c0_41 = arith.constant 0 : index
    %c192 = arith.constant 192 : index
    %114 = vector.load %arg4[%c0_41, %c192] : memref<32x320xf32, #tpu.memory_space<vmem>>, vector<32x32xf32>
    %115 = arith.truncf %106 : vector<8x32xf32> to vector<8x32xbf16>
    %116 = arith.truncf %114 : vector<32x32xf32> to vector<32x32xbf16>
    %cst_42 = arith.constant dense<0.000000e+00> : vector<8x32xf32>
    %117 = tpu.matmul %115, %116, %cst_42 {dimension_numbers = #tpu.dot_dimension_numbers<[1], [0], [0], [1], [0, 0, 1, 1], [], []>} : vector<8x32xbf16>, vector<32x32xbf16>, vector<8x32xf32> -> vector<8x32xf32>
    %c0_43 = arith.constant 0 : index
    %c192_44 = arith.constant 192 : index
    %118 = vector.load %arg6[%c0_43, %c192_44] : memref<1x544xf32, #tpu.memory_space<vmem>>, vector<1x32xf32>
    %119 = vector.broadcast %118 : vector<1x32xf32> to vector<8x32xf32>
    %120 = arith.addf %117, %119 : vector<8x32xf32>
    %121 = vector.extract_strided_slice %113 {offsets = [0, 0], sizes = [8, 32], strides = [1, 1]} : vector<8x64xf32> to vector<8x32xf32>
    %122 = vector.extract_strided_slice %113 {offsets = [0, 32], sizes = [8, 32], strides = [1, 1]} : vector<8x64xf32> to vector<8x32xf32>
    %123 = vector.shape_cast %121 : vector<8x32xf32> to vector<8x4x8xf32>
    %124 = tpu.transpose %123, [1, 0, 2] : vector<8x4x8xf32> -> vector<4x8x8xf32>
    %125 = arith.truncf %124 : vector<4x8x8xf32> to vector<4x8x8xbf16>
    %126 = vector.shape_cast %120 : vector<8x32xf32> to vector<8x4x8xf32>
    %127 = tpu.transpose %126, [1, 0, 2] : vector<8x4x8xf32> -> vector<4x8x8xf32>
    %128 = arith.truncf %127 : vector<4x8x8xf32> to vector<4x8x8xbf16>
    %129 = vector.shape_cast %122 : vector<8x32xf32> to vector<8x4x8xf32>
    %130 = tpu.transpose %129, [1, 0, 2] : vector<8x4x8xf32> -> vector<4x8x8xf32>
    %131 = arith.truncf %130 : vector<4x8x8xf32> to vector<4x8x8xbf16>
    "tpu.trace_start"() <{level = 10 : i32, message = "hqd,hkd->hqk"}> : () -> ()
    %cst_45 = arith.constant dense<0.000000e+00> : vector<4x8x8xf32>
    %132 = tpu.matmul %125, %128, %cst_45 {dimension_numbers = #tpu.dot_dimension_numbers<[2], [2], [1], [1], [0, 0, 0, 1, 1, 1], [0], [0]>} : vector<4x8x8xbf16>, vector<4x8x8xbf16>, vector<4x8x8xf32> -> vector<4x8x8xf32>
    "tpu.trace_stop"() : () -> ()
    %cst_46 = arith.constant 0.353553385 : f32
    %133 = vector.broadcast %cst_46 : f32 to vector<4x8x8xf32>
    %134 = arith.mulf %132, %133 : vector<4x8x8xf32>
    %135 = vector.shape_cast %7 : vector<1x8xi1> to vector<1x1x8xi1>
    %cst_47 = arith.constant -1.000000e+09 : f32
    %136 = vector.shape_cast %135 : vector<1x1x8xi1> to vector<1x1x8xi1>
    %137 = vector.broadcast %136 : vector<1x1x8xi1> to vector<4x8x8xi1>
    %138 = vector.broadcast %cst_47 : f32 to vector<4x8x8xf32>
    %139 = arith.select %137, %134, %138 : vector<4x8x8xi1>, vector<4x8x8xf32>
    %cst_48 = arith.constant dense<0xFF800000> : vector<4x8xf32>
    %140 = vector.multi_reduction <maximumf>, %139, %cst_48 [2] : vector<4x8x8xf32> to vector<4x8xf32>
    %141 = vector.shape_cast %140 : vector<4x8xf32> to vector<4x8x1xf32>
    %142 = vector.broadcast %141 : vector<4x8x1xf32> to vector<4x8x8xf32>
    %143 = arith.subf %139, %142 : vector<4x8x8xf32>
    %144 = math.exp %143 : vector<4x8x8xf32>
    %cst_49 = arith.constant dense<0.000000e+00> : vector<4x8xf32>
    %145 = vector.multi_reduction <add>, %144, %cst_49 [2] : vector<4x8x8xf32> to vector<4x8xf32>
    %146 = vector.shape_cast %145 : vector<4x8xf32> to vector<4x8x1xf32>
    %147 = tpu.reciprocal %146 : vector<4x8x1xf32> -> vector<4x8x1xf32>
    %148 = vector.broadcast %147 : vector<4x8x1xf32> to vector<4x8x8xf32>
    %149 = arith.mulf %144, %148 : vector<4x8x8xf32>
    %150 = arith.truncf %149 : vector<4x8x8xf32> to vector<4x8x8xbf16>
    "tpu.trace_start"() <{level = 10 : i32, message = "hqk,hkd->hqd"}> : () -> ()
    %cst_50 = arith.constant dense<0.000000e+00> : vector<4x8x8xf32>
    %151 = tpu.matmul %150, %131, %cst_50 {dimension_numbers = #tpu.dot_dimension_numbers<[2], [1], [1], [2], [0, 0, 0, 1, 1, 2], [0], [0]>} : vector<4x8x8xbf16>, vector<4x8x8xbf16>, vector<4x8x8xf32> -> vector<4x8x8xf32>
    "tpu.trace_stop"() : () -> ()
    %152 = tpu.transpose %151, [1, 0, 2] : vector<4x8x8xf32> -> vector<8x4x8xf32>
    %153 = vector.shape_cast %152 : vector<8x4x8xf32> to vector<8x32xf32>
    %c0_51 = arith.constant 0 : index
    %c224 = arith.constant 224 : index
    %154 = vector.load %arg4[%c0_51, %c224] : memref<32x320xf32, #tpu.memory_space<vmem>>, vector<32x32xf32>
    %155 = arith.truncf %153 : vector<8x32xf32> to vector<8x32xbf16>
    %156 = arith.truncf %154 : vector<32x32xf32> to vector<32x32xbf16>
    %cst_52 = arith.constant dense<0.000000e+00> : vector<8x32xf32>
    %157 = tpu.matmul %155, %156, %cst_52 {dimension_numbers = #tpu.dot_dimension_numbers<[1], [0], [0], [1], [0, 0, 1, 1], [], []>} : vector<8x32xbf16>, vector<32x32xbf16>, vector<8x32xf32> -> vector<8x32xf32>
    %c0_53 = arith.constant 0 : index
    %c224_54 = arith.constant 224 : index
    %158 = vector.load %arg6[%c0_53, %c224_54] : memref<1x544xf32, #tpu.memory_space<vmem>>, vector<1x32xf32>
    %159 = vector.broadcast %158 : vector<1x32xf32> to vector<8x32xf32>
    %160 = arith.addf %157, %159 : vector<8x32xf32>
    %161 = arith.addf %81, %160 : vector<8x32xf32>
    %c0_55 = arith.constant 0 : index
    %c416 = arith.constant 416 : index
    %162 = vector.load %arg6[%c0_55, %c416] : memref<1x544xf32, #tpu.memory_space<vmem>>, vector<1x32xf32>
    %c0_56 = arith.constant 0 : index
    %c512 = arith.constant 512 : index
    %163 = vector.load %arg6[%c0_56, %c512] : memref<1x544xf32, #tpu.memory_space<vmem>>, vector<1x32xf32>
    %cst_57 = arith.constant dense<0.000000e+00> : vector<8xf32>
    %164 = vector.multi_reduction <add>, %161, %cst_57 [1] : vector<8x32xf32> to vector<8xf32>
    %165 = vector.shape_cast %164 : vector<8xf32> to vector<8x1xf32>
    %cst_58 = arith.constant 3.200000e+01 : f32
    %166 = vector.broadcast %cst_58 : f32 to vector<8x1xf32>
    %167 = arith.divf %165, %166 : vector<8x1xf32>
    %168 = vector.broadcast %167 : vector<8x1xf32> to vector<8x32xf32>
    %169 = arith.subf %161, %168 : vector<8x32xf32>
    %170 = arith.mulf %169, %169 : vector<8x32xf32>
    %cst_59 = arith.constant dense<0.000000e+00> : vector<8xf32>
    %171 = vector.multi_reduction <add>, %170, %cst_59 [1] : vector<8x32xf32> to vector<8xf32>
    %172 = vector.shape_cast %171 : vector<8xf32> to vector<8x1xf32>
    %cst_60 = arith.constant 0.0322580636 : f32
    %173 = vector.broadcast %cst_60 : f32 to vector<8x1xf32>
    %174 = arith.mulf %172, %173 : vector<8x1xf32>
    %175 = math.sqrt %174 : vector<8x1xf32>
    %cst_61 = arith.constant 9.99999997E-7 : f32
    %176 = vector.broadcast %cst_61 : f32 to vector<8x1xf32>
    %177 = arith.addf %175, %176 : vector<8x1xf32>
    %178 = tpu.reciprocal %177 : vector<8x1xf32> -> vector<8x1xf32>
    %179 = vector.broadcast %167 : vector<8x1xf32> to vector<8x32xf32>
    %180 = arith.subf %161, %179 : vector<8x32xf32>
    %181 = vector.broadcast %162 : vector<1x32xf32> to vector<8x32xf32>
    %182 = vector.broadcast %178 : vector<8x1xf32> to vector<8x32xf32>
    %183 = arith.mulf %181, %182 : vector<8x32xf32>
    %184 = arith.mulf %180, %183 : vector<8x32xf32>
    %185 = vector.broadcast %163 : vector<1x32xf32> to vector<8x32xf32>
    %186 = arith.addf %184, %185 : vector<8x32xf32>
    %c0_62 = arith.constant 0 : index
    %c256 = arith.constant 256 : index
    %187 = vector.load %arg4[%c0_62, %c256] : memref<32x320xf32, #tpu.memory_space<vmem>>, vector<32x64xf32>
    %188 = arith.truncf %186 : vector<8x32xf32> to vector<8x32xbf16>
    %189 = arith.truncf %187 : vector<32x64xf32> to vector<32x64xbf16>
    %cst_63 = arith.constant dense<0.000000e+00> : vector<8x64xf32>
    %190 = tpu.matmul %188, %189, %cst_63 {dimension_numbers = #tpu.dot_dimension_numbers<[1], [0], [0], [1], [0, 0, 1, 1], [], []>} : vector<8x32xbf16>, vector<32x64xbf16>, vector<8x64xf32> -> vector<8x64xf32>
    %c0_64 = arith.constant 0 : index
    %c256_65 = arith.constant 256 : index
    %191 = vector.load %arg6[%c0_64, %c256_65] : memref<1x544xf32, #tpu.memory_space<vmem>>, vector<1x64xf32>
    %192 = vector.broadcast %191 : vector<1x64xf32> to vector<8x64xf32>
    %193 = arith.addf %190, %192 : vector<8x64xf32>
    %cst_66 = arith.constant 0.000000e+00 : f32
    %194 = vector.broadcast %cst_66 : f32 to vector<8x64xf32>
    %195 = arith.maximumf %193, %194 : vector<8x64xf32>
    %c0_67 = arith.constant 0 : index
    %c0_68 = arith.constant 0 : index
    %196 = vector.load %arg5[%c0_67, %c0_68] : memref<64x32xf32, #tpu.memory_space<vmem>>, vector<64x32xf32>
    %197 = arith.truncf %195 : vector<8x64xf32> to vector<8x64xbf16>
    %198 = arith.truncf %196 : vector<64x32xf32> to vector<64x32xbf16>
    %cst_69 = arith.constant dense<0.000000e+00> : vector<8x32xf32>
    %199 = tpu.matmul %197, %198, %cst_69 {dimension_numbers = #tpu.dot_dimension_numbers<[1], [0], [0], [1], [0, 0, 1, 1], [], []>} : vector<8x64xbf16>, vector<64x32xbf16>, vector<8x32xf32> -> vector<8x32xf32>
    %200 = arith.addf %161, %199 : vector<8x32xf32>
    %c0_70 = arith.constant 0 : index
    %c320 = arith.constant 320 : index
    %201 = vector.load %arg6[%c0_70, %c320] : memref<1x544xf32, #tpu.memory_space<vmem>>, vector<1x32xf32>
    %202 = vector.broadcast %201 : vector<1x32xf32> to vector<8x32xf32>
    %203 = arith.addf %200, %202 : vector<8x32xf32>
    %c0_71 = arith.constant 0 : index
    %c0_72 = arith.constant 0 : index
    %c0_73 = arith.constant 0 : index
    %204 = vector.load %arg7[%c0_71, %c0_72, %c0_73] : memref<1x8x32xf32, #tpu.memory_space<vmem>>, vector<1x8x32xf32>
    %205 = vector.shape_cast %204 : vector<1x8x32xf32> to vector<8x32xf32>
    %206 = vector.shape_cast %203 : vector<8x32xf32> to vector<1x8x32xf32>
    tpu.vector_store %arg7[%c0_71, %c0_72, %c0_73], %206 {strides = array<i32>} : memref<1x8x32xf32, #tpu.memory_space<vmem>>, vector<1x8x32xf32>,
    return
  }
  func.func @transform_0(%arg0: i32) -> (i32, i32, i32) {
    %c0_i32 = arith.constant 0 : i32
    %c0_i32_0 = arith.constant 0 : i32
    %c0_i32_1 = arith.constant 0 : i32
    return %arg0, %c0_i32, %c0_i32_0 : i32, i32, i32
  }
  func.func @transform_1(%arg0: i32) -> (i32, i32, i32) {
    %c0_i32 = arith.constant 0 : i32
    %c0_i32_0 = arith.constant 0 : i32
    %c0_i32_1 = arith.constant 0 : i32
    return %arg0, %c0_i32, %c0_i32_0 : i32, i32, i32
  }
  func.func @transform_2(%arg0: i32) -> (i32, i32, i32) {
    %c0_i32 = arith.constant 0 : i32
    %c0_i32_0 = arith.constant 0 : i32
    %c0_i32_1 = arith.constant 0 : i32
    return %arg0, %c0_i32, %c0_i32_0 : i32, i32, i32
  }
  func.func @transform_3(%arg0: i32) -> (i32, i32) {
    %c0_i32 = arith.constant 0 : i32
    %c0_i32_0 = arith.constant 0 : i32
    %c0_i32_1 = arith.constant 0 : i32
    return %c0_i32, %c0_i32_0 : i32, i32
  }
  func.func @transform_4(%arg0: i32) -> (i32, i32) {
    %c0_i32 = arith.constant 0 : i32
    %c0_i32_0 = arith.constant 0 : i32
    %c0_i32_1 = arith.constant 0 : i32
    return %c0_i32, %c0_i32_0 : i32, i32
  }
  func.func @transform_5(%arg0: i32) -> (i32, i32) {
    %c0_i32 = arith.constant 0 : i32
    %c0_i32_0 = arith.constant 0 : i32
    %c0_i32_1 = arith.constant 0 : i32
    return %c0_i32, %c0_i32_0 : i32, i32
  }
  func.func @transform_6(%arg0: i32) -> (i32, i32, i32) {
    %c0_i32 = arith.constant 0 : i32
    %c0_i32_0 = arith.constant 0 : i32
    %c0_i32_1 = arith.constant 0 : i32
    return %arg0, %c0_i32, %c0_i32_0 : i32, i32, i32
  }
}

</mosaic_0001>

<llo_original>
// kernel: decoder_block_forward.1
$region0: #{decoder_block_forward.1}
  #allocation0 [shape = 'u32[]', space=smem, size = 0x4, offset = 0x4, fixed_abs, tag = 'smem constant byte address 0x4 - core index']
  #allocation1 [shape = 'u32[144,128]{1,0:T(1,128)}', space=vmem, size = 0x12000, scoped, tag = 'internal scratch']
  %s0 = inlined_call_operand.hbm [shape: f32[2,8,32], index: 0, kind: input, shape index: {}]
  %s1 = inlined_call_operand.hbm [shape: f32[2,8,32], index: 1, kind: input, shape index: {}]
  %s2 = inlined_call_operand.vmem [shape: f32[2,1,8], index: 2, kind: input, shape index: {}]
  %s3 = inlined_call_operand.vmem [shape: f32[32,320], index: 3, kind: input, shape index: {}]
  %s4 = inlined_call_operand.vmem [shape: f32[64,32], index: 4, kind: input, shape index: {}]
  %s5 = inlined_call_operand.vmem [shape: f32[1,544], index: 5, kind: input, shape index: {}]
  %s6 = inlined_call_operand.hbm [shape: f32[2,8,32], index: 6, kind: output, shape index: {}]
  %s7 = sld [smem:[#allocation0]]
  $region65: #{decoder_block_forward.1} parent=0
    _
  %s9 = ssub.s32 1, %s7
  %s10 = scalar_select 0, %s9, %s7
  $region1: #{decoder_block_forward.1} parent=0
    #allocation2 [shape = 'u8[8192]{0}', space=vmem, size = 0x2000, scoped, tag = 'input window, operand 0']
    #allocation3 [shape = 's32[2]{0}', space=sflag, size = 0x8, scoped, tag = 'scoped memory for decoder_block_forward.1']
    #allocation4 [shape = 's32[2]{0}', space=sflag, size = 0x8, scoped, tag = 'scoped memory for decoder_block_forward.1']
    #allocation5 [shape = 'u8[8192]{0}', space=vmem, size = 0x2000, scoped, tag = 'input window, operand 1']
    #allocation6 [shape = 's32[2]{0}', space=sflag, size = 0x8, scoped, tag = 'scoped memory for decoder_block_forward.1']
    #allocation7 [shape = 'u8[8192]{0}', space=vmem, size = 0x2000, scoped, tag = 'output window, operand 0']
    %11 = vsyncpa [#allocation3], 0
    %s12 = scalar_lea.sflag [#allocation3], 1
    %13 = vsyncpa %s12, 0
    %14 = vsyncpa [#allocation6], 0
    %s15 = scalar_lea.sflag [#allocation6], 1
    %16 = vsyncpa %s15, 0
    %17 = vsyncpa [#allocation4], 0
    %s18 = scalar_lea.sflag [#allocation4], 1
    %19 = vsyncpa %s18, 0
    loop: start=0, step=1, limit=4
    $region2: #{decoder_block_forward.1} parent=1 // loop_pre_header
      _
    $region3: #{decoder_block_forward.1} parent=1 // loop_header
      %s21 = sphi 0, %s25
      %p22 = scmp.ge.s32.totalorder %s21, 4
      %s31 = sphi 0, %s33
      %s34 = sphi 0, %s31
      %s35 = sphi 0, %s34
      %s51 = sphi 0, %s35
      %s57 = sphi 0, %s59
      %s60 = sphi 0, %s57
      %s61 = sphi 0, %s60
      %s77 = sphi 0, %s61
      %s83 = sphi 0, %s85
      %s86 = sphi 0, %s83
      %s87 = sphi 0, %s86
      %s103 = sphi 0, %s87
      %s107 = sphi 0, %s107
      %s109 = sphi 0, %s107
      %s110 = sphi 0, %s109
      %s124 = sphi 0, %s110
      %s128 = sphi 0, %s128
      %s130 = sphi 0, %s128
      %s131 = sphi 0, %s130
      %s145 = sphi 0, %s131
      %s149 = sphi 0, %s149
      %s151 = sphi 0, %s149
      %s152 = sphi 0, %s151
      %s166 = sphi 0, %s152
      %s172 = sphi 0, %s174
      %s175 = sphi 0, %s172
      %s176 = sphi 0, %s175
      %s192 = sphi 0, %s176
    $region4: #{decoder_block_forward.1} parent=1 // loop_header_branch
      %24 = sbr.rel (%p22) target = $region8
    $region5: #{decoder_block_forward.1} parent=1 // loop_body
      %s26 = ssub.s32 %s21, 1
      %s27 = ssub.s32 %s21, 2
      %s28 = sadd.s32 %s21, 1
      %s29 = ssub.s32 %s21, %s28
      %p30 = scmp.eq.s32.totalorder %s29, 0
      %s32 = sadd.s32 %s31, 1
      %s33 = scalar_select %p30, %s31, %s32
      %p36 = pneg %p30
      %p37 = scmp.eq.s32.totalorder %s21, 1
      %p38 = por %p36, %p37
      %p39 = scmp.ne.s32.totalorder %s31, %s34
      %p40 = scmp.eq.s32.totalorder %s21, 0
      %p41 = por %p39, %p40
      %p42 = scmp.ne.s32.totalorder %s31, %s34
      %p43 = scmp.eq.s32.totalorder %s26, 1
      %p44 = por %p42, %p43
      %p45 = scmp.ne.s32.totalorder %s34, %s35
      %p46 = scmp.eq.s32.totalorder %s26, 0
      %p47 = por %p45, %p46
      %p48 = scmp.ne.s32.totalorder %s34, %s35
      %p49 = scmp.eq.s32.totalorder %s27, 1
      %p50 = por %p48, %p49
      %p52 = scmp.ne.s32.totalorder %s35, %s51
      %p53 = scmp.eq.s32.totalorder %s27, 0
      %p54 = por %p52, %p53
      %s55 = ssub.s32 %s21, %s28
      %p56 = scmp.eq.s32.totalorder %s55, 0
      %s58 = sadd.s32 %s57, 1
      %s59 = scalar_select %p56, %s57, %s58
      %p62 = pneg %p56
      %p63 = scmp.eq.s32.totalorder %s21, 1
      %p64 = por %p62, %p63
      %p65 = scmp.ne.s32.totalorder %s57, %s60
      %p66 = scmp.eq.s32.totalorder %s21, 0
      %p67 = por %p65, %p66
      %p68 = scmp.ne.s32.totalorder %s57, %s60
      %p69 = scmp.eq.s32.totalorder %s26, 1
      %p70 = por %p68, %p69
      %p71 = scmp.ne.s32.totalorder %s60, %s61
      %p72 = scmp.eq.s32.totalorder %s26, 0
      %p73 = por %p71, %p72
      %p74 = scmp.ne.s32.totalorder %s60, %s61
      %p75 = scmp.eq.s32.totalorder %s27, 1
      %p76 = por %p74, %p75
      %p78 = scmp.ne.s32.totalorder %s61, %s77
      %p79 = scmp.eq.s32.totalorder %s27, 0
      %p80 = por %p78, %p79
      %s81 = ssub.s32 %s21, %s28
      %p82 = scmp.eq.s32.totalorder %s81, 0
      %s84 = sadd.s32 %s83, 1
      %s85 = scalar_select %p82, %s83, %s84
      %p88 = pneg %p82
      %p89 = scmp.eq.s32.totalorder %s21, 1
      %p90 = por %p88, %p89
      %p91 = scmp.ne.s32.totalorder %s83, %s86
      %p92 = scmp.eq.s32.totalorder %s21, 0
      %p93 = por %p91, %p92
      %p94 = scmp.ne.s32.totalorder %s83, %s86
      %p95 = scmp.eq.s32.totalorder %s26, 1
      %p96 = por %p94, %p95
      %p97 = scmp.ne.s32.totalorder %s86, %s87
      %p98 = scmp.eq.s32.totalorder %s26, 0
      %p99 = por %p97, %p98
      %p100 = scmp.ne.s32.totalorder %s86, %s87
      %p101 = scmp.eq.s32.totalorder %s27, 1
      %p102 = por %p100, %p101
      %p104 = scmp.ne.s32.totalorder %s87, %s103
      %p105 = scmp.eq.s32.totalorder %s27, 0
      %p106 = por %p104, %p105
      %s108 = sadd.s32 %s107, 1
      %p111 = scmp.eq.s32.totalorder %s21, 1
      %p112 = scmp.ne.s32.totalorder %s107, %s109
      %p113 = scmp.eq.s32.totalorder %s21, 0
      %p114 = por %p112, %p113
      %p115 = scmp.ne.s32.totalorder %s107, %s109
      %p116 = scmp.eq.s32.totalorder %s26, 1
      %p117 = por %p115, %p116
      %p118 = scmp.ne.s32.totalorder %s109, %s110
      %p119 = scmp.eq.s32.totalorder %s26, 0
      %p120 = por %p118, %p119
      %p121 = scmp.ne.s32.totalorder %s109, %s110
      %p122 = scmp.eq.s32.totalorder %s27, 1
      %p123 = por %p121, %p122
      %p125 = scmp.ne.s32.totalorder %s110, %s124
      %p126 = scmp.eq.s32.totalorder %s27, 0
      %p127 = por %p125, %p126
      %s129 = sadd.s32 %s128, 1
      %p132 = scmp.eq.s32.totalorder %s21, 1
      %p133 = scmp.ne.s32.totalorder %s128, %s130
      %p134 = scmp.eq.s32.totalorder %s21, 0
      %p135 = por %p133, %p134
      %p136 = scmp.ne.s32.totalorder %s128, %s130
      %p137 = scmp.eq.s32.totalorder %s26, 1
      %p138 = por %p136, %p137
      %p139 = scmp.ne.s32.totalorder %s130, %s131
      %p140 = scmp.eq.s32.totalorder %s26, 0
      %p141 = por %p139, %p140
      %p142 = scmp.ne.s32.totalorder %s130, %s131
      %p143 = scmp.eq.s32.totalorder %s27, 1
      %p144 = por %p142, %p143
      %p146 = scmp.ne.s32.totalorder %s131, %s145
      %p147 = scmp.eq.s32.totalorder %s27, 0
      %p148 = por %p146, %p147
      %s150 = sadd.s32 %s149, 1
      %p153 = scmp.eq.s32.totalorder %s21, 1
      %p154 = scmp.ne.s32.totalorder %s149, %s151
      %p155 = scmp.eq.s32.totalorder %s21, 0
      %p156 = por %p154, %p155
      %p157 = scmp.ne.s32.totalorder %s149, %s151
      %p158 = scmp.eq.s32.totalorder %s26, 1
      %p159 = por %p157, %p158
      %p160 = scmp.ne.s32.totalorder %s151, %s152
      %p161 = scmp.eq.s32.totalorder %s26, 0
      %p162 = por %p160, %p161
      %p163 = scmp.ne.s32.totalorder %s151, %s152
      %p164 = scmp.eq.s32.totalorder %s27, 1
      %p165 = por %p163, %p164
      %p167 = scmp.ne.s32.totalorder %s152, %s166
      %p168 = scmp.eq.s32.totalorder %s27, 0
      %p169 = por %p167, %p168
      %s170 = ssub.s32 %s21, %s28
      %p171 = scmp.eq.s32.totalorder %s170, 0
      %s173 = sadd.s32 %s172, 1
      %s174 = scalar_select %p171, %s172, %s173
      %p177 = pneg %p171
      %p178 = scmp.eq.s32.totalorder %s21, 1
      %p179 = por %p177, %p178
      %p180 = scmp.ne.s32.totalorder %s172, %s175
      %p181 = scmp.eq.s32.totalorder %s21, 0
      %p182 = por %p180, %p181
      %p183 = scmp.ne.s32.totalorder %s172, %s175
      %p184 = scmp.eq.s32.totalorder %s26, 1
      %p185 = por %p183, %p184
      %p186 = scmp.ne.s32.totalorder %s175, %s176
      %p187 = scmp.eq.s32.totalorder %s26, 0
      %p188 = por %p186, %p187
      %p189 = scmp.ne.s32.totalorder %s175, %s176
      %p190 = scmp.eq.s32.totalorder %s27, 1
      %p191 = por %p189, %p190
      %p193 = scmp.ne.s32.totalorder %s176, %s192
      %p194 = scmp.eq.s32.totalorder %s27, 0
      %p195 = por %p193, %p194
      %p196 = scmp.le.s32.totalorder 1, %s21
      %p197 = scmp.lt.s32.totalorder %s21, 3
      %p198 = pnand %p196, %p197
      %p199 = pneg %p198
      // Predicated region
      $region9: #{decoder_block_forward.1} parent=5 // pred_check
        _
      $region10: #{decoder_block_forward.1} parent=5 // pred_check_branch
        %201 = sbr.rel (%p198) target = $region12
      $region11: #{decoder_block_forward.1} parent=5 // pred_region
        %s202 = ssub.s32 %s21, 1
        // Predicated region
        $region13: #{decoder_block_forward.1} parent=11 // pred_check
          %p203 = pneg %p120
        $region14: #{decoder_block_forward.1} parent=11 // pred_check_branch
          %205 = sbr.rel (%p203) target = $region16
        $region15: #{decoder_block_forward.1} parent=11 // pred_region
          _
        $region16: #{decoder_block_forward.1} parent=11 // pred_fallthru
          _
        // Predicated region
        $region17: #{decoder_block_forward.1} parent=11 // pred_check
          %p206 = pneg %p141
        $region18: #{decoder_block_forward.1} parent=11 // pred_check_branch
          %208 = sbr.rel (%p206) target = $region20
        $region19: #{decoder_block_forward.1} parent=11 // pred_region
          _
        $region20: #{decoder_block_forward.1} parent=11 // pred_fallthru
          _
        // Predicated region
        $region21: #{decoder_block_forward.1} parent=11 // pred_check
          %p209 = pneg %p162
        $region22: #{decoder_block_forward.1} parent=11 // pred_check_branch
          %211 = sbr.rel (%p209) target = $region24
        $region23: #{decoder_block_forward.1} parent=11 // pred_region
          _
        $region24: #{decoder_block_forward.1} parent=11 // pred_fallthru
          _
      $region12: #{decoder_block_forward.1} parent=5 // pred_fallthru
        _
      %p212 = scmp.lt.s32.totalorder %s21, 2
      // Predicated region
      $region25: #{decoder_block_forward.1} parent=5 // pred_check
        %p213 = pneg %p212
      $region26: #{decoder_block_forward.1} parent=5 // pred_check_branch
        %215 = sbr.rel (%p213) target = $region28
      $region27: #{decoder_block_forward.1} parent=5 // pred_region
        // Predicated region
        $region29: #{decoder_block_forward.1} parent=27 // pred_check
          %p216 = pneg %p41
        $region30: #{decoder_block_forward.1} parent=27 // pred_check_branch
          %218 = sbr.rel (%p216) target = $region32
        $region31: #{decoder_block_forward.1} parent=27 // pred_region
          %s219 = sand.u32 %s31, 1
          %s220 = scalar_lea.sflag [#allocation3], %s219
          %s221 = sand.u32 %s31, 1
          %s222 = smul.addr %s221, 8
          %s223 = scalar_lea.vmem [#allocation2], %s222
          %s225 = ssub.s32 128, 128
          %226 = vsyncadd %s220, %s225
          %s227 = smul.addr %s21, 128
          %s228 = scalar_lea.hbm %s0, %s227
          %s230 = sshll.u32 %s223, 4
          %s231 = int_to_ptr.vmem [resolvable:$true] %s230
          %233 = dma.hbm_to_vmem [thread:$0]  %s228, 128, %s231, %s220
        $region32: #{decoder_block_forward.1} parent=27 // pred_fallthru
          _
        // Predicated region
        $region33: #{decoder_block_forward.1} parent=27 // pred_check
          %p234 = pneg %p67
        $region34: #{decoder_block_forward.1} parent=27 // pred_check_branch
          %236 = sbr.rel (%p234) target = $region36
        $region35: #{decoder_block_forward.1} parent=27 // pred_region
          %s237 = sand.u32 %s57, 1
          %s238 = scalar_lea.sflag [#allocation6], %s237
          %s239 = sand.u32 %s57, 1
          %s240 = smul.addr %s239, 8
          %s241 = scalar_lea.vmem [#allocation5], %s240
          %s243 = ssub.s32 128, 128
          %244 = vsyncadd %s238, %s243
          %s245 = smul.addr %s21, 128
          %s246 = scalar_lea.hbm %s1, %s245
          %s248 = sshll.u32 %s241, 4
          %s249 = int_to_ptr.vmem [resolvable:$true] %s248
          %251 = dma.hbm_to_vmem [thread:$0]  %s246, 128, %s249, %s238
        $region36: #{decoder_block_forward.1} parent=27 // pred_fallthru
          _
        // Predicated region
        $region37: #{decoder_block_forward.1} parent=27 // pred_check
          %p252 = pneg %p93
        $region38: #{decoder_block_forward.1} parent=27 // pred_check_branch
          %254 = sbr.rel (%p252) target = $region40
        $region39: #{decoder_block_forward.1} parent=27 // pred_region
          %p255 = scmp.lt.s32.totalorder %s21, 1
          %s256 = scalar_select %p255, %s21, 1
          %s257 = scalar_lea.vmem %s2, %s256
        $region40: #{decoder_block_forward.1} parent=27 // pred_fallthru
          _
      $region28: #{decoder_block_forward.1} parent=5 // pred_fallthru
        _
      %p258 = scmp.le.s32.totalorder 1, %s21
      %p259 = scmp.lt.s32.totalorder %s21, 3
      %p260 = pnand %p258, %p259
      %p261 = pneg %p260
      // Predicated region
      $region41: #{decoder_block_forward.1} parent=5 // pred_check
        _
      $region42: #{decoder_block_forward.1} parent=5 // pred_check_branch
        %263 = sbr.rel (%p260) target = $region44
      $region43: #{decoder_block_forward.1} parent=5 // pred_region
        %s264 = ssub.s32 %s21, 1
        %s265 = sand.u32 %s34, 1
        %s266 = scalar_lea.sflag [#allocation3], %s265
        %s267 = sand.u32 %s34, 1
        %s268 = smul.addr %s267, 8
        %s269 = scalar_lea.vmem [#allocation2], %s268
        // Predicated region
        $region45: #{decoder_block_forward.1} parent=43 // pred_check
          %p270 = pneg %p47
        $region46: #{decoder_block_forward.1} parent=43 // pred_check_branch
          %272 = sbr.rel (%p270) target = $region48
        $region47: #{decoder_block_forward.1} parent=43 // pred_region
          %273 = dma.done %s266, 128
        $region48: #{decoder_block_forward.1} parent=43 // pred_fallthru
          _
        %s274 = sand.u32 %s60, 1
        %s275 = scalar_lea.sflag [#allocation6], %s274
        %s276 = sand.u32 %s60, 1
        %s277 = smul.addr %s276, 8
        %s278 = scalar_lea.vmem [#allocation5], %s277
        // Predicated region
        $region49: #{decoder_block_forward.1} parent=43 // pred_check
          %p279 = pneg %p73
        $region50: #{decoder_block_forward.1} parent=43 // pred_check_branch
          %281 = sbr.rel (%p279) target = $region52
        $region51: #{decoder_block_forward.1} parent=43 // pred_region
          %282 = dma.done %s275, 128
        $region52: #{decoder_block_forward.1} parent=43 // pred_fallthru
          _
        %s283 = sand.u32 %s34, 1
        %s284 = scalar_lea.sflag [#allocation3], %s283
        %s285 = sand.u32 %s34, 1
        %s286 = smul.addr %s285, 8
        %s287 = scalar_lea.vmem [#allocation2], %s286
        %p288 = pneg %p47
        %p289 = pneg %p44
        %s290 = sand.u32 %s60, 1
        %s291 = scalar_lea.sflag [#allocation6], %s290
        %s292 = sand.u32 %s60, 1
        %s293 = smul.addr %s292, 8
        %s294 = scalar_lea.vmem [#allocation5], %s293
        %p295 = pneg %p73
        %p296 = pneg %p70
        %p297 = scmp.lt.s32.totalorder %s26, 1
        %s298 = scalar_select %p297, %s26, 1
        %s299 = scalar_lea.vmem %s2, %s298
        %p300 = pneg %p99
        %p301 = pneg %p96
        %p302 = pneg %p120
        %p303 = pneg %p117
        %p304 = pneg %p141
        %p305 = pneg %p138
        %p306 = pneg %p162
        %p307 = pneg %p159
        %p308 = pneg %p188
        %p309 = pneg %p185
        %s310 = sand.u32 %s175, 1
        %s311 = scalar_lea.sflag [#allocation4], %s310
        %s312 = sand.u32 %s175, 1
        %s313 = smul.addr %s312, 8
        %s314 = scalar_lea.vmem [#allocation7], %s313
        %p315 = scmp.lt.s32.totalorder %s26, 1
        %s316 = scalar_select %p315, %s26, 1
        %s317 = scalar_lea.vmem %s2, %s316
        %v319 = vld [vmem:[%s269] sm:$0xff]
        %v320 = vld [vmem:[%s278] sm:$0xff]
        %v321 = vld [vmem:[%s317] sm:$0x1]
        %vm322 = vcmp.gt.f32.partialorder %v321, 0.5
        %v323 = vld [vmem:[%s5 + $0x2] sm:$0x1]
        %v324 = vld [vmem:[%s5 + $0x3] sm:$0x1]
        %vm325 = vcmask 261120
        %v326 = vsel %vm325, %v319, 0.0
        %327 = vadd.xlane.f32.xlu0 %v326
        %v328 = vpop.xlane.xlu0 %327
        %v329 = vrcp.pop 32.0
        %v330 = vmul.f32 %v328, %v329
        %v331 = vsub.f32 %v319, %v330
        %v332 = vmul.f32 %v331, %v331
        %v333 = vsel %vm325, %v332, 0.0
        %334 = vadd.xlane.f32.xlu0 %v333
        %v335 = vpop.xlane.xlu0 %334
        %v336 = vmul.f32 %v335, 0.032258064
        %v337 = vrsqrt.pop %v336
        %v338 = vmul.f32 %v336, %v337
        %vm339 = vcmp.eq.f32.partialorder %v336, inf
        %v340 = vsel %vm339, %v336, %v338
        %vm341 = vcmp.eq.f32.partialorder %v336, 0.0
        %v342 = vand.u32 %v336, 2147483648
        %v343 = vsel %vm341, %v342, %v340
        %v344 = vadd.f32 %v343, 1e-06
        %v345 = vrcp.pop %v344
        %v347 = vlaneseq
        %v348 = vshrl.u32 %v347, 7
        %v349 = vsub.s32 0, %v348
        %v350 = vrot.slane %v323, %v349
        %v352 = vmul.f32 %v350, %v345
        %354 = vrot.lane.b32.xlu0 %v352, 32
        %v355 = vpop.permute.xlu0 %354
        %v357 = vmul.f32 %v331, %v355
        %v359 = vlaneseq
        %v360 = vshrl.u32 %v359, 7
        %v361 = vsub.s32 0, %v360
        %v362 = vrot.slane %v324, %v361
        %363 = vrot.lane.b32.xlu0 %v362, 64
        %v364 = vpop.permute.xlu0 %363
        %v366 = vadd.f32 %v357, %v364
        %v367 = vld [vmem:[%s3] sm:$0xff]
        %v368 = vld [vmem:[%s3 + $0x18] sm:$0xff]
        %v369 = vld [vmem:[%s3 + $0x30] sm:$0xff]
        %v370 = vld [vmem:[%s3 + $0x48] sm:$0xff]
        %v371 = vpack.c.bf16 %v366, %v366
        %v372 = vpack.c.bf16 %v368, %v367
        %v373 = vpack.c.bf16 %v370, %v369
        %v374 = vld [vmem:[%s5] sm:$0x1]
        %v376 = vlaneseq
        %v377 = vshrl.u32 %v376, 7
        %v378 = vsub.s32 0, %v377
        %v379 = vrot.slane %v374, %v378
        %v382 = vsel %vm325, %v371, 0
        %384 = vmatprep.subr.bf16.mxu0 0
        %385 = vmatpush1.bf16.msra.mxu0 0
        %386 = vmatprep.subr.bf16.mxu0 0
        %387 = vmatpush1.bf16.msra.mxu0 0
        %388 = vmatprep.subr.bf16.mxu0 0
        %389 = vmatpush1.bf16.msra.mxu0 0
        %390 = vmatprep.subr.bf16.mxu0 0
        %391 = vmatpush1.bf16.msra.mxu0 0
        %392 = vmatprep.subr.bf16.mxu0 0
        %393 = vmatpush1.bf16.msra.mxu0 0
        %394 = vmatprep.subr.bf16.mxu0 0
        %395 = vmatpush1.bf16.msra.mxu0 0
        %396 = vmatprep.subr.bf16.mxu0 0
        %397 = vmatpush1.bf16.msra.mxu0 %v373
        %398 = vmatprep.subr.bf16.mxu0 0
        %399 = vmatpush1.bf16.msra.mxu0 %v372
        %400 = vmatprep.subr.bf16.mxu0 0
        %401 = vmatpush2.bf16.msra.mxu0 0
        %402 = vmatprep.subr.bf16.mxu0 0
        %403 = vmatpush2.bf16.msra.mxu0 0
        %404 = vmatprep.subr.bf16.mxu0 0
        %405 = vmatpush2.bf16.msra.mxu0 0
        %406 = vmatprep.subr.bf16.mxu0 0
        %407 = vmatpush2.bf16.msra.mxu0 0
        %408 = vmatprep.subr.bf16.mxu0 0
        %409 = vmatpush2.bf16.msra.mxu0 0
        %410 = vmatprep.subr.bf16.mxu0 0
        %411 = vmatpush2.bf16.msra.mxu0 0
        %412 = vmatprep.subr.bf16.mxu0 0
        %413 = vmatpush2.bf16.msra.mxu0 0
        %414 = vmatprep.subr.bf16.mxu0 0
        %415 = vmatpush2.bf16.msra.mxu0 0
        %416 = vmatprep.mubr.bf16.mxu0 0
        %417 = vmatmul.mubr.bf16.gmra.mxu0 %v382
        %v418 = vpop.f32.mrf.mxu0
        %v419 = vadd.f32 %v379, %v418
        %v420 = vpop.f32.mrf.mxu0
        %v421 = vpop.f32.mrf.mxu0
        %v422 = vpop.f32.mrf.mxu0
        %423 = vdwg.mxu0
        %425 = vrot.lane.b32.xlu0 %v419, 120
        %v426 = vpop.permute.xlu0 %425
        %428 = vrot.lane.b32.xlu0 %v419, 112
        %v429 = vpop.permute.xlu0 %428
        %431 = vrot.lane.b32.xlu0 %v419, 104
        %v432 = vpop.permute.xlu0 %431
        %v434 = vcombine.low %v419, %v429
        %v435 = vcombine.high %v419, %v429
        %v437 = vunpack.c.l.s4 1983009808
        %v438 = vunpack.c.0.s8 %v437
        %v439 = vlaneseq
        %v440 = vshrl.u32 %v439, 7
        %v441 = vsub.s32 %v438, %v440
        %v442 = vrot.slane %v434, %v441
        %v444 = vunpack.c.l.s4 1983009808
        %v445 = vunpack.c.0.s8 %v444
        %v446 = vlaneseq
        %v447 = vshrl.u32 %v446, 7
        %v448 = vsub.s32 %v445, %v447
        %v449 = vrot.slane %v435, %v448
        %v450 = vcombine.low %v426, %v432
        %v451 = vcombine.high %v426, %v432
        %v453 = vunpack.c.l.s4 1983009808
        %v454 = vunpack.c.0.s8 %v453
        %v455 = vlaneseq
        %v456 = vshrl.u32 %v455, 7
        %v457 = vsub.s32 %v454, %v456
        %v458 = vrot.slane %v450, %v457
        %v460 = vunpack.c.l.s4 1983009808
        %v461 = vunpack.c.0.s8 %v460
        %v462 = vlaneseq
        %v463 = vshrl.u32 %v462, 7
        %v464 = vsub.s32 %v461, %v463
        %v465 = vrot.slane %v451, %v464
        %v466 = vcombine.low %v442, %v458
        %v467 = vcombine.high %v442, %v458
        %v469 = vunpack.c.l.s4 1934713408
        %v470 = vunpack.c.0.s8 %v469
        %v471 = vlaneseq
        %v472 = vshrl.u32 %v471, 7
        %v473 = vsub.s32 %v470, %v472
        %v474 = vrot.slane %v466, %v473
        %v476 = vunpack.c.l.s4 1934713408
        %v477 = vunpack.c.0.s8 %v476
        %v478 = vlaneseq
        %v479 = vshrl.u32 %v478, 7
        %v480 = vsub.s32 %v477, %v479
        %v481 = vrot.slane %v467, %v480
        %v482 = vcombine.low %v449, %v465
        %v483 = vcombine.high %v449, %v465
        %v485 = vunpack.c.l.s4 1934713408
        %v486 = vunpack.c.0.s8 %v485
        %v487 = vlaneseq
        %v488 = vshrl.u32 %v487, 7
        %v489 = vsub.s32 %v486, %v488
        %v490 = vrot.slane %v482, %v489
        %v492 = vunpack.c.l.s4 1934713408
        %v493 = vunpack.c.0.s8 %v492
        %v494 = vlaneseq
        %v495 = vshrl.u32 %v494, 7
        %v496 = vsub.s32 %v493, %v495
        %v497 = vrot.slane %v483, %v496
        %v498 = vcombine.high %v474, 0.0
        %v499 = vcombine.high %v481, 0.0
        %v500 = vcombine.high %v490, 0.0
        %v501 = vcombine.high %v497, 0.0
        %v502 = vcombine.low %v474, %v481
        %v504 = vunpack.c.l.s4 1983009808
        %v505 = vunpack.c.0.s8 %v504
        %v506 = vlaneseq
        %v507 = vshrl.u32 %v506, 7
        %v508 = vsub.s32 %v505, %v507
        %v509 = vrot.slane %v502, %v508
        %v510 = vcombine.low %v498, %v499
        %v512 = vunpack.c.l.s4 1983009808
        %v513 = vunpack.c.0.s8 %v512
        %v514 = vlaneseq
        %v515 = vshrl.u32 %v514, 7
        %v516 = vsub.s32 %v513, %v515
        %v517 = vrot.slane %v510, %v516
        %v518 = vcombine.low %v490, %v497
        %v520 = vunpack.c.l.s4 1983009808
        %v521 = vunpack.c.0.s8 %v520
        %v522 = vlaneseq
        %v523 = vshrl.u32 %v522, 7
        %v524 = vsub.s32 %v521, %v523
        %v525 = vrot.slane %v518, %v524
        %v526 = vcombine.low %v500, %v501
        %v528 = vunpack.c.l.s4 1983009808
        %v529 = vunpack.c.0.s8 %v528
        %v530 = vlaneseq
        %v531 = vshrl.u32 %v530, 7
        %v532 = vsub.s32 %v529, %v531
        %v533 = vrot.slane %v526, %v532
        %v534 = vcombine.low %v509, %v517
        %v535 = vcombine.high %v509, %v517
        %v537 = vunpack.c.l.s4 1934713408
        %v538 = vunpack.c.0.s8 %v537
        %v539 = vlaneseq
        %v540 = vshrl.u32 %v539, 7
        %v541 = vsub.s32 %v538, %v540
        %v542 = vrot.slane %v534, %v541
        %v544 = vunpack.c.l.s4 1934713408
        %v545 = vunpack.c.0.s8 %v544
        %v546 = vlaneseq
        %v547 = vshrl.u32 %v546, 7
        %v548 = vsub.s32 %v545, %v547
        %v549 = vrot.slane %v535, %v548
        %v550 = vcombine.low %v525, %v533
        %v551 = vcombine.high %v525, %v533
        %v553 = vunpack.c.l.s4 1934713408
        %v554 = vunpack.c.0.s8 %v553
        %v555 = vlaneseq
        %v556 = vshrl.u32 %v555, 7
        %v557 = vsub.s32 %v554, %v556
        %v558 = vrot.slane %v550, %v557
        %v560 = vunpack.c.l.s4 1934713408
        %v561 = vunpack.c.0.s8 %v560
        %v562 = vlaneseq
        %v563 = vshrl.u32 %v562, 7
        %v564 = vsub.s32 %v561, %v563
        %v565 = vrot.slane %v551, %v564
        %v566 = vcombine.low %v542, %v558
        %v567 = vcombine.high %v542, %v558
        %v568 = vcombine.low %v549, %v565
        %v569 = vcombine.high %v549, %v565
        %v570 = vpack.c.bf16 %v566, %v566
        %v571 = vpack.c.bf16 %v567, %v567
        %v572 = vpack.c.bf16 %v568, %v568
        %v573 = vpack.c.bf16 %v569, %v569
        %574 = vrot.lane.b32.xlu0 %v419, 96
        %v575 = vpop.permute.xlu0 %574
        %576 = vrot.lane.b32.xlu0 %v426, 96
        %v577 = vpop.permute.xlu0 %576
        %578 = vrot.lane.b32.xlu0 %v429, 96
        %v579 = vpop.permute.xlu0 %578
        %580 = vrot.lane.b32.xlu0 %v432, 96
        %v581 = vpop.permute.xlu0 %580
        %v586 = vcombine.low %v575, %v579
        %v587 = vcombine.high %v575, %v579
        %v589 = vunpack.c.l.s4 1983009808
        %v590 = vunpack.c.0.s8 %v589
        %v591 = vlaneseq
        %v592 = vshrl.u32 %v591, 7
        %v593 = vsub.s32 %v590, %v592
        %v594 = vrot.slane %v586, %v593
        %v596 = vunpack.c.l.s4 1983009808
        %v597 = vunpack.c.0.s8 %v596
        %v598 = vlaneseq
        %v599 = vshrl.u32 %v598, 7
        %v600 = vsub.s32 %v597, %v599
        %v601 = vrot.slane %v587, %v600
        %v602 = vcombine.low %v577, %v581
        %v603 = vcombine.high %v577, %v581
        %v605 = vunpack.c.l.s4 1983009808
        %v606 = vunpack.c.0.s8 %v605
        %v607 = vlaneseq
        %v608 = vshrl.u32 %v607, 7
        %v609 = vsub.s32 %v606, %v608
        %v610 = vrot.slane %v602, %v609
        %v612 = vunpack.c.l.s4 1983009808
        %v613 = vunpack.c.0.s8 %v612
        %v614 = vlaneseq
        %v615 = vshrl.u32 %v614, 7
        %v616 = vsub.s32 %v613, %v615
        %v617 = vrot.slane %v603, %v616
        %v618 = vcombine.low %v594, %v610
        %v619 = vcombine.high %v594, %v610
        %v621 = vunpack.c.l.s4 1934713408
        %v622 = vunpack.c.0.s8 %v621
        %v623 = vlaneseq
        %v624 = vshrl.u32 %v623, 7
        %v625 = vsub.s32 %v622, %v624
        %v626 = vrot.slane %v618, %v625
        %v628 = vunpack.c.l.s4 1934713408
        %v629 = vunpack.c.0.s8 %v628
        %v630 = vlaneseq
        %v631 = vshrl.u32 %v630, 7
        %v632 = vsub.s32 %v629, %v631
        %v633 = vrot.slane %v619, %v632
        %v634 = vcombine.low %v601, %v617
        %v635 = vcombine.high %v601, %v617
        %v637 = vunpack.c.l.s4 1934713408
        %v638 = vunpack.c.0.s8 %v637
        %v639 = vlaneseq
        %v640 = vshrl.u32 %v639, 7
        %v641 = vsub.s32 %v638, %v640
        %v642 = vrot.slane %v634, %v641
        %v644 = vunpack.c.l.s4 1934713408
        %v645 = vunpack.c.0.s8 %v644
        %v646 = vlaneseq
        %v647 = vshrl.u32 %v646, 7
        %v648 = vsub.s32 %v645, %v647
        %v649 = vrot.slane %v635, %v648
        %v650 = vcombine.high %v626, 0.0
        %v651 = vcombine.high %v633, 0.0
        %v652 = vcombine.high %v642, 0.0
        %v653 = vcombine.high %v649, 0.0
        %v654 = vcombine.low %v626, %v633
        %v656 = vunpack.c.l.s4 1983009808
        %v657 = vunpack.c.0.s8 %v656
        %v658 = vlaneseq
        %v659 = vshrl.u32 %v658, 7
        %v660 = vsub.s32 %v657, %v659
        %v661 = vrot.slane %v654, %v660
        %v662 = vcombine.low %v650, %v651
        %v664 = vunpack.c.l.s4 1983009808
        %v665 = vunpack.c.0.s8 %v664
        %v666 = vlaneseq
        %v667 = vshrl.u32 %v666, 7
        %v668 = vsub.s32 %v665, %v667
        %v669 = vrot.slane %v662, %v668
        %v670 = vcombine.low %v642, %v649
        %v672 = vunpack.c.l.s4 1983009808
        %v673 = vunpack.c.0.s8 %v672
        %v674 = vlaneseq
        %v675 = vshrl.u32 %v674, 7
        %v676 = vsub.s32 %v673, %v675
        %v677 = vrot.slane %v670, %v676
        %v678 = vcombine.low %v652, %v653
        %v680 = vunpack.c.l.s4 1983009808
        %v681 = vunpack.c.0.s8 %v680
        %v682 = vlaneseq
        %v683 = vshrl.u32 %v682, 7
        %v684 = vsub.s32 %v681, %v683
        %v685 = vrot.slane %v678, %v684
        %v686 = vcombine.low %v661, %v669
        %v687 = vcombine.high %v661, %v669
        %v689 = vunpack.c.l.s4 1934713408
        %v690 = vunpack.c.0.s8 %v689
        %v691 = vlaneseq
        %v692 = vshrl.u32 %v691, 7
        %v693 = vsub.s32 %v690, %v692
        %v694 = vrot.slane %v686, %v693
        %v696 = vunpack.c.l.s4 1934713408
        %v697 = vunpack.c.0.s8 %v696
        %v698 = vlaneseq
        %v699 = vshrl.u32 %v698, 7
        %v700 = vsub.s32 %v697, %v699
        %v701 = vrot.slane %v687, %v700
        %v702 = vcombine.low %v677, %v685
        %v703 = vcombine.high %v677, %v685
        %v705 = vunpack.c.l.s4 1934713408
        %v706 = vunpack.c.0.s8 %v705
        %v707 = vlaneseq
        %v708 = vshrl.u32 %v707, 7
        %v709 = vsub.s32 %v706, %v708
        %v710 = vrot.slane %v702, %v709
        %v712 = vunpack.c.l.s4 1934713408
        %v713 = vunpack.c.0.s8 %v712
        %v714 = vlaneseq
        %v715 = vshrl.u32 %v714, 7
        %v716 = vsub.s32 %v713, %v715
        %v717 = vrot.slane %v703, %v716
        %v718 = vcombine.low %v694, %v710
        %v719 = vcombine.high %v694, %v710
        %v720 = vcombine.low %v701, %v717
        %v721 = vcombine.high %v701, %v717
        %v722 = vpack.c.bf16 %v718, %v718
        %v723 = vpack.c.bf16 %v719, %v719
        %v724 = vpack.c.bf16 %v720, %v720
        %v725 = vpack.c.bf16 %v721, %v721
        %726 = vrot.lane.b32.xlu0 %v419, 64
        %v727 = vpop.permute.xlu0 %726
        %728 = vrot.lane.b32.xlu0 %v426, 64
        %v729 = vpop.permute.xlu0 %728
        %730 = vrot.lane.b32.xlu0 %v429, 64
        %v731 = vpop.permute.xlu0 %730
        %732 = vrot.lane.b32.xlu0 %v432, 64
        %v733 = vpop.permute.xlu0 %732
        %v738 = vcombine.low %v727, %v731
        %v739 = vcombine.high %v727, %v731
        %v741 = vunpack.c.l.s4 1983009808
        %v742 = vunpack.c.0.s8 %v741
        %v743 = vlaneseq
        %v744 = vshrl.u32 %v743, 7
        %v745 = vsub.s32 %v742, %v744
        %v746 = vrot.slane %v738, %v745
        %v748 = vunpack.c.l.s4 1983009808
        %v749 = vunpack.c.0.s8 %v748
        %v750 = vlaneseq
        %v751 = vshrl.u32 %v750, 7
        %v752 = vsub.s32 %v749, %v751
        %v753 = vrot.slane %v739, %v752
        %v754 = vcombine.low %v729, %v733
        %v755 = vcombine.high %v729, %v733
        %v757 = vunpack.c.l.s4 1983009808
        %v758 = vunpack.c.0.s8 %v757
        %v759 = vlaneseq
        %v760 = vshrl.u32 %v759, 7
        %v761 = vsub.s32 %v758, %v760
        %v762 = vrot.slane %v754, %v761
        %v764 = vunpack.c.l.s4 1983009808
        %v765 = vunpack.c.0.s8 %v764
        %v766 = vlaneseq
        %v767 = vshrl.u32 %v766, 7
        %v768 = vsub.s32 %v765, %v767
        %v769 = vrot.slane %v755, %v768
        %v770 = vcombine.low %v746, %v762
        %v771 = vcombine.high %v746, %v762
        %v773 = vunpack.c.l.s4 1934713408
        %v774 = vunpack.c.0.s8 %v773
        %v775 = vlaneseq
        %v776 = vshrl.u32 %v775, 7
        %v777 = vsub.s32 %v774, %v776
        %v778 = vrot.slane %v770, %v777
        %v780 = vunpack.c.l.s4 1934713408
        %v781 = vunpack.c.0.s8 %v780
        %v782 = vlaneseq
        %v783 = vshrl.u32 %v782, 7
        %v784 = vsub.s32 %v781, %v783
        %v785 = vrot.slane %v771, %v784
        %v786 = vcombine.low %v753, %v769
        %v787 = vcombine.high %v753, %v769
        %v789 = vunpack.c.l.s4 1934713408
        %v790 = vunpack.c.0.s8 %v789
        %v791 = vlaneseq
        %v792 = vshrl.u32 %v791, 7
        %v793 = vsub.s32 %v790, %v792
        %v794 = vrot.slane %v786, %v793
        %v796 = vunpack.c.l.s4 1934713408
        %v797 = vunpack.c.0.s8 %v796
        %v798 = vlaneseq
        %v799 = vshrl.u32 %v798, 7
        %v800 = vsub.s32 %v797, %v799
        %v801 = vrot.slane %v787, %v800
        %v802 = vcombine.high %v778, 0.0
        %v803 = vcombine.high %v785, 0.0
        %v804 = vcombine.high %v794, 0.0
        %v805 = vcombine.high %v801, 0.0
        %v806 = vcombine.low %v778, %v785
        %v808 = vunpack.c.l.s4 1983009808
        %v809 = vunpack.c.0.s8 %v808
        %v810 = vlaneseq
        %v811 = vshrl.u32 %v810, 7
        %v812 = vsub.s32 %v809, %v811
        %v813 = vrot.slane %v806, %v812
        %v814 = vcombine.low %v802, %v803
        %v816 = vunpack.c.l.s4 1983009808
        %v817 = vunpack.c.0.s8 %v816
        %v818 = vlaneseq
        %v819 = vshrl.u32 %v818, 7
        %v820 = vsub.s32 %v817, %v819
        %v821 = vrot.slane %v814, %v820
        %v822 = vcombine.low %v794, %v801
        %v824 = vunpack.c.l.s4 1983009808
        %v825 = vunpack.c.0.s8 %v824
        %v826 = vlaneseq
        %v827 = vshrl.u32 %v826, 7
        %v828 = vsub.s32 %v825, %v827
        %v829 = vrot.slane %v822, %v828
        %v830 = vcombine.low %v804, %v805
        %v832 = vunpack.c.l.s4 1983009808
        %v833 = vunpack.c.0.s8 %v832
        %v834 = vlaneseq
        %v835 = vshrl.u32 %v834, 7
        %v836 = vsub.s32 %v833, %v835
        %v837 = vrot.slane %v830, %v836
        %v838 = vcombine.low %v813, %v821
        %v839 = vcombine.high %v813, %v821
        %v841 = vunpack.c.l.s4 1934713408
        %v842 = vunpack.c.0.s8 %v841
        %v843 = vlaneseq
        %v844 = vshrl.u32 %v843, 7
        %v845 = vsub.s32 %v842, %v844
        %v846 = vrot.slane %v838, %v845
        %v848 = vunpack.c.l.s4 1934713408
        %v849 = vunpack.c.0.s8 %v848
        %v850 = vlaneseq
        %v851 = vshrl.u32 %v850, 7
        %v852 = vsub.s32 %v849, %v851
        %v853 = vrot.slane %v839, %v852
        %v854 = vcombine.low %v829, %v837
        %v855 = vcombine.high %v829, %v837
        %v857 = vunpack.c.l.s4 1934713408
        %v858 = vunpack.c.0.s8 %v857
        %v859 = vlaneseq
        %v860 = vshrl.u32 %v859, 7
        %v861 = vsub.s32 %v858, %v860
        %v862 = vrot.slane %v854, %v861
        %v864 = vunpack.c.l.s4 1934713408
        %v865 = vunpack.c.0.s8 %v864
        %v866 = vlaneseq
        %v867 = vshrl.u32 %v866, 7
        %v868 = vsub.s32 %v865, %v867
        %v869 = vrot.slane %v855, %v868
        %v870 = vcombine.low %v846, %v862
        %v871 = vcombine.high %v846, %v862
        %v872 = vcombine.low %v853, %v869
        %v873 = vcombine.high %v853, %v869
        %v874 = vpack.c.bf16 %v870, %v870
        %v875 = vpack.c.bf16 %v871, %v871
        %v876 = vpack.c.bf16 %v872, %v872
        %v877 = vpack.c.bf16 %v873, %v873
        %vm878 = vcmask 64512
        %v880 = vsel %vm878, %v570, 0
        %v883 = vsel %vm878, %v722, 0
        %885 = vmatprep.subr.bf16.mxu0 0
        %886 = vmatpush1.bf16.xpose.msra.mxu0 0
        %887 = vmatprep.subr.bf16.mxu0 0
        %888 = vmatpush1.bf16.xpose.msra.mxu0 0
        %889 = vmatprep.subr.bf16.mxu0 0
        %890 = vmatpush1.bf16.xpose.msra.mxu0 0
        %891 = vmatprep.subr.bf16.mxu0 0
        %892 = vmatpush1.bf16.xpose.msra.mxu0 0
        %893 = vmatprep.subr.bf16.mxu0 0
        %894 = vmatpush1.bf16.xpose.msra.mxu0 0
        %895 = vmatprep.subr.bf16.mxu0 0
        %896 = vmatpush1.bf16.xpose.msra.mxu0 0
        %897 = vmatprep.subr.bf16.mxu0 0
        %898 = vmatpush1.bf16.xpose.msra.mxu0 0
        %899 = vmatprep.subr.bf16.mxu0 0
        %900 = vmatpush1.bf16.xpose.msra.mxu0 %v883
        %901 = vmatprep.subr.bf16.mxu0 0
        %902 = vmatpush2.bf16.xpose.msra.mxu0 0
        %903 = vmatprep.subr.bf16.mxu0 0
        %904 = vmatpush2.bf16.xpose.msra.mxu0 0
        %905 = vmatprep.subr.bf16.mxu0 0
        %906 = vmatpush2.bf16.xpose.msra.mxu0 0
        %907 = vmatprep.subr.bf16.mxu0 0
        %908 = vmatpush2.bf16.xpose.msra.mxu0 0
        %909 = vmatprep.subr.bf16.mxu0 0
        %910 = vmatpush2.bf16.xpose.msra.mxu0 0
        %911 = vmatprep.subr.bf16.mxu0 0
        %912 = vmatpush2.bf16.xpose.msra.mxu0 0
        %913 = vmatprep.subr.bf16.mxu0 0
        %914 = vmatpush2.bf16.xpose.msra.mxu0 0
        %915 = vmatprep.subr.bf16.mxu0 0
        %916 = vmatpush2.bf16.xpose.msra.mxu0 0
        %917 = vmatprep.mubr.bf16.mxu0 0
        %918 = vmatmul.mubr.bf16.gmra.mxu0 %v880
        %v919 = vpop.f32.mrf.mxu0
        %v920 = vadd.f32 0.0, %v919
        %v921 = vpop.f32.mrf.mxu0
        %v922 = vpop.f32.mrf.mxu0
        %v923 = vpop.f32.mrf.mxu0
        %924 = vdwg.mxu0
        %v926 = vsel %vm878, %v571, 0
        %v929 = vsel %vm878, %v723, 0
        %931 = vmatprep.subr.bf16.mxu0 0
        %932 = vmatpush1.bf16.xpose.msra.mxu0 0
        %933 = vmatprep.subr.bf16.mxu0 0
        %934 = vmatpush1.bf16.xpose.msra.mxu0 0
        %935 = vmatprep.subr.bf16.mxu0 0
        %936 = vmatpush1.bf16.xpose.msra.mxu0 0
        %937 = vmatprep.subr.bf16.mxu0 0
        %938 = vmatpush1.bf16.xpose.msra.mxu0 0
        %939 = vmatprep.subr.bf16.mxu0 0
        %940 = vmatpush1.bf16.xpose.msra.mxu0 0
        %941 = vmatprep.subr.bf16.mxu0 0
        %942 = vmatpush1.bf16.xpose.msra.mxu0 0
        %943 = vmatprep.subr.bf16.mxu0 0
        %944 = vmatpush1.bf16.xpose.msra.mxu0 0
        %945 = vmatprep.subr.bf16.mxu0 0
        %946 = vmatpush1.bf16.xpose.msra.mxu0 %v929
        %947 = vmatprep.subr.bf16.mxu0 0
        %948 = vmatpush2.bf16.xpose.msra.mxu0 0
        %949 = vmatprep.subr.bf16.mxu0 0
        %950 = vmatpush2.bf16.xpose.msra.mxu0 0
        %951 = vmatprep.subr.bf16.mxu0 0
        %952 = vmatpush2.bf16.xpose.msra.mxu0 0
        %953 = vmatprep.subr.bf16.mxu0 0
        %954 = vmatpush2.bf16.xpose.msra.mxu0 0
        %955 = vmatprep.subr.bf16.mxu0 0
        %956 = vmatpush2.bf16.xpose.msra.mxu0 0
        %957 = vmatprep.subr.bf16.mxu0 0
        %958 = vmatpush2.bf16.xpose.msra.mxu0 0
        %959 = vmatprep.subr.bf16.mxu0 0
        %960 = vmatpush2.bf16.xpose.msra.mxu0 0
        %961 = vmatprep.subr.bf16.mxu0 0
        %962 = vmatpush2.bf16.xpose.msra.mxu0 0
        %963 = vmatprep.mubr.bf16.mxu0 0
        %964 = vmatmul.mubr.bf16.gmra.mxu0 %v926
        %v965 = vpop.f32.mrf.mxu0
        %v966 = vadd.f32 0.0, %v965
        %v967 = vpop.f32.mrf.mxu0
        %v968 = vpop.f32.mrf.mxu0
        %v969 = vpop.f32.mrf.mxu0
        %970 = vdwg.mxu0
        %v972 = vsel %vm878, %v572, 0
        %v975 = vsel %vm878, %v724, 0
        %977 = vmatprep.subr.bf16.mxu0 0
        %978 = vmatpush1.bf16.xpose.msra.mxu0 0
        %979 = vmatprep.subr.bf16.mxu0 0
        %980 = vmatpush1.bf16.xpose.msra.mxu0 0
        %981 = vmatprep.subr.bf16.mxu0 0
        %982 = vmatpush1.bf16.xpose.msra.mxu0 0
        %983 = vmatprep.subr.bf16.mxu0 0
        %984 = vmatpush1.bf16.xpose.msra.mxu0 0
        %985 = vmatprep.subr.bf16.mxu0 0
        %986 = vmatpush1.bf16.xpose.msra.mxu0 0
        %987 = vmatprep.subr.bf16.mxu0 0
        %988 = vmatpush1.bf16.xpose.msra.mxu0 0
        %989 = vmatprep.subr.bf16.mxu0 0
        %990 = vmatpush1.bf16.xpose.msra.mxu0 0
        %991 = vmatprep.subr.bf16.mxu0 0
        %992 = vmatpush1.bf16.xpose.msra.mxu0 %v975
        %993 = vmatprep.subr.bf16.mxu0 0
        %994 = vmatpush2.bf16.xpose.msra.mxu0 0
        %995 = vmatprep.subr.bf16.mxu0 0
        %996 = vmatpush2.bf16.xpose.msra.mxu0 0
        %997 = vmatprep.subr.bf16.mxu0 0
        %998 = vmatpush2.bf16.xpose.msra.mxu0 0
        %999 = vmatprep.subr.bf16.mxu0 0
        %1000 = vmatpush2.bf16.xpose.msra.mxu0 0
        %1001 = vmatprep.subr.bf16.mxu0 0
        %1002 = vmatpush2.bf16.xpose.msra.mxu0 0
        %1003 = vmatprep.subr.bf16.mxu0 0
        %1004 = vmatpush2.bf16.xpose.msra.mxu0 0
        %1005 = vmatprep.subr.bf16.mxu0 0
        %1006 = vmatpush2.bf16.xpose.msra.mxu0 0
        %1007 = vmatprep.subr.bf16.mxu0 0
        %1008 = vmatpush2.bf16.xpose.msra.mxu0 0
        %1009 = vmatprep.mubr.bf16.mxu0 0
        %1010 = vmatmul.mubr.bf16.gmra.mxu0 %v972
        %v1011 = vpop.f32.mrf.mxu0
        %v1012 = vadd.f32 0.0, %v1011
        %v1013 = vpop.f32.mrf.mxu0
        %v1014 = vpop.f32.mrf.mxu0
        %v1015 = vpop.f32.mrf.mxu0
        %1016 = vdwg.mxu0
        %v1018 = vsel %vm878, %v573, 0
        %v1021 = vsel %vm878, %v725, 0
        %1023 = vmatprep.subr.bf16.mxu0 0
        %1024 = vmatpush1.bf16.xpose.msra.mxu0 0
        %1025 = vmatprep.subr.bf16.mxu0 0
        %1026 = vmatpush1.bf16.xpose.msra.mxu0 0
        %1027 = vmatprep.subr.bf16.mxu0 0
        %1028 = vmatpush1.bf16.xpose.msra.mxu0 0
        %1029 = vmatprep.subr.bf16.mxu0 0
        %1030 = vmatpush1.bf16.xpose.msra.mxu0 0
        %1031 = vmatprep.subr.bf16.mxu0 0
        %1032 = vmatpush1.bf16.xpose.msra.mxu0 0
        %1033 = vmatprep.subr.bf16.mxu0 0
        %1034 = vmatpush1.bf16.xpose.msra.mxu0 0
        %1035 = vmatprep.subr.bf16.mxu0 0
        %1036 = vmatpush1.bf16.xpose.msra.mxu0 0
        %1037 = vmatprep.subr.bf16.mxu0 0
        %1038 = vmatpush1.bf16.xpose.msra.mxu0 %v1021
        %1039 = vmatprep.subr.bf16.mxu0 0
        %1040 = vmatpush2.bf16.xpose.msra.mxu0 0
        %1041 = vmatprep.subr.bf16.mxu0 0
        %1042 = vmatpush2.bf16.xpose.msra.mxu0 0
        %1043 = vmatprep.subr.bf16.mxu0 0
        %1044 = vmatpush2.bf16.xpose.msra.mxu0 0
        %1045 = vmatprep.subr.bf16.mxu0 0
        %1046 = vmatpush2.bf16.xpose.msra.mxu0 0
        %1047 = vmatprep.subr.bf16.mxu0 0
        %1048 = vmatpush2.bf16.xpose.msra.mxu0 0
        %1049 = vmatprep.subr.bf16.mxu0 0
        %1050 = vmatpush2.bf16.xpose.msra.mxu0 0
        %1051 = vmatprep.subr.bf16.mxu0 0
        %1052 = vmatpush2.bf16.xpose.msra.mxu0 0
        %1053 = vmatprep.subr.bf16.mxu0 0
        %1054 = vmatpush2.bf16.xpose.msra.mxu0 0
        %1055 = vmatprep.mubr.bf16.mxu0 0
        %1056 = vmatmul.mubr.bf16.gmra.mxu0 %v1018
        %v1057 = vpop.f32.mrf.mxu0
        %v1058 = vadd.f32 0.0, %v1057
        %v1059 = vpop.f32.mrf.mxu0
        %v1060 = vpop.f32.mrf.mxu0
        %v1061 = vpop.f32.mrf.mxu0
        %1062 = vdwg.mxu0
        %v1063 = vmul.f32 %v920, 0.35355338
        %v1064 = vmul.f32 %v966, 0.35355338
        %v1065 = vmul.f32 %v1012, 0.35355338
        %v1066 = vmul.f32 %v1058, 0.35355338
        %v1067 = vsel %vm322, 1, 0
        %v1068 = vlaneseq
        %v1069 = vshrl.u32 %v1068, 7
        %v1070 = vsub.s32 0, %v1069
        %v1071 = vrot.slane %v1067, %v1070
        %vm1072 = vcmp.eq.s32.totalorder %v1071, 1
        %v1073 = vsel %vm1072, %v1063, -1e+09
        %v1074 = vsel %vm1072, %v1064, -1e+09
        %v1075 = vsel %vm1072, %v1065, -1e+09
        %v1076 = vsel %vm1072, %v1066, -1e+09
        %v1077 = vsel %vm878, %v1073, -inf
        %1078 = vmax.xlane.f32.xlu0 %v1077
        %v1079 = vpop.xlane.xlu0 %1078
        %v1080 = vsel %vm878, %v1074, -inf
        %1081 = vmax.xlane.f32.xlu0 %v1080
        %v1082 = vpop.xlane.xlu0 %1081
        %v1083 = vsel %vm878, %v1075, -inf
        %1084 = vmax.xlane.f32.xlu0 %v1083
        %v1085 = vpop.xlane.xlu0 %1084
        %v1086 = vsel %vm878, %v1076, -inf
        %1087 = vmax.xlane.f32.xlu0 %v1086
        %v1088 = vpop.xlane.xlu0 %1087
        %v1089 = vsub.f32 %v1073, %v1079
        %v1090 = vsub.f32 %v1074, %v1082
        %v1091 = vsub.f32 %v1075, %v1085
        %v1092 = vsub.f32 %v1076, %v1088
        %v1093 = vmul.f32 %v1089, 1.442695
        %v1094 = vpow.pop %v1093
        %v1095 = vmul.f32 %v1090, 1.442695
        %v1096 = vpow.pop %v1095
        %v1097 = vmul.f32 %v1091, 1.442695
        %v1098 = vpow.pop %v1097
        %v1099 = vmul.f32 %v1092, 1.442695
        %v1100 = vpow.pop %v1099
        %v1101 = vsel %vm878, %v1094, 0.0
        %1102 = vadd.xlane.f32.xlu0 %v1101
        %v1103 = vpop.xlane.xlu0 %1102
        %v1104 = vsel %vm878, %v1096, 0.0
        %1105 = vadd.xlane.f32.xlu0 %v1104
        %v1106 = vpop.xlane.xlu0 %1105
        %v1107 = vsel %vm878, %v1098, 0.0
        %1108 = vadd.xlane.f32.xlu0 %v1107
        %v1109 = vpop.xlane.xlu0 %1108
        %v1110 = vsel %vm878, %v1100, 0.0
        %1111 = vadd.xlane.f32.xlu0 %v1110
        %v1112 = vpop.xlane.xlu0 %1111
        %v1113 = vrcp.pop %v1103
        %v1114 = vrcp.pop %v1106
        %v1115 = vrcp.pop %v1109
        %v1116 = vrcp.pop %v1112
        %v1117 = vmul.f32 %v1094, %v1113
        %v1118 = vmul.f32 %v1096, %v1114
        %v1119 = vmul.f32 %v1098, %v1115
        %v1120 = vmul.f32 %v1100, %v1116
        %v1121 = vpack.c.bf16 %v1117, %v1117
        %v1122 = vpack.c.bf16 %v1118, %v1118
        %v1123 = vpack.c.bf16 %v1119, %v1119
        %v1124 = vpack.c.bf16 %v1120, %v1120
        %v1126 = vsel %vm878, %v1121, 0
        %vm1128 = vcmask 1043456
        %v1130 = vsel %vm1128, %v874, 0
        %1132 = vmatprep.subr.bf16.mxu0 0
        %1133 = vmatpush1.bf16.msra.mxu0 0
        %1134 = vmatprep.subr.bf16.mxu0 0
        %1135 = vmatpush1.bf16.msra.mxu0 0
        %1136 = vmatprep.subr.bf16.mxu0 0
        %1137 = vmatpush1.bf16.msra.mxu0 0
        %1138 = vmatprep.subr.bf16.mxu0 0
        %1139 = vmatpush1.bf16.msra.mxu0 0
        %1140 = vmatprep.subr.bf16.mxu0 0
        %1141 = vmatpush1.bf16.msra.mxu0 0
        %1142 = vmatprep.subr.bf16.mxu0 0
        %1143 = vmatpush1.bf16.msra.mxu0 0
        %1144 = vmatprep.subr.bf16.mxu0 0
        %1145 = vmatpush1.bf16.msra.mxu0 0
        %1146 = vmatprep.subr.bf16.mxu0 0
        %1147 = vmatpush1.bf16.msra.mxu0 %v1130
        %1148 = vmatprep.subr.bf16.mxu0 0
        %1149 = vmatpush2.bf16.msra.mxu0 0
        %1150 = vmatprep.subr.bf16.mxu0 0
        %1151 = vmatpush2.bf16.msra.mxu0 0
        %1152 = vmatprep.subr.bf16.mxu0 0
        %1153 = vmatpush2.bf16.msra.mxu0 0
        %1154 = vmatprep.subr.bf16.mxu0 0
        %1155 = vmatpush2.bf16.msra.mxu0 0
        %1156 = vmatprep.subr.bf16.mxu0 0
        %1157 = vmatpush2.bf16.msra.mxu0 0
        %1158 = vmatprep.subr.bf16.mxu0 0
        %1159 = vmatpush2.bf16.msra.mxu0 0
        %1160 = vmatprep.subr.bf16.mxu0 0
        %1161 = vmatpush2.bf16.msra.mxu0 0
        %1162 = vmatprep.subr.bf16.mxu0 0
        %1163 = vmatpush2.bf16.msra.mxu0 0
        %1164 = vmatprep.mubr.bf16.mxu0 0
        %1165 = vmatmul.mubr.bf16.gmra.mxu0 %v1126
        %v1166 = vpop.f32.mrf.mxu0
        %v1167 = vadd.f32 0.0, %v1166
        %v1168 = vpop.f32.mrf.mxu0
        %v1169 = vpop.f32.mrf.mxu0
        %v1170 = vpop.f32.mrf.mxu0
        %1171 = vdwg.mxu0
        %v1173 = vsel %vm878, %v1122, 0
        %v1176 = vsel %vm1128, %v875, 0
        %1178 = vmatprep.subr.bf16.mxu0 0
        %1179 = vmatpush1.bf16.msra.mxu0 0
        %1180 = vmatprep.subr.bf16.mxu0 0
        %1181 = vmatpush1.bf16.msra.mxu0 0
        %1182 = vmatprep.subr.bf16.mxu0 0
        %1183 = vmatpush1.bf16.msra.mxu0 0
        %1184 = vmatprep.subr.bf16.mxu0 0
        %1185 = vmatpush1.bf16.msra.mxu0 0
        %1186 = vmatprep.subr.bf16.mxu0 0
        %1187 = vmatpush1.bf16.msra.mxu0 0
        %1188 = vmatprep.subr.bf16.mxu0 0
        %1189 = vmatpush1.bf16.msra.mxu0 0
        %1190 = vmatprep.subr.bf16.mxu0 0
        %1191 = vmatpush1.bf16.msra.mxu0 0
        %1192 = vmatprep.subr.bf16.mxu0 0
        %1193 = vmatpush1.bf16.msra.mxu0 %v1176
        %1194 = vmatprep.subr.bf16.mxu0 0
        %1195 = vmatpush2.bf16.msra.mxu0 0
        %1196 = vmatprep.subr.bf16.mxu0 0
        %1197 = vmatpush2.bf16.msra.mxu0 0
        %1198 = vmatprep.subr.bf16.mxu0 0
        %1199 = vmatpush2.bf16.msra.mxu0 0
        %1200 = vmatprep.subr.bf16.mxu0 0
        %1201 = vmatpush2.bf16.msra.mxu0 0
        %1202 = vmatprep.subr.bf16.mxu0 0
        %1203 = vmatpush2.bf16.msra.mxu0 0
        %1204 = vmatprep.subr.bf16.mxu0 0
        %1205 = vmatpush2.bf16.msra.mxu0 0
        %1206 = vmatprep.subr.bf16.mxu0 0
        %1207 = vmatpush2.bf16.msra.mxu0 0
        %1208 = vmatprep.subr.bf16.mxu0 0
        %1209 = vmatpush2.bf16.msra.mxu0 0
        %1210 = vmatprep.mubr.bf16.mxu0 0
        %1211 = vmatmul.mubr.bf16.gmra.mxu0 %v1173
        %v1212 = vpop.f32.mrf.mxu0
        %v1213 = vadd.f32 0.0, %v1212
        %v1214 = vpop.f32.mrf.mxu0
        %v1215 = vpop.f32.mrf.mxu0
        %v1216 = vpop.f32.mrf.mxu0
        %1217 = vdwg.mxu0
        %v1219 = vsel %vm878, %v1123, 0
        %v1222 = vsel %vm1128, %v876, 0
        %1224 = vmatprep.subr.bf16.mxu0 0
        %1225 = vmatpush1.bf16.msra.mxu0 0
        %1226 = vmatprep.subr.bf16.mxu0 0
        %1227 = vmatpush1.bf16.msra.mxu0 0
        %1228 = vmatprep.subr.bf16.mxu0 0
        %1229 = vmatpush1.bf16.msra.mxu0 0
        %1230 = vmatprep.subr.bf16.mxu0 0
        %1231 = vmatpush1.bf16.msra.mxu0 0
        %1232 = vmatprep.subr.bf16.mxu0 0
        %1233 = vmatpush1.bf16.msra.mxu0 0
        %1234 = vmatprep.subr.bf16.mxu0 0
        %1235 = vmatpush1.bf16.msra.mxu0 0
        %1236 = vmatprep.subr.bf16.mxu0 0
        %1237 = vmatpush1.bf16.msra.mxu0 0
        %1238 = vmatprep.subr.bf16.mxu0 0
        %1239 = vmatpush1.bf16.msra.mxu0 %v1222
        %1240 = vmatprep.subr.bf16.mxu0 0
        %1241 = vmatpush2.bf16.msra.mxu0 0
        %1242 = vmatprep.subr.bf16.mxu0 0
        %1243 = vmatpush2.bf16.msra.mxu0 0
        %1244 = vmatprep.subr.bf16.mxu0 0
        %1245 = vmatpush2.bf16.msra.mxu0 0
        %1246 = vmatprep.subr.bf16.mxu0 0
        %1247 = vmatpush2.bf16.msra.mxu0 0
        %1248 = vmatprep.subr.bf16.mxu0 0
        %1249 = vmatpush2.bf16.msra.mxu0 0
        %1250 = vmatprep.subr.bf16.mxu0 0
        %1251 = vmatpush2.bf16.msra.mxu0 0
        %1252 = vmatprep.subr.bf16.mxu0 0
        %1253 = vmatpush2.bf16.msra.mxu0 0
        %1254 = vmatprep.subr.bf16.mxu0 0
        %1255 = vmatpush2.bf16.msra.mxu0 0
        %1256 = vmatprep.mubr.bf16.mxu0 0
        %1257 = vmatmul.mubr.bf16.gmra.mxu0 %v1219
        %v1258 = vpop.f32.mrf.mxu0
        %v1259 = vadd.f32 0.0, %v1258
        %v1260 = vpop.f32.mrf.mxu0
        %v1261 = vpop.f32.mrf.mxu0
        %v1262 = vpop.f32.mrf.mxu0
        %1263 = vdwg.mxu0
        %v1265 = vsel %vm878, %v1124, 0
        %v1268 = vsel %vm1128, %v877, 0
        %1270 = vmatprep.subr.bf16.mxu0 0
        %1271 = vmatpush1.bf16.msra.mxu0 0
        %1272 = vmatprep.subr.bf16.mxu0 0
        %1273 = vmatpush1.bf16.msra.mxu0 0
        %1274 = vmatprep.subr.bf16.mxu0 0
        %1275 = vmatpush1.bf16.msra.mxu0 0
        %1276 = vmatprep.subr.bf16.mxu0 0
        %1277 = vmatpush1.bf16.msra.mxu0 0
        %1278 = vmatprep.subr.bf16.mxu0 0
        %1279 = vmatpush1.bf16.msra.mxu0 0
        %1280 = vmatprep.subr.bf16.mxu0 0
        %1281 = vmatpush1.bf16.msra.mxu0 0
        %1282 = vmatprep.subr.bf16.mxu0 0
        %1283 = vmatpush1.bf16.msra.mxu0 0
        %1284 = vmatprep.subr.bf16.mxu0 0
        %1285 = vmatpush1.bf16.msra.mxu0 %v1268
        %1286 = vmatprep.subr.bf16.mxu0 0
        %1287 = vmatpush2.bf16.msra.mxu0 0
        %1288 = vmatprep.subr.bf16.mxu0 0
        %1289 = vmatpush2.bf16.msra.mxu0 0
        %1290 = vmatprep.subr.bf16.mxu0 0
        %1291 = vmatpush2.bf16.msra.mxu0 0
        %1292 = vmatprep.subr.bf16.mxu0 0
        %1293 = vmatpush2.bf16.msra.mxu0 0
        %1294 = vmatprep.subr.bf16.mxu0 0
        %1295 = vmatpush2.bf16.msra.mxu0 0
        %1296 = vmatprep.subr.bf16.mxu0 0
        %1297 = vmatpush2.bf16.msra.mxu0 0
        %1298 = vmatprep.subr.bf16.mxu0 0
        %1299 = vmatpush2.bf16.msra.mxu0 0
        %1300 = vmatprep.subr.bf16.mxu0 0
        %1301 = vmatpush2.bf16.msra.mxu0 0
        %1302 = vmatprep.mubr.bf16.mxu0 0
        %1303 = vmatmul.mubr.bf16.gmra.mxu0 %v1265
        %v1304 = vpop.f32.mrf.mxu0
        %v1305 = vadd.f32 0.0, %v1304
        %v1306 = vpop.f32.mrf.mxu0
        %v1307 = vpop.f32.mrf.mxu0
        %v1308 = vpop.f32.mrf.mxu0
        %1309 = vdwg.mxu0
        %v1310 = vcombine.low %v1167, %v1259
        %v1311 = vcombine.high %v1167, %v1259
        %v1313 = vunpack.c.l.s4 1983009808
        %v1314 = vunpack.c.0.s8 %v1313
        %v1315 = vlaneseq
        %v1316 = vshrl.u32 %v1315, 7
        %v1317 = vsub.s32 %v1314, %v1316
        %v1318 = vrot.slane %v1310, %v1317
        %v1320 = vunpack.c.l.s4 1983009808
        %v1321 = vunpack.c.0.s8 %v1320
        %v1322 = vlaneseq
        %v1323 = vshrl.u32 %v1322, 7
        %v1324 = vsub.s32 %v1321, %v1323
        %v1325 = vrot.slane %v1311, %v1324
        %v1326 = vcombine.low %v1213, %v1305
        %v1327 = vcombine.high %v1213, %v1305
        %v1329 = vunpack.c.l.s4 1983009808
        %v1330 = vunpack.c.0.s8 %v1329
        %v1331 = vlaneseq
        %v1332 = vshrl.u32 %v1331, 7
        %v1333 = vsub.s32 %v1330, %v1332
        %v1334 = vrot.slane %v1326, %v1333
        %v1336 = vunpack.c.l.s4 1983009808
        %v1337 = vunpack.c.0.s8 %v1336
        %v1338 = vlaneseq
        %v1339 = vshrl.u32 %v1338, 7
        %v1340 = vsub.s32 %v1337, %v1339
        %v1341 = vrot.slane %v1327, %v1340
        %v1342 = vcombine.low %v1318, %v1334
        %v1343 = vcombine.high %v1318, %v1334
        %v1345 = vunpack.c.l.s4 1934713408
        %v1346 = vunpack.c.0.s8 %v1345
        %v1347 = vlaneseq
        %v1348 = vshrl.u32 %v1347, 7
        %v1349 = vsub.s32 %v1346, %v1348
        %v1350 = vrot.slane %v1342, %v1349
        %v1352 = vunpack.c.l.s4 1934713408
        %v1353 = vunpack.c.0.s8 %v1352
        %v1354 = vlaneseq
        %v1355 = vshrl.u32 %v1354, 7
        %v1356 = vsub.s32 %v1353, %v1355
        %v1357 = vrot.slane %v1343, %v1356
        %v1358 = vcombine.low %v1325, %v1341
        %v1359 = vcombine.high %v1325, %v1341
        %v1361 = vunpack.c.l.s4 1934713408
        %v1362 = vunpack.c.0.s8 %v1361
        %v1363 = vlaneseq
        %v1364 = vshrl.u32 %v1363, 7
        %v1365 = vsub.s32 %v1362, %v1364
        %v1366 = vrot.slane %v1358, %v1365
        %v1368 = vunpack.c.l.s4 1934713408
        %v1369 = vunpack.c.0.s8 %v1368
        %v1370 = vlaneseq
        %v1371 = vshrl.u32 %v1370, 7
        %v1372 = vsub.s32 %v1369, %v1371
        %v1373 = vrot.slane %v1359, %v1372
        %v1374 = vcombine.high %v1350, 0.0
        %v1375 = vcombine.high %v1357, 0.0
        %v1376 = vcombine.high %v1366, 0.0
        %v1377 = vcombine.high %v1373, 0.0
        %v1378 = vcombine.low %v1350, %v1357
        %v1380 = vunpack.c.l.s4 1983009808
        %v1381 = vunpack.c.0.s8 %v1380
        %v1382 = vlaneseq
        %v1383 = vshrl.u32 %v1382, 7
        %v1384 = vsub.s32 %v1381, %v1383
        %v1385 = vrot.slane %v1378, %v1384
        %v1386 = vcombine.low %v1374, %v1375
        %v1388 = vunpack.c.l.s4 1983009808
        %v1389 = vunpack.c.0.s8 %v1388
        %v1390 = vlaneseq
        %v1391 = vshrl.u32 %v1390, 7
        %v1392 = vsub.s32 %v1389, %v1391
        %v1393 = vrot.slane %v1386, %v1392
        %v1394 = vcombine.low %v1366, %v1373
        %v1396 = vunpack.c.l.s4 1983009808
        %v1397 = vunpack.c.0.s8 %v1396
        %v1398 = vlaneseq
        %v1399 = vshrl.u32 %v1398, 7
        %v1400 = vsub.s32 %v1397, %v1399
        %v1401 = vrot.slane %v1394, %v1400
        %v1402 = vcombine.low %v1376, %v1377
        %v1404 = vunpack.c.l.s4 1983009808
        %v1405 = vunpack.c.0.s8 %v1404
        %v1406 = vlaneseq
        %v1407 = vshrl.u32 %v1406, 7
        %v1408 = vsub.s32 %v1405, %v1407
        %v1409 = vrot.slane %v1402, %v1408
        %v1410 = vcombine.low %v1385, %v1393
        %v1411 = vcombine.high %v1385, %v1393
        %v1413 = vunpack.c.l.s4 1934713408
        %v1414 = vunpack.c.0.s8 %v1413
        %v1415 = vlaneseq
        %v1416 = vshrl.u32 %v1415, 7
        %v1417 = vsub.s32 %v1414, %v1416
        %v1418 = vrot.slane %v1410, %v1417
        %v1420 = vunpack.c.l.s4 1934713408
        %v1421 = vunpack.c.0.s8 %v1420
        %v1422 = vlaneseq
        %v1423 = vshrl.u32 %v1422, 7
        %v1424 = vsub.s32 %v1421, %v1423
        %v1425 = vrot.slane %v1411, %v1424
        %v1426 = vcombine.low %v1401, %v1409
        %v1427 = vcombine.high %v1401, %v1409
        %v1429 = vunpack.c.l.s4 1934713408
        %v1430 = vunpack.c.0.s8 %v1429
        %v1431 = vlaneseq
        %v1432 = vshrl.u32 %v1431, 7
        %v1433 = vsub.s32 %v1430, %v1432
        %v1434 = vrot.slane %v1426, %v1433
        %v1436 = vunpack.c.l.s4 1934713408
        %v1437 = vunpack.c.0.s8 %v1436
        %v1438 = vlaneseq
        %v1439 = vshrl.u32 %v1438, 7
        %v1440 = vsub.s32 %v1437, %v1439
        %v1441 = vrot.slane %v1427, %v1440
        %v1442 = vcombine.low %v1418, %v1434
        %v1443 = vcombine.high %v1418, %v1434
        %v1444 = vcombine.low %v1425, %v1441
        %v1445 = vcombine.high %v1425, %v1441
        %1447 = vrot.lane.b32.xlu0 %v1443, 8
        %v1448 = vpop.permute.xlu0 %1447
        %1451 = vrot.lane.b32.xlu0 %v1444, 16
        %v1452 = vpop.permute.xlu0 %1451
        %1455 = vrot.lane.b32.xlu0 %v1445, 24
        %v1456 = vpop.permute.xlu0 %1455
        %v1458 = vsel %vm878, %v1442, %v1448
        %vm1459 = vcmask 130048
        %v1460 = vsel %vm1459, %v1458, %v1452
        %vm1461 = vcmask 195584
        %v1462 = vsel %vm1461, %v1460, %v1456
        %v1463 = vld [vmem:[%s3] sm:$0xff]
        %v1464 = vld [vmem:[%s3 + $0x18] sm:$0xff]
        %v1465 = vld [vmem:[%s3 + $0x30] sm:$0xff]
        %v1466 = vld [vmem:[%s3 + $0x48] sm:$0xff]
        %v1467 = vpack.c.bf16 %v1462, %v1462
        %v1468 = vpack.c.bf16 %v1464, %v1463
        %v1469 = vpack.c.bf16 %v1466, %v1465
        %v1470 = vld [vmem:[%s5] sm:$0x1]
        %v1472 = vlaneseq
        %v1473 = vshrl.u32 %v1472, 7
        %v1474 = vsub.s32 0, %v1473
        %v1475 = vrot.slane %v1470, %v1474
        %1478 = vrot.lane.b32.xlu0 %v1468, 32
        %v1479 = vpop.permute.xlu0 %1478
        %1480 = vrot.lane.b32.xlu0 %v1469, 32
        %v1481 = vpop.permute.xlu0 %1480
        %1484 = vrot.lane.b32.xlu0 %v1475, 32
        %v1485 = vpop.permute.xlu0 %1484
        %v1488 = vsel %vm325, %v1467, 0
        %1490 = vmatprep.subr.bf16.mxu0 0
        %1491 = vmatpush1.bf16.msra.mxu0 0
        %1492 = vmatprep.subr.bf16.mxu0 0
        %1493 = vmatpush1.bf16.msra.mxu0 0
        %1494 = vmatprep.subr.bf16.mxu0 0
        %1495 = vmatpush1.bf16.msra.mxu0 0
        %1496 = vmatprep.subr.bf16.mxu0 0
        %1497 = vmatpush1.bf16.msra.mxu0 0
        %1498 = vmatprep.subr.bf16.mxu0 0
        %1499 = vmatpush1.bf16.msra.mxu0 0
        %1500 = vmatprep.subr.bf16.mxu0 0
        %1501 = vmatpush1.bf16.msra.mxu0 0
        %1502 = vmatprep.subr.bf16.mxu0 0
        %1503 = vmatpush1.bf16.msra.mxu0 %v1481
        %1504 = vmatprep.subr.bf16.mxu0 0
        %1505 = vmatpush1.bf16.msra.mxu0 %v1479
        %1506 = vmatprep.subr.bf16.mxu0 0
        %1507 = vmatpush2.bf16.msra.mxu0 0
        %1508 = vmatprep.subr.bf16.mxu0 0
        %1509 = vmatpush2.bf16.msra.mxu0 0
        %1510 = vmatprep.subr.bf16.mxu0 0
        %1511 = vmatpush2.bf16.msra.mxu0 0
        %1512 = vmatprep.subr.bf16.mxu0 0
        %1513 = vmatpush2.bf16.msra.mxu0 0
        %1514 = vmatprep.subr.bf16.mxu0 0
        %1515 = vmatpush2.bf16.msra.mxu0 0
        %1516 = vmatprep.subr.bf16.mxu0 0
        %1517 = vmatpush2.bf16.msra.mxu0 0
        %1518 = vmatprep.subr.bf16.mxu0 0
        %1519 = vmatpush2.bf16.msra.mxu0 0
        %1520 = vmatprep.subr.bf16.mxu0 0
        %1521 = vmatpush2.bf16.msra.mxu0 0
        %1522 = vmatprep.mubr.bf16.mxu0 0
        %1523 = vmatmul.mubr.bf16.gmra.mxu0 %v1488
        %v1524 = vpop.f32.mrf.mxu0
        %v1525 = vadd.f32 %v1485, %v1524
        %v1526 = vpop.f32.mrf.mxu0
        %v1527 = vpop.f32.mrf.mxu0
        %v1528 = vpop.f32.mrf.mxu0
        %1529 = vdwg.mxu0
        %v1530 = vadd.f32 %v319, %v1525
        %v1531 = vld [vmem:[%s5 + $0x3] sm:$0x1]
        %v1532 = vsel %vm325, %v1530, 0.0
        %1533 = vadd.xlane.f32.xlu0 %v1532
        %v1534 = vpop.xlane.xlu0 %1533
        %v1535 = vmul.f32 %v1534, %v329
        %v1536 = vsub.f32 %v1530, %v1535
        %v1537 = vmul.f32 %v1536, %v1536
        %v1538 = vsel %vm325, %v1537, 0.0
        %1539 = vadd.xlane.f32.xlu0 %v1538
        %v1540 = vpop.xlane.xlu0 %1539
        %v1541 = vmul.f32 %v1540, 0.032258064
        %v1542 = vrsqrt.pop %v1541
        %v1543 = vmul.f32 %v1541, %v1542
        %vm1544 = vcmp.eq.f32.partialorder %v1541, inf
        %v1545 = vsel %vm1544, %v1541, %v1543
        %vm1546 = vcmp.eq.f32.partialorder %v1541, 0.0
        %v1547 = vand.u32 %v1541, 2147483648
        %v1548 = vsel %vm1546, %v1547, %v1545
        %v1549 = vadd.f32 %v1548, 1e-06
        %v1550 = vrcp.pop %v1549
        %v1552 = vlaneseq
        %v1553 = vshrl.u32 %v1552, 7
        %v1554 = vsub.s32 0, %v1553
        %v1555 = vrot.slane %v1531, %v1554
        %v1557 = vmul.f32 %v1555, %v1550
        %v1558 = vmul.f32 %v1536, %v1557
        %1559 = vrot.lane.b32.xlu0 %v1555, 32
        %v1560 = vpop.permute.xlu0 %1559
        %v1562 = vadd.f32 %v1558, %v1560
        %v1563 = vld [vmem:[%s3 + $0x8] sm:$0xff]
        %v1564 = vld [vmem:[%s3 + $0x20] sm:$0xff]
        %v1565 = vld [vmem:[%s3 + $0x38] sm:$0xff]
        %v1566 = vld [vmem:[%s3 + $0x50] sm:$0xff]
        %v1567 = vpack.c.bf16 %v320, %v320
        %v1568 = vpack.c.bf16 %v1564, %v1563
        %v1569 = vpack.c.bf16 %v1566, %v1565
        %v1570 = vld [vmem:[%s5 + $0x1] sm:$0x1]
        %v1572 = vlaneseq
        %v1573 = vshrl.u32 %v1572, 7
        %v1574 = vsub.s32 0, %v1573
        %v1575 = vrot.slane %v1570, %v1574
        %v1578 = vsel %vm325, %v1567, 0
        %1580 = vmatprep.subr.bf16.mxu0 0
        %1581 = vmatpush1.bf16.msra.mxu0 0
        %1582 = vmatprep.subr.bf16.mxu0 0
        %1583 = vmatpush1.bf16.msra.mxu0 0
        %1584 = vmatprep.subr.bf16.mxu0 0
        %1585 = vmatpush1.bf16.msra.mxu0 0
        %1586 = vmatprep.subr.bf16.mxu0 0
        %1587 = vmatpush1.bf16.msra.mxu0 0
        %1588 = vmatprep.subr.bf16.mxu0 0
        %1589 = vmatpush1.bf16.msra.mxu0 0
        %1590 = vmatprep.subr.bf16.mxu0 0
        %1591 = vmatpush1.bf16.msra.mxu0 0
        %1592 = vmatprep.subr.bf16.mxu0 0
        %1593 = vmatpush1.bf16.msra.mxu0 %v1569
        %1594 = vmatprep.subr.bf16.mxu0 0
        %1595 = vmatpush1.bf16.msra.mxu0 %v1568
        %1596 = vmatprep.subr.bf16.mxu0 0
        %1597 = vmatpush2.bf16.msra.mxu0 0
        %1598 = vmatprep.subr.bf16.mxu0 0
        %1599 = vmatpush2.bf16.msra.mxu0 0
        %1600 = vmatprep.subr.bf16.mxu0 0
        %1601 = vmatpush2.bf16.msra.mxu0 0
        %1602 = vmatprep.subr.bf16.mxu0 0
        %1603 = vmatpush2.bf16.msra.mxu0 0
        %1604 = vmatprep.subr.bf16.mxu0 0
        %1605 = vmatpush2.bf16.msra.mxu0 0
        %1606 = vmatprep.subr.bf16.mxu0 0
        %1607 = vmatpush2.bf16.msra.mxu0 0
        %1608 = vmatprep.subr.bf16.mxu0 0
        %1609 = vmatpush2.bf16.msra.mxu0 0
        %1610 = vmatprep.subr.bf16.mxu0 0
        %1611 = vmatpush2.bf16.msra.mxu0 0
        %1612 = vmatprep.mubr.bf16.mxu0 0
        %1613 = vmatmul.mubr.bf16.gmra.mxu0 %v1578
        %v1614 = vpop.f32.mrf.mxu0
        %v1615 = vadd.f32 %v1575, %v1614
        %v1616 = vpop.f32.mrf.mxu0
        %v1617 = vpop.f32.mrf.mxu0
        %v1618 = vpop.f32.mrf.mxu0
        %1619 = vdwg.mxu0
        %v1620 = vpack.c.bf16 %v1562, %v1562
        %1623 = vrot.lane.b32.xlu0 %v1568, 64
        %v1624 = vpop.permute.xlu0 %1623
        %1625 = vrot.lane.b32.xlu0 %v1569, 64
        %v1626 = vpop.permute.xlu0 %1625
        %1629 = vrot.lane.b32.xlu0 %v1575, 64
        %v1630 = vpop.permute.xlu0 %1629
        %v1633 = vsel %vm325, %v1620, 0
        %1635 = vmatprep.subr.bf16.mxu0 0
        %1636 = vmatpush1.bf16.msra.mxu0 0
        %1637 = vmatprep.subr.bf16.mxu0 0
        %1638 = vmatpush1.bf16.msra.mxu0 0
        %1639 = vmatprep.subr.bf16.mxu0 0
        %1640 = vmatpush1.bf16.msra.mxu0 0
        %1641 = vmatprep.subr.bf16.mxu0 0
        %1642 = vmatpush1.bf16.msra.mxu0 0
        %1643 = vmatprep.subr.bf16.mxu0 0
        %1644 = vmatpush1.bf16.msra.mxu0 0
        %1645 = vmatprep.subr.bf16.mxu0 0
        %1646 = vmatpush1.bf16.msra.mxu0 0
        %1647 = vmatprep.subr.bf16.mxu0 0
        %1648 = vmatpush1.bf16.msra.mxu0 %v1626
        %1649 = vmatprep.subr.bf16.mxu0 0
        %1650 = vmatpush1.bf16.msra.mxu0 %v1624
        %1651 = vmatprep.subr.bf16.mxu0 0
        %1652 = vmatpush2.bf16.msra.mxu0 0
        %1653 = vmatprep.subr.bf16.mxu0 0
        %1654 = vmatpush2.bf16.msra.mxu0 0
        %1655 = vmatprep.subr.bf16.mxu0 0
        %1656 = vmatpush2.bf16.msra.mxu0 0
        %1657 = vmatprep.subr.bf16.mxu0 0
        %1658 = vmatpush2.bf16.msra.mxu0 0
        %1659 = vmatprep.subr.bf16.mxu0 0
        %1660 = vmatpush2.bf16.msra.mxu0 0
        %1661 = vmatprep.subr.bf16.mxu0 0
        %1662 = vmatpush2.bf16.msra.mxu0 0
        %1663 = vmatprep.subr.bf16.mxu0 0
        %1664 = vmatpush2.bf16.msra.mxu0 0
        %1665 = vmatprep.subr.bf16.mxu0 0
        %1666 = vmatpush2.bf16.msra.mxu0 0
        %1667 = vmatprep.mubr.bf16.mxu0 0
        %1668 = vmatmul.mubr.bf16.gmra.mxu0 %v1633
        %v1669 = vpop.f32.mrf.mxu0
        %v1670 = vadd.f32 %v1630, %v1669
        %v1671 = vpop.f32.mrf.mxu0
        %v1672 = vpop.f32.mrf.mxu0
        %v1673 = vpop.f32.mrf.mxu0
        %1674 = vdwg.mxu0
        %1676 = vrot.lane.b32.xlu0 %v1615, 120
        %v1677 = vpop.permute.xlu0 %1676
        %1679 = vrot.lane.b32.xlu0 %v1615, 112
        %v1680 = vpop.permute.xlu0 %1679
        %1682 = vrot.lane.b32.xlu0 %v1615, 104
        %v1683 = vpop.permute.xlu0 %1682
        %v1685 = vcombine.low %v1615, %v1680
        %v1686 = vcombine.high %v1615, %v1680
        %v1688 = vunpack.c.l.s4 1983009808
        %v1689 = vunpack.c.0.s8 %v1688
        %v1690 = vlaneseq
        %v1691 = vshrl.u32 %v1690, 7
        %v1692 = vsub.s32 %v1689, %v1691
        %v1693 = vrot.slane %v1685, %v1692
        %v1695 = vunpack.c.l.s4 1983009808
        %v1696 = vunpack.c.0.s8 %v1695
        %v1697 = vlaneseq
        %v1698 = vshrl.u32 %v1697, 7
        %v1699 = vsub.s32 %v1696, %v1698
        %v1700 = vrot.slane %v1686, %v1699
        %v1701 = vcombine.low %v1677, %v1683
        %v1702 = vcombine.high %v1677, %v1683
        %v1704 = vunpack.c.l.s4 1983009808
        %v1705 = vunpack.c.0.s8 %v1704
        %v1706 = vlaneseq
        %v1707 = vshrl.u32 %v1706, 7
        %v1708 = vsub.s32 %v1705, %v1707
        %v1709 = vrot.slane %v1701, %v1708
        %v1711 = vunpack.c.l.s4 1983009808
        %v1712 = vunpack.c.0.s8 %v1711
        %v1713 = vlaneseq
        %v1714 = vshrl.u32 %v1713, 7
        %v1715 = vsub.s32 %v1712, %v1714
        %v1716 = vrot.slane %v1702, %v1715
        %v1717 = vcombine.low %v1693, %v1709
        %v1718 = vcombine.high %v1693, %v1709
        %v1720 = vunpack.c.l.s4 1934713408
        %v1721 = vunpack.c.0.s8 %v1720
        %v1722 = vlaneseq
        %v1723 = vshrl.u32 %v1722, 7
        %v1724 = vsub.s32 %v1721, %v1723
        %v1725 = vrot.slane %v1717, %v1724
        %v1727 = vunpack.c.l.s4 1934713408
        %v1728 = vunpack.c.0.s8 %v1727
        %v1729 = vlaneseq
        %v1730 = vshrl.u32 %v1729, 7
        %v1731 = vsub.s32 %v1728, %v1730
        %v1732 = vrot.slane %v1718, %v1731
        %v1733 = vcombine.low %v1700, %v1716
        %v1734 = vcombine.high %v1700, %v1716
        %v1736 = vunpack.c.l.s4 1934713408
        %v1737 = vunpack.c.0.s8 %v1736
        %v1738 = vlaneseq
        %v1739 = vshrl.u32 %v1738, 7
        %v1740 = vsub.s32 %v1737, %v1739
        %v1741 = vrot.slane %v1733, %v1740
        %v1743 = vunpack.c.l.s4 1934713408
        %v1744 = vunpack.c.0.s8 %v1743
        %v1745 = vlaneseq
        %v1746 = vshrl.u32 %v1745, 7
        %v1747 = vsub.s32 %v1744, %v1746
        %v1748 = vrot.slane %v1734, %v1747
        %v1749 = vcombine.high %v1725, 0.0
        %v1750 = vcombine.high %v1732, 0.0
        %v1751 = vcombine.high %v1741, 0.0
        %v1752 = vcombine.high %v1748, 0.0
        %v1753 = vcombine.low %v1725, %v1732
        %v1755 = vunpack.c.l.s4 1983009808
        %v1756 = vunpack.c.0.s8 %v1755
        %v1757 = vlaneseq
        %v1758 = vshrl.u32 %v1757, 7
        %v1759 = vsub.s32 %v1756, %v1758
        %v1760 = vrot.slane %v1753, %v1759
        %v1761 = vcombine.low %v1749, %v1750
        %v1763 = vunpack.c.l.s4 1983009808
        %v1764 = vunpack.c.0.s8 %v1763
        %v1765 = vlaneseq
        %v1766 = vshrl.u32 %v1765, 7
        %v1767 = vsub.s32 %v1764, %v1766
        %v1768 = vrot.slane %v1761, %v1767
        %v1769 = vcombine.low %v1741, %v1748
        %v1771 = vunpack.c.l.s4 1983009808
        %v1772 = vunpack.c.0.s8 %v1771
        %v1773 = vlaneseq
        %v1774 = vshrl.u32 %v1773, 7
        %v1775 = vsub.s32 %v1772, %v1774
        %v1776 = vrot.slane %v1769, %v1775
        %v1777 = vcombine.low %v1751, %v1752
        %v1779 = vunpack.c.l.s4 1983009808
        %v1780 = vunpack.c.0.s8 %v1779
        %v1781 = vlaneseq
        %v1782 = vshrl.u32 %v1781, 7
        %v1783 = vsub.s32 %v1780, %v1782
        %v1784 = vrot.slane %v1777, %v1783
        %v1785 = vcombine.low %v1760, %v1768
        %v1786 = vcombine.high %v1760, %v1768
        %v1788 = vunpack.c.l.s4 1934713408
        %v1789 = vunpack.c.0.s8 %v1788
        %v1790 = vlaneseq
        %v1791 = vshrl.u32 %v1790, 7
        %v1792 = vsub.s32 %v1789, %v1791
        %v1793 = vrot.slane %v1785, %v1792
        %v1795 = vunpack.c.l.s4 1934713408
        %v1796 = vunpack.c.0.s8 %v1795
        %v1797 = vlaneseq
        %v1798 = vshrl.u32 %v1797, 7
        %v1799 = vsub.s32 %v1796, %v1798
        %v1800 = vrot.slane %v1786, %v1799
        %v1801 = vcombine.low %v1776, %v1784
        %v1802 = vcombine.high %v1776, %v1784
        %v1804 = vunpack.c.l.s4 1934713408
        %v1805 = vunpack.c.0.s8 %v1804
        %v1806 = vlaneseq
        %v1807 = vshrl.u32 %v1806, 7
        %v1808 = vsub.s32 %v1805, %v1807
        %v1809 = vrot.slane %v1801, %v1808
        %v1811 = vunpack.c.l.s4 1934713408
        %v1812 = vunpack.c.0.s8 %v1811
        %v1813 = vlaneseq
        %v1814 = vshrl.u32 %v1813, 7
        %v1815 = vsub.s32 %v1812, %v1814
        %v1816 = vrot.slane %v1802, %v1815
        %v1817 = vcombine.low %v1793, %v1809
        %v1818 = vcombine.high %v1793, %v1809
        %v1819 = vcombine.low %v1800, %v1816
        %v1820 = vcombine.high %v1800, %v1816
        %v1821 = vpack.c.bf16 %v1817, %v1817
        %v1822 = vpack.c.bf16 %v1818, %v1818
        %v1823 = vpack.c.bf16 %v1819, %v1819
        %v1824 = vpack.c.bf16 %v1820, %v1820
        %1826 = vrot.lane.b32.xlu0 %v1670, 120
        %v1827 = vpop.permute.xlu0 %1826
        %1829 = vrot.lane.b32.xlu0 %v1670, 112
        %v1830 = vpop.permute.xlu0 %1829
        %1832 = vrot.lane.b32.xlu0 %v1670, 104
        %v1833 = vpop.permute.xlu0 %1832
        %v1835 = vcombine.low %v1670, %v1830
        %v1836 = vcombine.high %v1670, %v1830
        %v1838 = vunpack.c.l.s4 1983009808
        %v1839 = vunpack.c.0.s8 %v1838
        %v1840 = vlaneseq
        %v1841 = vshrl.u32 %v1840, 7
        %v1842 = vsub.s32 %v1839, %v1841
        %v1843 = vrot.slane %v1835, %v1842
        %v1845 = vunpack.c.l.s4 1983009808
        %v1846 = vunpack.c.0.s8 %v1845
        %v1847 = vlaneseq
        %v1848 = vshrl.u32 %v1847, 7
        %v1849 = vsub.s32 %v1846, %v1848
        %v1850 = vrot.slane %v1836, %v1849
        %v1851 = vcombine.low %v1827, %v1833
        %v1852 = vcombine.high %v1827, %v1833
        %v1854 = vunpack.c.l.s4 1983009808
        %v1855 = vunpack.c.0.s8 %v1854
        %v1856 = vlaneseq
        %v1857 = vshrl.u32 %v1856, 7
        %v1858 = vsub.s32 %v1855, %v1857
        %v1859 = vrot.slane %v1851, %v1858
        %v1861 = vunpack.c.l.s4 1983009808
        %v1862 = vunpack.c.0.s8 %v1861
        %v1863 = vlaneseq
        %v1864 = vshrl.u32 %v1863, 7
        %v1865 = vsub.s32 %v1862, %v1864
        %v1866 = vrot.slane %v1852, %v1865
        %v1867 = vcombine.low %v1843, %v1859
        %v1868 = vcombine.high %v1843, %v1859
        %v1870 = vunpack.c.l.s4 1934713408
        %v1871 = vunpack.c.0.s8 %v1870
        %v1872 = vlaneseq
        %v1873 = vshrl.u32 %v1872, 7
        %v1874 = vsub.s32 %v1871, %v1873
        %v1875 = vrot.slane %v1867, %v1874
        %v1877 = vunpack.c.l.s4 1934713408
        %v1878 = vunpack.c.0.s8 %v1877
        %v1879 = vlaneseq
        %v1880 = vshrl.u32 %v1879, 7
        %v1881 = vsub.s32 %v1878, %v1880
        %v1882 = vrot.slane %v1868, %v1881
        %v1883 = vcombine.low %v1850, %v1866
        %v1884 = vcombine.high %v1850, %v1866
        %v1886 = vunpack.c.l.s4 1934713408
        %v1887 = vunpack.c.0.s8 %v1886
        %v1888 = vlaneseq
        %v1889 = vshrl.u32 %v1888, 7
        %v1890 = vsub.s32 %v1887, %v1889
        %v1891 = vrot.slane %v1883, %v1890
        %v1893 = vunpack.c.l.s4 1934713408
        %v1894 = vunpack.c.0.s8 %v1893
        %v1895 = vlaneseq
        %v1896 = vshrl.u32 %v1895, 7
        %v1897 = vsub.s32 %v1894, %v1896
        %v1898 = vrot.slane %v1884, %v1897
        %v1899 = vcombine.high %v1875, 0.0
        %v1900 = vcombine.high %v1882, 0.0
        %v1901 = vcombine.high %v1891, 0.0
        %v1902 = vcombine.high %v1898, 0.0
        %v1903 = vcombine.low %v1875, %v1882
        %v1905 = vunpack.c.l.s4 1983009808
        %v1906 = vunpack.c.0.s8 %v1905
        %v1907 = vlaneseq
        %v1908 = vshrl.u32 %v1907, 7
        %v1909 = vsub.s32 %v1906, %v1908
        %v1910 = vrot.slane %v1903, %v1909
        %v1911 = vcombine.low %v1899, %v1900
        %v1913 = vunpack.c.l.s4 1983009808
        %v1914 = vunpack.c.0.s8 %v1913
        %v1915 = vlaneseq
        %v1916 = vshrl.u32 %v1915, 7
        %v1917 = vsub.s32 %v1914, %v1916
        %v1918 = vrot.slane %v1911, %v1917
        %v1919 = vcombine.low %v1891, %v1898
        %v1921 = vunpack.c.l.s4 1983009808
        %v1922 = vunpack.c.0.s8 %v1921
        %v1923 = vlaneseq
        %v1924 = vshrl.u32 %v1923, 7
        %v1925 = vsub.s32 %v1922, %v1924
        %v1926 = vrot.slane %v1919, %v1925
        %v1927 = vcombine.low %v1901, %v1902
        %v1929 = vunpack.c.l.s4 1983009808
        %v1930 = vunpack.c.0.s8 %v1929
        %v1931 = vlaneseq
        %v1932 = vshrl.u32 %v1931, 7
        %v1933 = vsub.s32 %v1930, %v1932
        %v1934 = vrot.slane %v1927, %v1933
        %v1935 = vcombine.low %v1910, %v1918
        %v1936 = vcombine.high %v1910, %v1918
        %v1938 = vunpack.c.l.s4 1934713408
        %v1939 = vunpack.c.0.s8 %v1938
        %v1940 = vlaneseq
        %v1941 = vshrl.u32 %v1940, 7
        %v1942 = vsub.s32 %v1939, %v1941
        %v1943 = vrot.slane %v1935, %v1942
        %v1945 = vunpack.c.l.s4 1934713408
        %v1946 = vunpack.c.0.s8 %v1945
        %v1947 = vlaneseq
        %v1948 = vshrl.u32 %v1947, 7
        %v1949 = vsub.s32 %v1946, %v1948
        %v1950 = vrot.slane %v1936, %v1949
        %v1951 = vcombine.low %v1926, %v1934
        %v1952 = vcombine.high %v1926, %v1934
        %v1954 = vunpack.c.l.s4 1934713408
        %v1955 = vunpack.c.0.s8 %v1954
        %v1956 = vlaneseq
        %v1957 = vshrl.u32 %v1956, 7
        %v1958 = vsub.s32 %v1955, %v1957
        %v1959 = vrot.slane %v1951, %v1958
        %v1961 = vunpack.c.l.s4 1934713408
        %v1962 = vunpack.c.0.s8 %v1961
        %v1963 = vlaneseq
        %v1964 = vshrl.u32 %v1963, 7
        %v1965 = vsub.s32 %v1962, %v1964
        %v1966 = vrot.slane %v1952, %v1965
        %v1967 = vcombine.low %v1943, %v1959
        %v1968 = vcombine.high %v1943, %v1959
        %v1969 = vcombine.low %v1950, %v1966
        %v1970 = vcombine.high %v1950, %v1966
        %v1971 = vpack.c.bf16 %v1967, %v1967
        %v1972 = vpack.c.bf16 %v1968, %v1968
        %v1973 = vpack.c.bf16 %v1969, %v1969
        %v1974 = vpack.c.bf16 %v1970, %v1970
        %1975 = vrot.lane.b32.xlu0 %v1615, 96
        %v1976 = vpop.permute.xlu0 %1975
        %1977 = vrot.lane.b32.xlu0 %v1677, 96
        %v1978 = vpop.permute.xlu0 %1977
        %1979 = vrot.lane.b32.xlu0 %v1680, 96
        %v1980 = vpop.permute.xlu0 %1979
        %1981 = vrot.lane.b32.xlu0 %v1683, 96
        %v1982 = vpop.permute.xlu0 %1981
        %v1987 = vcombine.low %v1976, %v1980
        %v1988 = vcombine.high %v1976, %v1980
        %v1990 = vunpack.c.l.s4 1983009808
        %v1991 = vunpack.c.0.s8 %v1990
        %v1992 = vlaneseq
        %v1993 = vshrl.u32 %v1992, 7
        %v1994 = vsub.s32 %v1991, %v1993
        %v1995 = vrot.slane %v1987, %v1994
        %v1997 = vunpack.c.l.s4 1983009808
        %v1998 = vunpack.c.0.s8 %v1997
        %v1999 = vlaneseq
        %v2000 = vshrl.u32 %v1999, 7
        %v2001 = vsub.s32 %v1998, %v2000
        %v2002 = vrot.slane %v1988, %v2001
        %v2003 = vcombine.low %v1978, %v1982
        %v2004 = vcombine.high %v1978, %v1982
        %v2006 = vunpack.c.l.s4 1983009808
        %v2007 = vunpack.c.0.s8 %v2006
        %v2008 = vlaneseq
        %v2009 = vshrl.u32 %v2008, 7
        %v2010 = vsub.s32 %v2007, %v2009
        %v2011 = vrot.slane %v2003, %v2010
        %v2013 = vunpack.c.l.s4 1983009808
        %v2014 = vunpack.c.0.s8 %v2013
        %v2015 = vlaneseq
        %v2016 = vshrl.u32 %v2015, 7
        %v2017 = vsub.s32 %v2014, %v2016
        %v2018 = vrot.slane %v2004, %v2017
        %v2019 = vcombine.low %v1995, %v2011
        %v2020 = vcombine.high %v1995, %v2011
        %v2022 = vunpack.c.l.s4 1934713408
        %v2023 = vunpack.c.0.s8 %v2022
        %v2024 = vlaneseq
        %v2025 = vshrl.u32 %v2024, 7
        %v2026 = vsub.s32 %v2023, %v2025
        %v2027 = vrot.slane %v2019, %v2026
        %v2029 = vunpack.c.l.s4 1934713408
        %v2030 = vunpack.c.0.s8 %v2029
        %v2031 = vlaneseq
        %v2032 = vshrl.u32 %v2031, 7
        %v2033 = vsub.s32 %v2030, %v2032
        %v2034 = vrot.slane %v2020, %v2033
        %v2035 = vcombine.low %v2002, %v2018
        %v2036 = vcombine.high %v2002, %v2018
        %v2038 = vunpack.c.l.s4 1934713408
        %v2039 = vunpack.c.0.s8 %v2038
        %v2040 = vlaneseq
        %v2041 = vshrl.u32 %v2040, 7
        %v2042 = vsub.s32 %v2039, %v2041
        %v2043 = vrot.slane %v2035, %v2042
        %v2045 = vunpack.c.l.s4 1934713408
        %v2046 = vunpack.c.0.s8 %v2045
        %v2047 = vlaneseq
        %v2048 = vshrl.u32 %v2047, 7
        %v2049 = vsub.s32 %v2046, %v2048
        %v2050 = vrot.slane %v2036, %v2049
        %v2051 = vcombine.high %v2027, 0.0
        %v2052 = vcombine.high %v2034, 0.0
        %v2053 = vcombine.high %v2043, 0.0
        %v2054 = vcombine.high %v2050, 0.0
        %v2055 = vcombine.low %v2027, %v2034
        %v2057 = vunpack.c.l.s4 1983009808
        %v2058 = vunpack.c.0.s8 %v2057
        %v2059 = vlaneseq
        %v2060 = vshrl.u32 %v2059, 7
        %v2061 = vsub.s32 %v2058, %v2060
        %v2062 = vrot.slane %v2055, %v2061
        %v2063 = vcombine.low %v2051, %v2052
        %v2065 = vunpack.c.l.s4 1983009808
        %v2066 = vunpack.c.0.s8 %v2065
        %v2067 = vlaneseq
        %v2068 = vshrl.u32 %v2067, 7
        %v2069 = vsub.s32 %v2066, %v2068
        %v2070 = vrot.slane %v2063, %v2069
        %v2071 = vcombine.low %v2043, %v2050
        %v2073 = vunpack.c.l.s4 1983009808
        %v2074 = vunpack.c.0.s8 %v2073
        %v2075 = vlaneseq
        %v2076 = vshrl.u32 %v2075, 7
        %v2077 = vsub.s32 %v2074, %v2076
        %v2078 = vrot.slane %v2071, %v2077
        %v2079 = vcombine.low %v2053, %v2054
        %v2081 = vunpack.c.l.s4 1983009808
        %v2082 = vunpack.c.0.s8 %v2081
        %v2083 = vlaneseq
        %v2084 = vshrl.u32 %v2083, 7
        %v2085 = vsub.s32 %v2082, %v2084
        %v2086 = vrot.slane %v2079, %v2085
        %v2087 = vcombine.low %v2062, %v2070
        %v2088 = vcombine.high %v2062, %v2070
        %v2090 = vunpack.c.l.s4 1934713408
        %v2091 = vunpack.c.0.s8 %v2090
        %v2092 = vlaneseq
        %v2093 = vshrl.u32 %v2092, 7
        %v2094 = vsub.s32 %v2091, %v2093
        %v2095 = vrot.slane %v2087, %v2094
        %v2097 = vunpack.c.l.s4 1934713408
        %v2098 = vunpack.c.0.s8 %v2097
        %v2099 = vlaneseq
        %v2100 = vshrl.u32 %v2099, 7
        %v2101 = vsub.s32 %v2098, %v2100
        %v2102 = vrot.slane %v2088, %v2101
        %v2103 = vcombine.low %v2078, %v2086
        %v2104 = vcombine.high %v2078, %v2086
        %v2106 = vunpack.c.l.s4 1934713408
        %v2107 = vunpack.c.0.s8 %v2106
        %v2108 = vlaneseq
        %v2109 = vshrl.u32 %v2108, 7
        %v2110 = vsub.s32 %v2107, %v2109
        %v2111 = vrot.slane %v2103, %v2110
        %v2113 = vunpack.c.l.s4 1934713408
        %v2114 = vunpack.c.0.s8 %v2113
        %v2115 = vlaneseq
        %v2116 = vshrl.u32 %v2115, 7
        %v2117 = vsub.s32 %v2114, %v2116
        %v2118 = vrot.slane %v2104, %v2117
        %v2119 = vcombine.low %v2095, %v2111
        %v2120 = vcombine.high %v2095, %v2111
        %v2121 = vcombine.low %v2102, %v2118
        %v2122 = vcombine.high %v2102, %v2118
        %v2123 = vpack.c.bf16 %v2119, %v2119
        %v2124 = vpack.c.bf16 %v2120, %v2120
        %v2125 = vpack.c.bf16 %v2121, %v2121
        %v2126 = vpack.c.bf16 %v2122, %v2122
        %v2128 = vsel %vm878, %v1821, 0
        %v2131 = vsel %vm878, %v1971, 0
        %2133 = vmatprep.subr.bf16.mxu0 0
        %2134 = vmatpush1.bf16.xpose.msra.mxu0 0
        %2135 = vmatprep.subr.bf16.mxu0 0
        %2136 = vmatpush1.bf16.xpose.msra.mxu0 0
        %2137 = vmatprep.subr.bf16.mxu0 0
        %2138 = vmatpush1.bf16.xpose.msra.mxu0 0
        %2139 = vmatprep.subr.bf16.mxu0 0
        %2140 = vmatpush1.bf16.xpose.msra.mxu0 0
        %2141 = vmatprep.subr.bf16.mxu0 0
        %2142 = vmatpush1.bf16.xpose.msra.mxu0 0
        %2143 = vmatprep.subr.bf16.mxu0 0
        %2144 = vmatpush1.bf16.xpose.msra.mxu0 0
        %2145 = vmatprep.subr.bf16.mxu0 0
        %2146 = vmatpush1.bf16.xpose.msra.mxu0 0
        %2147 = vmatprep.subr.bf16.mxu0 0
        %2148 = vmatpush1.bf16.xpose.msra.mxu0 %v2131
        %2149 = vmatprep.subr.bf16.mxu0 0
        %2150 = vmatpush2.bf16.xpose.msra.mxu0 0
        %2151 = vmatprep.subr.bf16.mxu0 0
        %2152 = vmatpush2.bf16.xpose.msra.mxu0 0
        %2153 = vmatprep.subr.bf16.mxu0 0
        %2154 = vmatpush2.bf16.xpose.msra.mxu0 0
        %2155 = vmatprep.subr.bf16.mxu0 0
        %2156 = vmatpush2.bf16.xpose.msra.mxu0 0
        %2157 = vmatprep.subr.bf16.mxu0 0
        %2158 = vmatpush2.bf16.xpose.msra.mxu0 0
        %2159 = vmatprep.subr.bf16.mxu0 0
        %2160 = vmatpush2.bf16.xpose.msra.mxu0 0
        %2161 = vmatprep.subr.bf16.mxu0 0
        %2162 = vmatpush2.bf16.xpose.msra.mxu0 0
        %2163 = vmatprep.subr.bf16.mxu0 0
        %2164 = vmatpush2.bf16.xpose.msra.mxu0 0
        %2165 = vmatprep.mubr.bf16.mxu0 0
        %2166 = vmatmul.mubr.bf16.gmra.mxu0 %v2128
        %v2167 = vpop.f32.mrf.mxu0
        %v2168 = vadd.f32 0.0, %v2167
        %v2169 = vpop.f32.mrf.mxu0
        %v2170 = vpop.f32.mrf.mxu0
        %v2171 = vpop.f32.mrf.mxu0
        %2172 = vdwg.mxu0
        %v2174 = vsel %vm878, %v1822, 0
        %v2177 = vsel %vm878, %v1972, 0
        %2179 = vmatprep.subr.bf16.mxu0 0
        %2180 = vmatpush1.bf16.xpose.msra.mxu0 0
        %2181 = vmatprep.subr.bf16.mxu0 0
        %2182 = vmatpush1.bf16.xpose.msra.mxu0 0
        %2183 = vmatprep.subr.bf16.mxu0 0
        %2184 = vmatpush1.bf16.xpose.msra.mxu0 0
        %2185 = vmatprep.subr.bf16.mxu0 0
        %2186 = vmatpush1.bf16.xpose.msra.mxu0 0
        %2187 = vmatprep.subr.bf16.mxu0 0
        %2188 = vmatpush1.bf16.xpose.msra.mxu0 0
        %2189 = vmatprep.subr.bf16.mxu0 0
        %2190 = vmatpush1.bf16.xpose.msra.mxu0 0
        %2191 = vmatprep.subr.bf16.mxu0 0
        %2192 = vmatpush1.bf16.xpose.msra.mxu0 0
        %2193 = vmatprep.subr.bf16.mxu0 0
        %2194 = vmatpush1.bf16.xpose.msra.mxu0 %v2177
        %2195 = vmatprep.subr.bf16.mxu0 0
        %2196 = vmatpush2.bf16.xpose.msra.mxu0 0
        %2197 = vmatprep.subr.bf16.mxu0 0
        %2198 = vmatpush2.bf16.xpose.msra.mxu0 0
        %2199 = vmatprep.subr.bf16.mxu0 0
        %2200 = vmatpush2.bf16.xpose.msra.mxu0 0
        %2201 = vmatprep.subr.bf16.mxu0 0
        %2202 = vmatpush2.bf16.xpose.msra.mxu0 0
        %2203 = vmatprep.subr.bf16.mxu0 0
        %2204 = vmatpush2.bf16.xpose.msra.mxu0 0
        %2205 = vmatprep.subr.bf16.mxu0 0
        %2206 = vmatpush2.bf16.xpose.msra.mxu0 0
        %2207 = vmatprep.subr.bf16.mxu0 0
        %2208 = vmatpush2.bf16.xpose.msra.mxu0 0
        %2209 = vmatprep.subr.bf16.mxu0 0
        %2210 = vmatpush2.bf16.xpose.msra.mxu0 0
        %2211 = vmatprep.mubr.bf16.mxu0 0
        %2212 = vmatmul.mubr.bf16.gmra.mxu0 %v2174
        %v2213 = vpop.f32.mrf.mxu0
        %v2214 = vadd.f32 0.0, %v2213
        %v2215 = vpop.f32.mrf.mxu0
        %v2216 = vpop.f32.mrf.mxu0
        %v2217 = vpop.f32.mrf.mxu0
        %2218 = vdwg.mxu0
        %v2220 = vsel %vm878, %v1823, 0
        %v2223 = vsel %vm878, %v1973, 0
        %2225 = vmatprep.subr.bf16.mxu0 0
        %2226 = vmatpush1.bf16.xpose.msra.mxu0 0
        %2227 = vmatprep.subr.bf16.mxu0 0
        %2228 = vmatpush1.bf16.xpose.msra.mxu0 0
        %2229 = vmatprep.subr.bf16.mxu0 0
        %2230 = vmatpush1.bf16.xpose.msra.mxu0 0
        %2231 = vmatprep.subr.bf16.mxu0 0
        %2232 = vmatpush1.bf16.xpose.msra.mxu0 0
        %2233 = vmatprep.subr.bf16.mxu0 0
        %2234 = vmatpush1.bf16.xpose.msra.mxu0 0
        %2235 = vmatprep.subr.bf16.mxu0 0
        %2236 = vmatpush1.bf16.xpose.msra.mxu0 0
        %2237 = vmatprep.subr.bf16.mxu0 0
        %2238 = vmatpush1.bf16.xpose.msra.mxu0 0
        %2239 = vmatprep.subr.bf16.mxu0 0
        %2240 = vmatpush1.bf16.xpose.msra.mxu0 %v2223
        %2241 = vmatprep.subr.bf16.mxu0 0
        %2242 = vmatpush2.bf16.xpose.msra.mxu0 0
        %2243 = vmatprep.subr.bf16.mxu0 0
        %2244 = vmatpush2.bf16.xpose.msra.mxu0 0
        %2245 = vmatprep.subr.bf16.mxu0 0
        %2246 = vmatpush2.bf16.xpose.msra.mxu0 0
        %2247 = vmatprep.subr.bf16.mxu0 0
        %2248 = vmatpush2.bf16.xpose.msra.mxu0 0
        %2249 = vmatprep.subr.bf16.mxu0 0
        %2250 = vmatpush2.bf16.xpose.msra.mxu0 0
        %2251 = vmatprep.subr.bf16.mxu0 0
        %2252 = vmatpush2.bf16.xpose.msra.mxu0 0
        %2253 = vmatprep.subr.bf16.mxu0 0
        %2254 = vmatpush2.bf16.xpose.msra.mxu0 0
        %2255 = vmatprep.subr.bf16.mxu0 0
        %2256 = vmatpush2.bf16.xpose.msra.mxu0 0
        %2257 = vmatprep.mubr.bf16.mxu0 0
        %2258 = vmatmul.mubr.bf16.gmra.mxu0 %v2220
        %v2259 = vpop.f32.mrf.mxu0
        %v2260 = vadd.f32 0.0, %v2259
        %v2261 = vpop.f32.mrf.mxu0
        %v2262 = vpop.f32.mrf.mxu0
        %v2263 = vpop.f32.mrf.mxu0
        %2264 = vdwg.mxu0
        %v2266 = vsel %vm878, %v1824, 0
        %v2269 = vsel %vm878, %v1974, 0
        %2271 = vmatprep.subr.bf16.mxu0 0
        %2272 = vmatpush1.bf16.xpose.msra.mxu0 0
        %2273 = vmatprep.subr.bf16.mxu0 0
        %2274 = vmatpush1.bf16.xpose.msra.mxu0 0
        %2275 = vmatprep.subr.bf16.mxu0 0
        %2276 = vmatpush1.bf16.xpose.msra.mxu0 0
        %2277 = vmatprep.subr.bf16.mxu0 0
        %2278 = vmatpush1.bf16.xpose.msra.mxu0 0
        %2279 = vmatprep.subr.bf16.mxu0 0
        %2280 = vmatpush1.bf16.xpose.msra.mxu0 0
        %2281 = vmatprep.subr.bf16.mxu0 0
        %2282 = vmatpush1.bf16.xpose.msra.mxu0 0
        %2283 = vmatprep.subr.bf16.mxu0 0
        %2284 = vmatpush1.bf16.xpose.msra.mxu0 0
        %2285 = vmatprep.subr.bf16.mxu0 0
        %2286 = vmatpush1.bf16.xpose.msra.mxu0 %v2269
        %2287 = vmatprep.subr.bf16.mxu0 0
        %2288 = vmatpush2.bf16.xpose.msra.mxu0 0
        %2289 = vmatprep.subr.bf16.mxu0 0
        %2290 = vmatpush2.bf16.xpose.msra.mxu0 0
        %2291 = vmatprep.subr.bf16.mxu0 0
        %2292 = vmatpush2.bf16.xpose.msra.mxu0 0
        %2293 = vmatprep.subr.bf16.mxu0 0
        %2294 = vmatpush2.bf16.xpose.msra.mxu0 0
        %2295 = vmatprep.subr.bf16.mxu0 0
        %2296 = vmatpush2.bf16.xpose.msra.mxu0 0
        %2297 = vmatprep.subr.bf16.mxu0 0
        %2298 = vmatpush2.bf16.xpose.msra.mxu0 0
        %2299 = vmatprep.subr.bf16.mxu0 0
        %2300 = vmatpush2.bf16.xpose.msra.mxu0 0
        %2301 = vmatprep.subr.bf16.mxu0 0
        %2302 = vmatpush2.bf16.xpose.msra.mxu0 0
        %2303 = vmatprep.mubr.bf16.mxu0 0
        %2304 = vmatmul.mubr.bf16.gmra.mxu0 %v2266
        %v2305 = vpop.f32.mrf.mxu0
        %v2306 = vadd.f32 0.0, %v2305
        %v2307 = vpop.f32.mrf.mxu0
        %v2308 = vpop.f32.mrf.mxu0
        %v2309 = vpop.f32.mrf.mxu0
        %2310 = vdwg.mxu0
        %v2311 = vmul.f32 %v2168, 0.35355338
        %v2312 = vmul.f32 %v2214, 0.35355338
        %v2313 = vmul.f32 %v2260, 0.35355338
        %v2314 = vmul.f32 %v2306, 0.35355338
        %v2315 = vsel %vm1072, %v2311, -1e+09
        %v2316 = vsel %vm1072, %v2312, -1e+09
        %v2317 = vsel %vm1072, %v2313, -1e+09
        %v2318 = vsel %vm1072, %v2314, -1e+09
        %v2319 = vsel %vm878, %v2315, -inf
        %2320 = vmax.xlane.f32.xlu0 %v2319
        %v2321 = vpop.xlane.xlu0 %2320
        %v2322 = vsel %vm878, %v2316, -inf
        %2323 = vmax.xlane.f32.xlu0 %v2322
        %v2324 = vpop.xlane.xlu0 %2323
        %v2325 = vsel %vm878, %v2317, -inf
        %2326 = vmax.xlane.f32.xlu0 %v2325
        %v2327 = vpop.xlane.xlu0 %2326
        %v2328 = vsel %vm878, %v2318, -inf
        %2329 = vmax.xlane.f32.xlu0 %v2328
        %v2330 = vpop.xlane.xlu0 %2329
        %v2331 = vsub.f32 %v2315, %v2321
        %v2332 = vsub.f32 %v2316, %v2324
        %v2333 = vsub.f32 %v2317, %v2327
        %v2334 = vsub.f32 %v2318, %v2330
        %v2335 = vmul.f32 %v2331, 1.442695
        %v2336 = vpow.pop %v2335
        %v2337 = vmul.f32 %v2332, 1.442695
        %v2338 = vpow.pop %v2337
        %v2339 = vmul.f32 %v2333, 1.442695
        %v2340 = vpow.pop %v2339
        %v2341 = vmul.f32 %v2334, 1.442695
        %v2342 = vpow.pop %v2341
        %v2343 = vsel %vm878, %v2336, 0.0
        %2344 = vadd.xlane.f32.xlu0 %v2343
        %v2345 = vpop.xlane.xlu0 %2344
        %v2346 = vsel %vm878, %v2338, 0.0
        %2347 = vadd.xlane.f32.xlu0 %v2346
        %v2348 = vpop.xlane.xlu0 %2347
        %v2349 = vsel %vm878, %v2340, 0.0
        %2350 = vadd.xlane.f32.xlu0 %v2349
        %v2351 = vpop.xlane.xlu0 %2350
        %v2352 = vsel %vm878, %v2342, 0.0
        %2353 = vadd.xlane.f32.xlu0 %v2352
        %v2354 = vpop.xlane.xlu0 %2353
        %v2355 = vrcp.pop %v2345
        %v2356 = vrcp.pop %v2348
        %v2357 = vrcp.pop %v2351
        %v2358 = vrcp.pop %v2354
        %v2359 = vmul.f32 %v2336, %v2355
        %v2360 = vmul.f32 %v2338, %v2356
        %v2361 = vmul.f32 %v2340, %v2357
        %v2362 = vmul.f32 %v2342, %v2358
        %v2363 = vpack.c.bf16 %v2359, %v2359
        %v2364 = vpack.c.bf16 %v2360, %v2360
        %v2365 = vpack.c.bf16 %v2361, %v2361
        %v2366 = vpack.c.bf16 %v2362, %v2362
        %v2368 = vsel %vm878, %v2363, 0
        %v2371 = vsel %vm1128, %v2123, 0
        %2373 = vmatprep.subr.bf16.mxu0 0
        %2374 = vmatpush1.bf16.msra.mxu0 0
        %2375 = vmatprep.subr.bf16.mxu0 0
        %2376 = vmatpush1.bf16.msra.mxu0 0
        %2377 = vmatprep.subr.bf16.mxu0 0
        %2378 = vmatpush1.bf16.msra.mxu0 0
        %2379 = vmatprep.subr.bf16.mxu0 0
        %2380 = vmatpush1.bf16.msra.mxu0 0
        %2381 = vmatprep.subr.bf16.mxu0 0
        %2382 = vmatpush1.bf16.msra.mxu0 0
        %2383 = vmatprep.subr.bf16.mxu0 0
        %2384 = vmatpush1.bf16.msra.mxu0 0
        %2385 = vmatprep.subr.bf16.mxu0 0
        %2386 = vmatpush1.bf16.msra.mxu0 0
        %2387 = vmatprep.subr.bf16.mxu0 0
        %2388 = vmatpush1.bf16.msra.mxu0 %v2371
        %2389 = vmatprep.subr.bf16.mxu0 0
        %2390 = vmatpush2.bf16.msra.mxu0 0
        %2391 = vmatprep.subr.bf16.mxu0 0
        %2392 = vmatpush2.bf16.msra.mxu0 0
        %2393 = vmatprep.subr.bf16.mxu0 0
        %2394 = vmatpush2.bf16.msra.mxu0 0
        %2395 = vmatprep.subr.bf16.mxu0 0
        %2396 = vmatpush2.bf16.msra.mxu0 0
        %2397 = vmatprep.subr.bf16.mxu0 0
        %2398 = vmatpush2.bf16.msra.mxu0 0
        %2399 = vmatprep.subr.bf16.mxu0 0
        %2400 = vmatpush2.bf16.msra.mxu0 0
        %2401 = vmatprep.subr.bf16.mxu0 0
        %2402 = vmatpush2.bf16.msra.mxu0 0
        %2403 = vmatprep.subr.bf16.mxu0 0
        %2404 = vmatpush2.bf16.msra.mxu0 0
        %2405 = vmatprep.mubr.bf16.mxu0 0
        %2406 = vmatmul.mubr.bf16.gmra.mxu0 %v2368
        %v2407 = vpop.f32.mrf.mxu0
        %v2408 = vadd.f32 0.0, %v2407
        %v2409 = vpop.f32.mrf.mxu0
        %v2410 = vpop.f32.mrf.mxu0
        %v2411 = vpop.f32.mrf.mxu0
        %2412 = vdwg.mxu0
        %v2414 = vsel %vm878, %v2364, 0
        %v2417 = vsel %vm1128, %v2124, 0
        %2419 = vmatprep.subr.bf16.mxu0 0
        %2420 = vmatpush1.bf16.msra.mxu0 0
        %2421 = vmatprep.subr.bf16.mxu0 0
        %2422 = vmatpush1.bf16.msra.mxu0 0
        %2423 = vmatprep.subr.bf16.mxu0 0
        %2424 = vmatpush1.bf16.msra.mxu0 0
        %2425 = vmatprep.subr.bf16.mxu0 0
        %2426 = vmatpush1.bf16.msra.mxu0 0
        %2427 = vmatprep.subr.bf16.mxu0 0
        %2428 = vmatpush1.bf16.msra.mxu0 0
        %2429 = vmatprep.subr.bf16.mxu0 0
        %2430 = vmatpush1.bf16.msra.mxu0 0
        %2431 = vmatprep.subr.bf16.mxu0 0
        %2432 = vmatpush1.bf16.msra.mxu0 0
        %2433 = vmatprep.subr.bf16.mxu0 0
        %2434 = vmatpush1.bf16.msra.mxu0 %v2417
        %2435 = vmatprep.subr.bf16.mxu0 0
        %2436 = vmatpush2.bf16.msra.mxu0 0
        %2437 = vmatprep.subr.bf16.mxu0 0
        %2438 = vmatpush2.bf16.msra.mxu0 0
        %2439 = vmatprep.subr.bf16.mxu0 0
        %2440 = vmatpush2.bf16.msra.mxu0 0
        %2441 = vmatprep.subr.bf16.mxu0 0
        %2442 = vmatpush2.bf16.msra.mxu0 0
        %2443 = vmatprep.subr.bf16.mxu0 0
        %2444 = vmatpush2.bf16.msra.mxu0 0
        %2445 = vmatprep.subr.bf16.mxu0 0
        %2446 = vmatpush2.bf16.msra.mxu0 0
        %2447 = vmatprep.subr.bf16.mxu0 0
        %2448 = vmatpush2.bf16.msra.mxu0 0
        %2449 = vmatprep.subr.bf16.mxu0 0
        %2450 = vmatpush2.bf16.msra.mxu0 0
        %2451 = vmatprep.mubr.bf16.mxu0 0
        %2452 = vmatmul.mubr.bf16.gmra.mxu0 %v2414
        %v2453 = vpop.f32.mrf.mxu0
        %v2454 = vadd.f32 0.0, %v2453
        %v2455 = vpop.f32.mrf.mxu0
        %v2456 = vpop.f32.mrf.mxu0
        %v2457 = vpop.f32.mrf.mxu0
        %2458 = vdwg.mxu0
        %v2460 = vsel %vm878, %v2365, 0
        %v2463 = vsel %vm1128, %v2125, 0
        %2465 = vmatprep.subr.bf16.mxu0 0
        %2466 = vmatpush1.bf16.msra.mxu0 0
        %2467 = vmatprep.subr.bf16.mxu0 0
        %2468 = vmatpush1.bf16.msra.mxu0 0
        %2469 = vmatprep.subr.bf16.mxu0 0
        %2470 = vmatpush1.bf16.msra.mxu0 0
        %2471 = vmatprep.subr.bf16.mxu0 0
        %2472 = vmatpush1.bf16.msra.mxu0 0
        %2473 = vmatprep.subr.bf16.mxu0 0
        %2474 = vmatpush1.bf16.msra.mxu0 0
        %2475 = vmatprep.subr.bf16.mxu0 0
        %2476 = vmatpush1.bf16.msra.mxu0 0
        %2477 = vmatprep.subr.bf16.mxu0 0
        %2478 = vmatpush1.bf16.msra.mxu0 0
        %2479 = vmatprep.subr.bf16.mxu0 0
        %2480 = vmatpush1.bf16.msra.mxu0 %v2463
        %2481 = vmatprep.subr.bf16.mxu0 0
        %2482 = vmatpush2.bf16.msra.mxu0 0
        %2483 = vmatprep.subr.bf16.mxu0 0
        %2484 = vmatpush2.bf16.msra.mxu0 0
        %2485 = vmatprep.subr.bf16.mxu0 0
        %2486 = vmatpush2.bf16.msra.mxu0 0
        %2487 = vmatprep.subr.bf16.mxu0 0
        %2488 = vmatpush2.bf16.msra.mxu0 0
        %2489 = vmatprep.subr.bf16.mxu0 0
        %2490 = vmatpush2.bf16.msra.mxu0 0
        %2491 = vmatprep.subr.bf16.mxu0 0
        %2492 = vmatpush2.bf16.msra.mxu0 0
        %2493 = vmatprep.subr.bf16.mxu0 0
        %2494 = vmatpush2.bf16.msra.mxu0 0
        %2495 = vmatprep.subr.bf16.mxu0 0
        %2496 = vmatpush2.bf16.msra.mxu0 0
        %2497 = vmatprep.mubr.bf16.mxu0 0
        %2498 = vmatmul.mubr.bf16.gmra.mxu0 %v2460
        %v2499 = vpop.f32.mrf.mxu0
        %v2500 = vadd.f32 0.0, %v2499
        %v2501 = vpop.f32.mrf.mxu0
        %v2502 = vpop.f32.mrf.mxu0
        %v2503 = vpop.f32.mrf.mxu0
        %2504 = vdwg.mxu0
        %v2506 = vsel %vm878, %v2366, 0
        %v2509 = vsel %vm1128, %v2126, 0
        %2511 = vmatprep.subr.bf16.mxu0 0
        %2512 = vmatpush1.bf16.msra.mxu0 0
        %2513 = vmatprep.subr.bf16.mxu0 0
        %2514 = vmatpush1.bf16.msra.mxu0 0
        %2515 = vmatprep.subr.bf16.mxu0 0
        %2516 = vmatpush1.bf16.msra.mxu0 0
        %2517 = vmatprep.subr.bf16.mxu0 0
        %2518 = vmatpush1.bf16.msra.mxu0 0
        %2519 = vmatprep.subr.bf16.mxu0 0
        %2520 = vmatpush1.bf16.msra.mxu0 0
        %2521 = vmatprep.subr.bf16.mxu0 0
        %2522 = vmatpush1.bf16.msra.mxu0 0
        %2523 = vmatprep.subr.bf16.mxu0 0
        %2524 = vmatpush1.bf16.msra.mxu0 0
        %2525 = vmatprep.subr.bf16.mxu0 0
        %2526 = vmatpush1.bf16.msra.mxu0 %v2509
        %2527 = vmatprep.subr.bf16.mxu0 0
        %2528 = vmatpush2.bf16.msra.mxu0 0
        %2529 = vmatprep.subr.bf16.mxu0 0
        %2530 = vmatpush2.bf16.msra.mxu0 0
        %2531 = vmatprep.subr.bf16.mxu0 0
        %2532 = vmatpush2.bf16.msra.mxu0 0
        %2533 = vmatprep.subr.bf16.mxu0 0
        %2534 = vmatpush2.bf16.msra.mxu0 0
        %2535 = vmatprep.subr.bf16.mxu0 0
        %2536 = vmatpush2.bf16.msra.mxu0 0
        %2537 = vmatprep.subr.bf16.mxu0 0
        %2538 = vmatpush2.bf16.msra.mxu0 0
        %2539 = vmatprep.subr.bf16.mxu0 0
        %2540 = vmatpush2.bf16.msra.mxu0 0
        %2541 = vmatprep.subr.bf16.mxu0 0
        %2542 = vmatpush2.bf16.msra.mxu0 0
        %2543 = vmatprep.mubr.bf16.mxu0 0
        %2544 = vmatmul.mubr.bf16.gmra.mxu0 %v2506
        %v2545 = vpop.f32.mrf.mxu0
        %v2546 = vadd.f32 0.0, %v2545
        %v2547 = vpop.f32.mrf.mxu0
        %v2548 = vpop.f32.mrf.mxu0
        %v2549 = vpop.f32.mrf.mxu0
        %2550 = vdwg.mxu0
        %v2551 = vcombine.low %v2408, %v2500
        %v2552 = vcombine.high %v2408, %v2500
        %v2554 = vunpack.c.l.s4 1983009808
        %v2555 = vunpack.c.0.s8 %v2554
        %v2556 = vlaneseq
        %v2557 = vshrl.u32 %v2556, 7
        %v2558 = vsub.s32 %v2555, %v2557
        %v2559 = vrot.slane %v2551, %v2558
        %v2561 = vunpack.c.l.s4 1983009808
        %v2562 = vunpack.c.0.s8 %v2561
        %v2563 = vlaneseq
        %v2564 = vshrl.u32 %v2563, 7
        %v2565 = vsub.s32 %v2562, %v2564
        %v2566 = vrot.slane %v2552, %v2565
        %v2567 = vcombine.low %v2454, %v2546
        %v2568 = vcombine.high %v2454, %v2546
        %v2570 = vunpack.c.l.s4 1983009808
        %v2571 = vunpack.c.0.s8 %v2570
        %v2572 = vlaneseq
        %v2573 = vshrl.u32 %v2572, 7
        %v2574 = vsub.s32 %v2571, %v2573
        %v2575 = vrot.slane %v2567, %v2574
        %v2577 = vunpack.c.l.s4 1983009808
        %v2578 = vunpack.c.0.s8 %v2577
        %v2579 = vlaneseq
        %v2580 = vshrl.u32 %v2579, 7
        %v2581 = vsub.s32 %v2578, %v2580
        %v2582 = vrot.slane %v2568, %v2581
        %v2583 = vcombine.low %v2559, %v2575
        %v2584 = vcombine.high %v2559, %v2575
        %v2586 = vunpack.c.l.s4 1934713408
        %v2587 = vunpack.c.0.s8 %v2586
        %v2588 = vlaneseq
        %v2589 = vshrl.u32 %v2588, 7
        %v2590 = vsub.s32 %v2587, %v2589
        %v2591 = vrot.slane %v2583, %v2590
        %v2593 = vunpack.c.l.s4 1934713408
        %v2594 = vunpack.c.0.s8 %v2593
        %v2595 = vlaneseq
        %v2596 = vshrl.u32 %v2595, 7
        %v2597 = vsub.s32 %v2594, %v2596
        %v2598 = vrot.slane %v2584, %v2597
        %v2599 = vcombine.low %v2566, %v2582
        %v2600 = vcombine.high %v2566, %v2582
        %v2602 = vunpack.c.l.s4 1934713408
        %v2603 = vunpack.c.0.s8 %v2602
        %v2604 = vlaneseq
        %v2605 = vshrl.u32 %v2604, 7
        %v2606 = vsub.s32 %v2603, %v2605
        %v2607 = vrot.slane %v2599, %v2606
        %v2609 = vunpack.c.l.s4 1934713408
        %v2610 = vunpack.c.0.s8 %v2609
        %v2611 = vlaneseq
        %v2612 = vshrl.u32 %v2611, 7
        %v2613 = vsub.s32 %v2610, %v2612
        %v2614 = vrot.slane %v2600, %v2613
        %v2615 = vcombine.high %v2591, 0.0
        %v2616 = vcombine.high %v2598, 0.0
        %v2617 = vcombine.high %v2607, 0.0
        %v2618 = vcombine.high %v2614, 0.0
        %v2619 = vcombine.low %v2591, %v2598
        %v2621 = vunpack.c.l.s4 1983009808
        %v2622 = vunpack.c.0.s8 %v2621
        %v2623 = vlaneseq
        %v2624 = vshrl.u32 %v2623, 7
        %v2625 = vsub.s32 %v2622, %v2624
        %v2626 = vrot.slane %v2619, %v2625
        %v2627 = vcombine.low %v2615, %v2616
        %v2629 = vunpack.c.l.s4 1983009808
        %v2630 = vunpack.c.0.s8 %v2629
        %v2631 = vlaneseq
        %v2632 = vshrl.u32 %v2631, 7
        %v2633 = vsub.s32 %v2630, %v2632
        %v2634 = vrot.slane %v2627, %v2633
        %v2635 = vcombine.low %v2607, %v2614
        %v2637 = vunpack.c.l.s4 1983009808
        %v2638 = vunpack.c.0.s8 %v2637
        %v2639 = vlaneseq
        %v2640 = vshrl.u32 %v2639, 7
        %v2641 = vsub.s32 %v2638, %v2640
        %v2642 = vrot.slane %v2635, %v2641
        %v2643 = vcombine.low %v2617, %v2618
        %v2645 = vunpack.c.l.s4 1983009808
        %v2646 = vunpack.c.0.s8 %v2645
        %v2647 = vlaneseq
        %v2648 = vshrl.u32 %v2647, 7
        %v2649 = vsub.s32 %v2646, %v2648
        %v2650 = vrot.slane %v2643, %v2649
        %v2651 = vcombine.low %v2626, %v2634
        %v2652 = vcombine.high %v2626, %v2634
        %v2654 = vunpack.c.l.s4 1934713408
        %v2655 = vunpack.c.0.s8 %v2654
        %v2656 = vlaneseq
        %v2657 = vshrl.u32 %v2656, 7
        %v2658 = vsub.s32 %v2655, %v2657
        %v2659 = vrot.slane %v2651, %v2658
        %v2661 = vunpack.c.l.s4 1934713408
        %v2662 = vunpack.c.0.s8 %v2661
        %v2663 = vlaneseq
        %v2664 = vshrl.u32 %v2663, 7
        %v2665 = vsub.s32 %v2662, %v2664
        %v2666 = vrot.slane %v2652, %v2665
        %v2667 = vcombine.low %v2642, %v2650
        %v2668 = vcombine.high %v2642, %v2650
        %v2670 = vunpack.c.l.s4 1934713408
        %v2671 = vunpack.c.0.s8 %v2670
        %v2672 = vlaneseq
        %v2673 = vshrl.u32 %v2672, 7
        %v2674 = vsub.s32 %v2671, %v2673
        %v2675 = vrot.slane %v2667, %v2674
        %v2677 = vunpack.c.l.s4 1934713408
        %v2678 = vunpack.c.0.s8 %v2677
        %v2679 = vlaneseq
        %v2680 = vshrl.u32 %v2679, 7
        %v2681 = vsub.s32 %v2678, %v2680
        %v2682 = vrot.slane %v2668, %v2681
        %v2683 = vcombine.low %v2659, %v2675
        %v2684 = vcombine.high %v2659, %v2675
        %v2685 = vcombine.low %v2666, %v2682
        %v2686 = vcombine.high %v2666, %v2682
        %2688 = vrot.lane.b32.xlu0 %v2684, 8
        %v2689 = vpop.permute.xlu0 %2688
        %2692 = vrot.lane.b32.xlu0 %v2685, 16
        %v2693 = vpop.permute.xlu0 %2692
        %2696 = vrot.lane.b32.xlu0 %v2686, 24
        %v2697 = vpop.permute.xlu0 %2696
        %v2699 = vsel %vm878, %v2683, %v2689
        %v2700 = vsel %vm1459, %v2699, %v2693
        %v2701 = vsel %vm1461, %v2700, %v2697
        %v2702 = vld [vmem:[%s3 + $0x8] sm:$0xff]
        %v2703 = vld [vmem:[%s3 + $0x20] sm:$0xff]
        %v2704 = vld [vmem:[%s3 + $0x38] sm:$0xff]
        %v2705 = vld [vmem:[%s3 + $0x50] sm:$0xff]
        %v2706 = vpack.c.bf16 %v2701, %v2701
        %v2707 = vpack.c.bf16 %v2703, %v2702
        %v2708 = vpack.c.bf16 %v2705, %v2704
        %v2709 = vld [vmem:[%s5 + $0x1] sm:$0x1]
        %v2711 = vlaneseq
        %v2712 = vshrl.u32 %v2711, 7
        %v2713 = vsub.s32 0, %v2712
        %v2714 = vrot.slane %v2709, %v2713
        %2717 = vrot.lane.b32.xlu0 %v2707, 32
        %v2718 = vpop.permute.xlu0 %2717
        %2719 = vrot.lane.b32.xlu0 %v2708, 32
        %v2720 = vpop.permute.xlu0 %2719
        %2723 = vrot.lane.b32.xlu0 %v2714, 32
        %v2724 = vpop.permute.xlu0 %2723
        %v2727 = vsel %vm325, %v2706, 0
        %2729 = vmatprep.subr.bf16.mxu0 0
        %2730 = vmatpush1.bf16.msra.mxu0 0
        %2731 = vmatprep.subr.bf16.mxu0 0
        %2732 = vmatpush1.bf16.msra.mxu0 0
        %2733 = vmatprep.subr.bf16.mxu0 0
        %2734 = vmatpush1.bf16.msra.mxu0 0
        %2735 = vmatprep.subr.bf16.mxu0 0
        %2736 = vmatpush1.bf16.msra.mxu0 0
        %2737 = vmatprep.subr.bf16.mxu0 0
        %2738 = vmatpush1.bf16.msra.mxu0 0
        %2739 = vmatprep.subr.bf16.mxu0 0
        %2740 = vmatpush1.bf16.msra.mxu0 0
        %2741 = vmatprep.subr.bf16.mxu0 0
        %2742 = vmatpush1.bf16.msra.mxu0 %v2720
        %2743 = vmatprep.subr.bf16.mxu0 0
        %2744 = vmatpush1.bf16.msra.mxu0 %v2718
        %2745 = vmatprep.subr.bf16.mxu0 0
        %2746 = vmatpush2.bf16.msra.mxu0 0
        %2747 = vmatprep.subr.bf16.mxu0 0
        %2748 = vmatpush2.bf16.msra.mxu0 0
        %2749 = vmatprep.subr.bf16.mxu0 0
        %2750 = vmatpush2.bf16.msra.mxu0 0
        %2751 = vmatprep.subr.bf16.mxu0 0
        %2752 = vmatpush2.bf16.msra.mxu0 0
        %2753 = vmatprep.subr.bf16.mxu0 0
        %2754 = vmatpush2.bf16.msra.mxu0 0
        %2755 = vmatprep.subr.bf16.mxu0 0
        %2756 = vmatpush2.bf16.msra.mxu0 0
        %2757 = vmatprep.subr.bf16.mxu0 0
        %2758 = vmatpush2.bf16.msra.mxu0 0
        %2759 = vmatprep.subr.bf16.mxu0 0
        %2760 = vmatpush2.bf16.msra.mxu0 0
        %2761 = vmatprep.mubr.bf16.mxu0 0
        %2762 = vmatmul.mubr.bf16.gmra.mxu0 %v2727
        %v2763 = vpop.f32.mrf.mxu0
        %v2764 = vadd.f32 %v2724, %v2763
        %v2765 = vpop.f32.mrf.mxu0
        %v2766 = vpop.f32.mrf.mxu0
        %v2767 = vpop.f32.mrf.mxu0
        %2768 = vdwg.mxu0
        %v2769 = vadd.f32 %v1530, %v2764
        %v2770 = vld [vmem:[%s5 + $0x3] sm:$0x1]
        %v2771 = vld [vmem:[%s5 + $0x4] sm:$0x1]
        %v2772 = vsel %vm325, %v2769, 0.0
        %2773 = vadd.xlane.f32.xlu0 %v2772
        %v2774 = vpop.xlane.xlu0 %2773
        %v2775 = vmul.f32 %v2774, %v329
        %v2776 = vsub.f32 %v2769, %v2775
        %v2777 = vmul.f32 %v2776, %v2776
        %v2778 = vsel %vm325, %v2777, 0.0
        %2779 = vadd.xlane.f32.xlu0 %v2778
        %v2780 = vpop.xlane.xlu0 %2779
        %v2781 = vmul.f32 %v2780, 0.032258064
        %v2782 = vrsqrt.pop %v2781
        %v2783 = vmul.f32 %v2781, %v2782
        %vm2784 = vcmp.eq.f32.partialorder %v2781, inf
        %v2785 = vsel %vm2784, %v2781, %v2783
        %vm2786 = vcmp.eq.f32.partialorder %v2781, 0.0
        %v2787 = vand.u32 %v2781, 2147483648
        %v2788 = vsel %vm2786, %v2787, %v2785
        %v2789 = vadd.f32 %v2788, 1e-06
        %v2790 = vrcp.pop %v2789
        %v2792 = vlaneseq
        %v2793 = vshrl.u32 %v2792, 7
        %v2794 = vsub.s32 0, %v2793
        %v2795 = vrot.slane %v2770, %v2794
        %v2797 = vmul.f32 %v2795, %v2790
        %2799 = vrot.lane.b32.xlu0 %v2797, 96
        %v2800 = vpop.permute.xlu0 %2799
        %v2802 = vmul.f32 %v2776, %v2800
        %v2804 = vlaneseq
        %v2805 = vshrl.u32 %v2804, 7
        %v2806 = vsub.s32 0, %v2805
        %v2807 = vrot.slane %v2771, %v2806
        %v2809 = vadd.f32 %v2802, %v2807
        %v2810 = vld [vmem:[%s3 + $0x10] sm:$0xff]
        %v2811 = vld [vmem:[%s3 + $0x28] sm:$0xff]
        %v2812 = vld [vmem:[%s3 + $0x40] sm:$0xff]
        %v2813 = vld [vmem:[%s3 + $0x58] sm:$0xff]
        %v2814 = vpack.c.bf16 %v2809, %v2809
        %v2815 = vpack.c.bf16 %v2811, %v2810
        %v2816 = vpack.c.bf16 %v2813, %v2812
        %v2817 = vld [vmem:[%s5 + $0x2] sm:$0x1]
        %v2819 = vlaneseq
        %v2820 = vshrl.u32 %v2819, 7
        %v2821 = vsub.s32 0, %v2820
        %v2822 = vrot.slane %v2817, %v2821
        %v2825 = vsel %vm325, %v2814, 0
        %2827 = vmatprep.subr.bf16.mxu0 0
        %2828 = vmatpush1.bf16.msra.mxu0 0
        %2829 = vmatprep.subr.bf16.mxu0 0
        %2830 = vmatpush1.bf16.msra.mxu0 0
        %2831 = vmatprep.subr.bf16.mxu0 0
        %2832 = vmatpush1.bf16.msra.mxu0 0
        %2833 = vmatprep.subr.bf16.mxu0 0
        %2834 = vmatpush1.bf16.msra.mxu0 0
        %2835 = vmatprep.subr.bf16.mxu0 0
        %2836 = vmatpush1.bf16.msra.mxu0 0
        %2837 = vmatprep.subr.bf16.mxu0 0
        %2838 = vmatpush1.bf16.msra.mxu0 0
        %2839 = vmatprep.subr.bf16.mxu0 0
        %2840 = vmatpush1.bf16.msra.mxu0 %v2816
        %2841 = vmatprep.subr.bf16.mxu0 0
        %2842 = vmatpush1.bf16.msra.mxu0 %v2815
        %2843 = vmatprep.subr.bf16.mxu0 0
        %2844 = vmatpush2.bf16.msra.mxu0 0
        %2845 = vmatprep.subr.bf16.mxu0 0
        %2846 = vmatpush2.bf16.msra.mxu0 0
        %2847 = vmatprep.subr.bf16.mxu0 0
        %2848 = vmatpush2.bf16.msra.mxu0 0
        %2849 = vmatprep.subr.bf16.mxu0 0
        %2850 = vmatpush2.bf16.msra.mxu0 0
        %2851 = vmatprep.subr.bf16.mxu0 0
        %2852 = vmatpush2.bf16.msra.mxu0 0
        %2853 = vmatprep.subr.bf16.mxu0 0
        %2854 = vmatpush2.bf16.msra.mxu0 0
        %2855 = vmatprep.subr.bf16.mxu0 0
        %2856 = vmatpush2.bf16.msra.mxu0 0
        %2857 = vmatprep.subr.bf16.mxu0 0
        %2858 = vmatpush2.bf16.msra.mxu0 0
        %2859 = vmatprep.mubr.bf16.mxu0 0
        %2860 = vmatmul.mubr.bf16.gmra.mxu0 %v2825
        %v2861 = vpop.f32.mrf.mxu0
        %v2862 = vadd.f32 %v2822, %v2861
        %v2863 = vpop.f32.mrf.mxu0
        %v2864 = vpop.f32.mrf.mxu0
        %v2865 = vpop.f32.mrf.mxu0
        %2866 = vdwg.mxu0
        %v2867 = vmax.f32 %v2862, 0.0
        %v2868 = vld [vmem:[%s4] sm:$0xff]
        %v2869 = vld [vmem:[%s4 + $0x8] sm:$0xff]
        %v2870 = vld [vmem:[%s4 + $0x10] sm:$0xff]
        %v2871 = vld [vmem:[%s4 + $0x18] sm:$0xff]
        %v2872 = vld [vmem:[%s4 + $0x20] sm:$0xff]
        %v2873 = vld [vmem:[%s4 + $0x28] sm:$0xff]
        %v2874 = vld [vmem:[%s4 + $0x30] sm:$0xff]
        %v2875 = vld [vmem:[%s4 + $0x38] sm:$0xff]
        %v2876 = vpack.c.bf16 %v2867, %v2867
        %v2877 = vpack.c.bf16 %v2869, %v2868
        %v2878 = vpack.c.bf16 %v2871, %v2870
        %v2879 = vpack.c.bf16 %v2873, %v2872
        %v2880 = vpack.c.bf16 %v2875, %v2874
        %vm2881 = vcmask 523264
        %v2883 = vsel %vm2881, %v2876, 0
        %2885 = vmatprep.subr.bf16.mxu0 0
        %2886 = vmatpush1.bf16.msra.mxu0 0
        %2887 = vmatprep.subr.bf16.mxu0 0
        %2888 = vmatpush1.bf16.msra.mxu0 0
        %2889 = vmatprep.subr.bf16.mxu0 0
        %2890 = vmatpush1.bf16.msra.mxu0 0
        %2891 = vmatprep.subr.bf16.mxu0 0
        %2892 = vmatpush1.bf16.msra.mxu0 0
        %2893 = vmatprep.subr.bf16.mxu0 0
        %2894 = vmatpush1.bf16.msra.mxu0 %v2880
        %2895 = vmatprep.subr.bf16.mxu0 0
        %2896 = vmatpush1.bf16.msra.mxu0 %v2879
        %2897 = vmatprep.subr.bf16.mxu0 0
        %2898 = vmatpush1.bf16.msra.mxu0 %v2878
        %2899 = vmatprep.subr.bf16.mxu0 0
        %2900 = vmatpush1.bf16.msra.mxu0 %v2877
        %2901 = vmatprep.subr.bf16.mxu0 0
        %2902 = vmatpush2.bf16.msra.mxu0 0
        %2903 = vmatprep.subr.bf16.mxu0 0
        %2904 = vmatpush2.bf16.msra.mxu0 0
        %2905 = vmatprep.subr.bf16.mxu0 0
        %2906 = vmatpush2.bf16.msra.mxu0 0
        %2907 = vmatprep.subr.bf16.mxu0 0
        %2908 = vmatpush2.bf16.msra.mxu0 0
        %2909 = vmatprep.subr.bf16.mxu0 0
        %2910 = vmatpush2.bf16.msra.mxu0 0
        %2911 = vmatprep.subr.bf16.mxu0 0
        %2912 = vmatpush2.bf16.msra.mxu0 0
        %2913 = vmatprep.subr.bf16.mxu0 0
        %2914 = vmatpush2.bf16.msra.mxu0 0
        %2915 = vmatprep.subr.bf16.mxu0 0
        %2916 = vmatpush2.bf16.msra.mxu0 0
        %2917 = vmatprep.mubr.bf16.mxu0 0
        %2918 = vmatmul.mubr.bf16.gmra.mxu0 %v2883
        %v2919 = vpop.f32.mrf.mxu0
        %v2920 = vadd.f32 0.0, %v2919
        %v2921 = vpop.f32.mrf.mxu0
        %v2922 = vpop.f32.mrf.mxu0
        %v2923 = vpop.f32.mrf.mxu0
        %2924 = vdwg.mxu0
        %v2925 = vadd.f32 %v2769, %v2920
        %2926 = vrot.lane.b32.xlu0 %v2822, 64
        %v2927 = vpop.permute.xlu0 %2926
        %v2929 = vadd.f32 %v2925, %v2927
        %2930 = vst.msk [vmem:[%s314] sm:$0xff] %vm325, %v2929
        %s2931 = sand.u32 %s175, 1
        %s2932 = scalar_lea.sflag [#allocation4], %s2931
        %s2933 = sand.u32 %s175, 1
        %s2934 = smul.addr %s2933, 8
        %s2935 = scalar_lea.vmem [#allocation7], %s2934
        // Predicated region
        $region53: #{decoder_block_forward.1} parent=43 // pred_check
          %p2936 = pneg %p185
        $region54: #{decoder_block_forward.1} parent=43 // pred_check_branch
          %2938 = sbr.rel (%p2936) target = $region56
        $region55: #{decoder_block_forward.1} parent=43 // pred_region
          %s2940 = ssub.s32 128, 128
          %2941 = vsyncadd %s2932, %s2940
          %s2942 = smul.addr %s26, 128
          %s2943 = scalar_lea.hbm %s6, %s2942
          %s2945 = sshll.u32 %s2935, 4
          %s2946 = int_to_ptr.vmem [resolvable:$true] %s2945
          %2948 = dma.vmem_to_hbm [thread:$0]  %s2946, 128, %s2943, %s2932
        $region56: #{decoder_block_forward.1} parent=43 // pred_fallthru
          _
      $region44: #{decoder_block_forward.1} parent=5 // pred_fallthru
        _
      %p2949 = scmp.le.s32.totalorder 2, %s21
      // Predicated region
      $region57: #{decoder_block_forward.1} parent=5 // pred_check
        %p2950 = pneg %p2949
      $region58: #{decoder_block_forward.1} parent=5 // pred_check_branch
        %2952 = sbr.rel (%p2950) target = $region60
      $region59: #{decoder_block_forward.1} parent=5 // pred_region
        %s2953 = ssub.s32 %s21, 2
        // Predicated region
        $region61: #{decoder_block_forward.1} parent=59 // pred_check
          %p2954 = pneg %p191
        $region62: #{decoder_block_forward.1} parent=59 // pred_check_branch
          %2956 = sbr.rel (%p2954) target = $region64
        $region63: #{decoder_block_forward.1} parent=59 // pred_region
          %s2957 = sand.u32 %s176, 1
          %s2958 = scalar_lea.sflag [#allocation4], %s2957
          %s2959 = sand.u32 %s176, 1
          %s2960 = smul.addr %s2959, 8
          %s2961 = scalar_lea.vmem [#allocation7], %s2960
          %2962 = dma.done %s2958, 128
        $region64: #{decoder_block_forward.1} parent=59 // pred_fallthru
          _
      $region60: #{decoder_block_forward.1} parent=5 // pred_fallthru
        _
    $region6: #{decoder_block_forward.1} parent=1 // loop_footer
      %s25 = sadd.s32 1, %s21
    $region7: #{decoder_block_forward.1} parent=1 // loop_footer_branch
      %20 = sbr.rel target = $region3
    $region8: #{decoder_block_forward.1} parent=1 // loop_exit
      _
    %2963 = vsyncpa [#allocation3], 1
    %s2964 = scalar_lea.sflag [#allocation3], 1
    %2965 = vsyncpa %s2964, 1
    %2966 = vsyncpa [#allocation6], 1
    %s2967 = scalar_lea.sflag [#allocation6], 1
    %2968 = vsyncpa %s2967, 1
    %2969 = vsyncpa [#allocation4], 1
    %s2970 = scalar_lea.sflag [#allocation4], 1
    %2971 = vsyncpa %s2970, 1

</llo_original>
